<compile_context>
chip_gen: v7x
topology: tpu7x:2x2x1
jax: 0.10.0
libtpu: 0.0.40
codegen_flags: <defaults>
</compile_context>

<pallas_src>
import math
import functools

import jax
import jax.numpy as jnp
from jax.experimental import pallas as pl
from jax.experimental.pallas import tpu as pltpu

_LN_EPS = 1e-5
_MASK_VALUE = -1e9


def _vmem_budget_bytes():
    """Generation-aware scoped-VMEM budget (~3/4 of physical, capped 96 MiB)."""
    cap = 64 * 1024 * 1024  # conservative default (v7x physical VMEM / TC)
    try:
        cap = getattr(pltpu.get_tpu_info(), "vmem_capacity_bytes", cap)
    except Exception:
        pass
    return max(32 * 1024 * 1024, min(int(cap * 3 // 4), 96 * 1024 * 1024))


_VMEM_LIMIT = _vmem_budget_bytes()
_FFN_FUSED_WEIGHT_BUDGET = _VMEM_LIMIT // 4


def _round_up(x, m):
    return (x + m - 1) // m * m


def _pick_tile(dim, target, align):
    """Tile that is a multiple of `align`; the caller zero-pads `dim` up to a
    multiple of the returned tile (never falls back to full-array tiles)."""
    if dim <= target:
        return _round_up(dim, align)
    t = max(align, (target // align) * align)
    tt = t
    while tt > align and dim % tt:
        tt -= align
    return tt if dim % tt == 0 else t


def _divisor_tile(dim, target, align):
    """Largest power-of-two-ish tile <= target that divides dim, else dim."""
    if dim <= target:
        return dim
    t = target
    while t > align and dim % t:
        t //= 2
    return t if dim % t == 0 else dim


# ----------------------------------------------------------------------------
# Tiled matmul kernels (MXU) with fused epilogues
# ----------------------------------------------------------------------------

def _matmul_kernel(x_ref, w_ref, b_ref, o_ref, acc_ref, *, activation):
    """Tiled y = x @ W + b (optional ReLU).  Accumulates over the K grid axis."""
    @pl.when(pl.program_id(2) == 0)
    def _():
        acc_ref[...] = jnp.zeros_like(acc_ref)

    acc_ref[...] += jnp.dot(x_ref[...], w_ref[...],
                            preferred_element_type=jnp.float32)

    @pl.when(pl.program_id(2) == pl.num_programs(2) - 1)
    def _():
        y = acc_ref[...] + b_ref[...].astype(jnp.float32)
        if activation == "relu":
            y = jnp.maximum(y, 0.0)
        o_ref[...] = y.astype(o_ref.dtype)


def linear(x, w, b, *, activation=None, out_dtype=None, tm=512, tn=512, tk=512):
    """x:(M,K) @ w:(K,N) + b:(N,).  (M,N,K)-tiled MXU matmul, fused epilogue.
    Non-aligned dims are zero-padded up to a tile multiple and sliced off."""
    m, k = x.shape
    k2, n = w.shape
    assert k == k2
    out_dtype = out_dtype or x.dtype
    tm = _pick_tile(m, tm, 8)
    tn = _pick_tile(n, tn, 128)
    tk = _pick_tile(k, tk, 128)
    mp, kp, np_ = _round_up(m, tm), _round_up(k, tk), _round_up(n, tn)
    if (mp, kp) != (m, k):
        x = jnp.pad(x, ((0, mp - m), (0, kp - k)))
    if (kp, np_) != (k, n):
        w = jnp.pad(w, ((0, kp - k), (0, np_ - n)))
    if np_ != n:
        b = jnp.pad(b, (0, np_ - n))

    out = pl.pallas_call(
        functools.partial(_matmul_kernel, activation=activation),
        out_shape=jax.ShapeDtypeStruct((mp, np_), out_dtype),
        grid=(mp // tm, np_ // tn, kp // tk),
        in_specs=[
            pl.BlockSpec((tm, tk), lambda i, j, kk: (i, kk)),
            pl.BlockSpec((tk, tn), lambda i, j, kk: (kk, j)),
            pl.BlockSpec((1, tn), lambda i, j, kk: (0, j)),
        ],
        out_specs=pl.BlockSpec((tm, tn), lambda i, j, kk: (i, j)),
        scratch_shapes=[pltpu.VMEM((tm, tn), jnp.float32)],
        compiler_params=pltpu.CompilerParams(
            dimension_semantics=("parallel", "parallel", "arbitrary"),
            vmem_limit_bytes=_VMEM_LIMIT),
    )(x, w, b.reshape(1, np_))
    if (mp, np_) != (m, n):
        out = out[:m, :n]
    return out


def _matmul_res_ln_kernel(x_ref, w_ref, b_ref, res_ref, g_ref, be_ref,
                          o_ref, acc_ref, *, eps):
    """Tiled y = LayerNorm(x @ W + b + residual).  Full N per block."""
    @pl.when(pl.program_id(1) == 0)
    def _():
        acc_ref[...] = jnp.zeros_like(acc_ref)

    acc_ref[...] += jnp.dot(x_ref[...], w_ref[...],
                            preferred_element_type=jnp.float32)

    @pl.when(pl.program_id(1) == pl.num_programs(1) - 1)
    def _():
        y = acc_ref[...] + b_ref[...] + res_ref[...].astype(jnp.float32)
        mean = jnp.mean(y, axis=-1, keepdims=True)
        c = y - mean
        var = jnp.mean(c * c, axis=-1, keepdims=True)
        yn = c * jax.lax.rsqrt(var + eps)
        o_ref[...] = (yn * g_ref[...] + be_ref[...]).astype(o_ref.dtype)


def linear_residual_ln(x, w, b, residual, gamma, beta, *, tm=512, tk=512):
    """Out-projection / FFN-2 with residual-add + LayerNorm fused as epilogue."""
    m, k = x.shape
    _, n = w.shape
    tm = _pick_tile(m, tm, 8)
    tk = _pick_tile(k, tk, 128)
    mp, kp = _round_up(m, tm), _round_up(k, tk)
    if (mp, kp) != (m, k):
        x = jnp.pad(x, ((0, mp - m), (0, kp - k)))
    if kp != k:
        w = jnp.pad(w, ((0, kp - k), (0, 0)))
    if mp != m:
        residual = jnp.pad(residual, ((0, mp - m), (0, 0)))

    out = pl.pallas_call(
        functools.partial(_matmul_res_ln_kernel, eps=_LN_EPS),
        out_shape=jax.ShapeDtypeStruct((mp, n), x.dtype),
        grid=(mp // tm, kp // tk),
        in_specs=[
            pl.BlockSpec((tm, tk), lambda i, kk: (i, kk)),
            pl.BlockSpec((tk, n), lambda i, kk: (kk, 0)),
            pl.BlockSpec((1, n), lambda i, kk: (0, 0)),
            pl.BlockSpec((tm, n), lambda i, kk: (i, 0)),
            pl.BlockSpec((1, n), lambda i, kk: (0, 0)),
            pl.BlockSpec((1, n), lambda i, kk: (0, 0)),
        ],
        out_specs=pl.BlockSpec((tm, n), lambda i, kk: (i, 0)),
        scratch_shapes=[pltpu.VMEM((tm, n), jnp.float32)],
        compiler_params=pltpu.CompilerParams(
            dimension_semantics=("parallel", "arbitrary"),
            vmem_limit_bytes=_VMEM_LIMIT),
    )(x, w, b.reshape(1, n), residual, gamma.reshape(1, n), beta.reshape(1, n))
    return out[:m] if mp != m else out


def _ffn_res_ln_kernel(x_ref, w1_ref, b1_ref, w2_ref, b2_ref, g_ref, be_ref,
                       o_ref, *, eps):
    """Fused FFN: LayerNorm(x + lin2(relu(lin1(x)))), intermediate on-chip."""
    x = x_ref[...]
    h = jnp.dot(x, w1_ref[...], preferred_element_type=jnp.float32)
    h = jnp.maximum(h + b1_ref[...], 0.0).astype(x.dtype)
    y = jnp.dot(h, w2_ref[...], preferred_element_type=jnp.float32)
    y = y + b2_ref[...] + x.astype(jnp.float32)
    mean = jnp.mean(y, axis=-1, keepdims=True)
    c = y - mean
    var = jnp.mean(c * c, axis=-1, keepdims=True)
    yn = c * jax.lax.rsqrt(var + eps)
    o_ref[...] = (yn * g_ref[...] + be_ref[...]).astype(o_ref.dtype)


def ffn_residual_ln(x, w1, b1, w2, b2, gamma, beta, *, tm=512,
                    fused_weight_budget=_FFN_FUSED_WEIGHT_BUDGET):
    """FFN block.  Fully fused when both weights fit the VMEM budget, else two
    tiled matmul kernels (ReLU fused into lin1, residual+LN into lin2)."""
    m, d = x.shape
    dh = w1.shape[1]
    weight_bytes = 2 * (w1.size * w1.dtype.itemsize + w2.size * w2.dtype.itemsize)
    if weight_bytes > fused_weight_budget:
        hmid = linear(x, w1, b1, activation="relu")
        return linear_residual_ln(hmid, w2, b2, x, gamma, beta)

    # TODO(synk): on v7x, pipeline_mode=pl.Buffered(1) on the constant-index
    # weight blocks would avoid double-buffering resident weights.
    tm = _pick_tile(m, tm, 8)
    mp = _round_up(m, tm)
    if mp != m:
        x = jnp.pad(x, ((0, mp - m), (0, 0)))
    out = pl.pallas_call(
        functools.partial(_ffn_res_ln_kernel, eps=_LN_EPS),
        out_shape=jax.ShapeDtypeStruct((mp, d), x.dtype),
        grid=(mp // tm,),
        in_specs=[
            pl.BlockSpec((tm, d), lambda i: (i, 0)),
            pl.BlockSpec((d, dh), lambda i: (0, 0)),
            pl.BlockSpec((1, dh), lambda i: (0, 0)),
            pl.BlockSpec((dh, d), lambda i: (0, 0)),
            pl.BlockSpec((1, d), lambda i: (0, 0)),
            pl.BlockSpec((1, d), lambda i: (0, 0)),
            pl.BlockSpec((1, d), lambda i: (0, 0)),
        ],
        out_specs=pl.BlockSpec((tm, d), lambda i: (i, 0)),
        compiler_params=pltpu.CompilerParams(
            dimension_semantics=("parallel",),
            vmem_limit_bytes=_VMEM_LIMIT),
    )(x, w1, b1.reshape(1, dh), w2, b2.reshape(1, d),
      gamma.reshape(1, d), beta.reshape(1, d))
    return out[:m] if mp != m else out


# ----------------------------------------------------------------------------
# Multi-head attention (head-major, grid over batch*head x q-tiles)
# ----------------------------------------------------------------------------

def _attn_kernel(*refs, scale, causal):
    if causal:
        q_ref, kt_ref, v_ref, o_ref = refs
        mask_ref = None
    else:
        q_ref, kt_ref, v_ref, mask_ref, o_ref = refs

    q = q_ref[0]                                   # (tq, hd) bf16
    kt = kt_ref[0]                                 # (hd, S)  bf16, pre-transposed
    s = jnp.dot(q, kt, preferred_element_type=jnp.float32) * scale   # (tq, S)
    if causal:
        tq, seq = s.shape
        row = pl.program_id(1) * tq + jax.lax.broadcasted_iota(
            jnp.int32, (tq, seq), 0)
        col = jax.lax.broadcasted_iota(jnp.int32, (tq, seq), 1)
        s = s + jnp.where(col > row, _MASK_VALUE, 0.0)
    else:
        s = s + mask_ref[...]
    m = jnp.max(s, axis=-1, keepdims=True)
    p = jnp.exp(s - m)
    l = jnp.sum(p, axis=-1, keepdims=True)
    ctx = jnp.dot(p.astype(q.dtype), v_ref[0], preferred_element_type=jnp.float32)
    o_ref[0] = (ctx * pl.reciprocal(l, approx=True)).astype(o_ref.dtype)


def attention(qkv, *, batch, seq, nhead, mask=None, tq=256):
    """qkv: (S*B, 3D) fused projection output in seq-major row order."""
    bs, d3 = qkv.shape
    assert bs == seq * batch
    d = d3 // 3
    hd = d // nhead
    bh = batch * nhead
    tq = _divisor_tile(seq, tq, 8)

    # Head-major split with K pre-transposed (perf review): no per-head narrow
    # column slices / XLU transposes inside the kernel; heads become grid
    # parallelism.  These are plain XLA relayout copies, done once per layer.
    qkv5 = qkv.reshape(seq, batch, 3, nhead, hd)
    q = qkv5[:, :, 0].transpose(1, 2, 0, 3).reshape(bh, seq, hd)
    kt = qkv5[:, :, 1].transpose(1, 2, 3, 0).reshape(bh, hd, seq)
    v = qkv5[:, :, 2].transpose(1, 2, 0, 3).reshape(bh, seq, hd)

    causal = mask is None
    in_specs = [
        pl.BlockSpec((1, tq, hd), lambda b, qi: (b, qi, 0)),
        pl.BlockSpec((1, hd, seq), lambda b, qi: (b, 0, 0)),
        pl.BlockSpec((1, seq, hd), lambda b, qi: (b, 0, 0)),
    ]
    args = [q, kt, v]
    if not causal:
        in_specs.append(pl.BlockSpec((tq, seq), lambda b, qi: (qi, 0)))
        args.append(mask)

    # TODO(synk): for long sequences, add a KV-tile grid axis with an
    # online-softmax (flash) running m/l/acc so VMEM stays O(tq*tkv).
    ctx = pl.pallas_call(
        functools.partial(_attn_kernel, scale=1.0 / math.sqrt(hd), causal=causal),
        out_shape=jax.ShapeDtypeStruct((bh, seq, hd), qkv.dtype),
        grid=(bh, seq // tq),
        in_specs=in_specs,
        out_specs=pl.BlockSpec((1, tq, hd), lambda b, qi: (b, qi, 0)),
        compiler_params=pltpu.CompilerParams(
            dimension_semantics=("parallel", "parallel"),
            vmem_limit_bytes=_VMEM_LIMIT),
    )(*args)

    # merge heads back into the lane-dense seq-major (S*B, D) slab
    return ctx.reshape(batch, nhead, seq, hd).transpose(2, 0, 1, 3).reshape(bs, d)


# ----------------------------------------------------------------------------
# Model glue (parameter setup, embedding gather)
# ----------------------------------------------------------------------------

def make_positional_encoding(max_len, d_model):
    position = jnp.arange(max_len, dtype=jnp.float32)[:, None]
    div_term = jnp.exp(jnp.arange(0, d_model, 2, dtype=jnp.float32)
                       * (-math.log(10000.0) / d_model))
    pe = jnp.zeros((max_len, d_model), jnp.float32)
    pe = pe.at[:, 0::2].set(jnp.sin(position * div_term))
    pe = pe.at[:, 1::2].set(jnp.cos(position * div_term))
    return pe


def init_params(key, ntoken, d_model, d_hid, nlayers, *,
                max_len=512, param_dtype=jnp.bfloat16):
    keys = jax.random.split(key, 2 + 6 * nlayers)
    initrange = 0.1

    def u(k, shape, scale):
        return jax.random.uniform(k, shape, jnp.float32,
                                  -scale, scale).astype(param_dtype)

    params = {
        "emb": u(keys[0], (ntoken, d_model), initrange),
        # all matmul weights stored pre-transposed to (in_features, out_features)
        "dec_w": u(keys[1], (d_model, ntoken), initrange),
        "dec_b": jnp.zeros((ntoken,), jnp.float32),
        "pe": make_positional_encoding(max_len, d_model),
        "layers": [],
    }
    s_attn = 1.0 / math.sqrt(d_model)
    s_ff = 1.0 / math.sqrt(d_hid)
    for li in range(nlayers):
        k = keys[2 + 6 * li: 2 + 6 * (li + 1)]
        layer = {
            "in_proj_w": u(k[0], (d_model, 3 * d_model), s_attn),
            "in_proj_b": jnp.zeros((3 * d_model,), jnp.float32),
            "out_w": u(k[1], (d_model, d_model), s_attn),
            "out_b": jnp.zeros((d_model,), jnp.float32),
            "lin1_w": u(k[2], (d_model, d_hid), s_attn),
            "lin1_b": jax.random.uniform(k[3], (d_hid,), jnp.float32,
                                         -s_attn, s_attn),
            "lin2_w": u(k[4], (d_hid, d_model), s_ff),
            "lin2_b": jax.random.uniform(k[5], (d_model,), jnp.float32,
                                         -s_ff, s_ff),
            "ln1_g": jnp.ones((d_model,), jnp.float32),
            "ln1_b": jnp.zeros((d_model,), jnp.float32),
            "ln2_g": jnp.ones((d_model,), jnp.float32),
            "ln2_b": jnp.zeros((d_model,), jnp.float32),
        }
        params["layers"].append(layer)
    return params


def encoder_layer_forward(x, p, mask, *, batch, seq, nhead):
    """One post-norm TransformerEncoderLayer (eval mode).  x: (S*B, D)."""
    qkv = linear(x, p["in_proj_w"], p["in_proj_b"])           # (S*B, 3D)
    ctx = attention(qkv, batch=batch, seq=seq, nhead=nhead, mask=mask)
    x1 = linear_residual_ln(ctx, p["out_w"], p["out_b"], x,
                            p["ln1_g"], p["ln1_b"])
    return ffn_residual_ln(x1, p["lin1_w"], p["lin1_b"],
                           p["lin2_w"], p["lin2_b"],
                           p["ln2_g"], p["ln2_b"])


def transformer_forward(params, src, src_mask=None, *, d_model, nhead,
                        logits_dtype=jnp.float32):
    """src: (S, B) int32 tokens.  src_mask: optional (S, S) additive-float or
    boolean mask; None means the standard causal mask (generated inside the
    attention kernel, no (S,S) HBM/VMEM residency)."""
    S, B = src.shape
    assert d_model % nhead == 0
    if src_mask is not None:
        if src_mask.dtype == jnp.bool_:
            src_mask = jnp.where(src_mask, _MASK_VALUE, 0.0).astype(jnp.float32)
        else:
            src_mask = src_mask.astype(jnp.float32)

    # TODO(synk): the embedding lookup is a data-dependent row gather, so it
    # stays in XLA; *sqrt(d_model) and the positional-encoding add are fused
    # into that same gather pass (no extra HBM round trip, per perf review).
    pe = jax.lax.slice_in_dim(params["pe"], 0, S, axis=0)          # (S, D)
    x = (jnp.take(params["emb"], src, axis=0).astype(jnp.float32)
         * math.sqrt(d_model) + pe[:, None, :])                    # (S, B, D)
    x = x.astype(params["emb"].dtype).reshape(S * B, d_model)      # seq-major slab

    for layer in params["layers"]:
        x = encoder_layer_forward(x, layer, src_mask,
                                  batch=B, seq=S, nhead=nhead)

    # Decoder: huge-M tile so the (d_model, ntoken) vocab weight is streamed
    # from HBM as few times as possible; seq-major rows mean the result
    # reshapes directly to (S, B, ntoken) with no final transpose.
    # (On v5e, pass logits_dtype=jnp.bfloat16 to halve the writeback.)
    logits = linear(x, params["dec_w"], params["dec_b"],
                    out_dtype=logits_dtype, tm=4096, tn=512, tk=512)
    return logits.reshape(S, B, -1)


# ----------------------------------------------------------------------------
# Demo
# ----------------------------------------------------------------------------

if __name__ == "__main__":
    ntoken, d_model, nhead, d_hid, nlayers = 256, 128, 4, 256, 2
    seq_len, batch = 16, 8

    key = jax.random.PRNGKey(0)
    pkey, skey = jax.random.split(key)
    params = init_params(pkey, ntoken, d_model, d_hid, nlayers, max_len=128)

    src = jax.random.randint(skey, (seq_len, batch), 0, ntoken, dtype=jnp.int32)

    fwd = jax.jit(functools.partial(transformer_forward,
                                    d_model=d_model, nhead=nhead))

    # Fast path: causal mask generated inside the attention kernel
    # (equivalent to nn.Transformer.generate_square_subsequent_mask).
    out = jax.block_until_ready(fwd(params, src, None))
    assert out.shape == (seq_len, batch, ntoken)
    assert bool(jnp.all(jnp.isfinite(out)))

    # Cross-check: explicit additive (S,S) mask path gives the same result.
    src_mask = jnp.triu(jnp.ones((seq_len, seq_len), jnp.float32), k=1) * _MASK_VALUE
    out_masked = jax.block_until_ready(fwd(params, src, src_mask))
    assert bool(jnp.allclose(out, out_masked, atol=1e-2, rtol=1e-2))

    print("KERNEL_OK")
</pallas_src>

<mosaic_0001>
module attributes {stable_mosaic.version = 11 : i64} {
  func.func @_matmul_kernel(%arg0: i32, %arg1: i32, %arg2: i32, %arg3: memref<128x128xbf16, #tpu.memory_space<vmem>>, %arg4: memref<128x384xbf16, #tpu.memory_space<vmem>>, %arg5: memref<1x384xf32, #tpu.memory_space<vmem>>, %arg6: memref<128x384xbf16, #tpu.memory_space<vmem>>, %arg7: memref<128x384xf32, #tpu.memory_space<vmem>>) attributes {dimension_semantics = [#tpu.dimension_semantics<parallel>, #tpu.dimension_semantics<parallel>, #tpu.dimension_semantics<arbitrary>], iteration_bounds = array<i64: 1, 1, 1>, scalar_prefetch = 0 : i64, scratch_operands = 1 : i64, tpu.core_type = #tpu.core_type<tc>, window_params = [{transform_indices = @transform_0, window_bounds = array<i64: 128, 128>}, {transform_indices = @transform_1, window_bounds = array<i64: 128, 384>}, {transform_indices = @transform_2, window_bounds = array<i64: 1, 384>}, {transform_indices = @transform_3, window_bounds = array<i64: 128, 384>}]} {
    %c0_i32 = arith.constant 0 : i32
    %0 = arith.cmpi eq, %arg2, %c0_i32 : i32
    %1 = arith.extui %0 : i1 to i32
    %c0_i32_0 = arith.constant 0 : i32
    %2 = arith.cmpi ne, %1, %c0_i32_0 : i32
    scf.if %2 {
      %cst_10 = arith.constant 0.000000e+00 : f32
      %12 = vector.broadcast %cst_10 : f32 to vector<128x384xf32>
      %c0_11 = arith.constant 0 : index
      %c0_12 = arith.constant 0 : index
      %13 = vector.load %arg7[%c0_11, %c0_12] : memref<128x384xf32, #tpu.memory_space<vmem>>, vector<128x384xf32>
      tpu.vector_store %arg7[%c0_11, %c0_12], %12 {strides = array<i32>} : memref<128x384xf32, #tpu.memory_space<vmem>>, vector<128x384xf32>,
    } else {
    }
    %c0 = arith.constant 0 : index
    %c0_1 = arith.constant 0 : index
    %3 = vector.load %arg7[%c0, %c0_1] : memref<128x384xf32, #tpu.memory_space<vmem>>, vector<128x384xf32>
    %c0_2 = arith.constant 0 : index
    %c0_3 = arith.constant 0 : index
    %4 = vector.load %arg3[%c0_2, %c0_3] : memref<128x128xbf16, #tpu.memory_space<vmem>>, vector<128x128xbf16>
    %c0_4 = arith.constant 0 : index
    %c0_5 = arith.constant 0 : index
    %5 = vector.load %arg4[%c0_4, %c0_5] : memref<128x384xbf16, #tpu.memory_space<vmem>>, vector<128x384xbf16>
    %cst = arith.constant dense<0.000000e+00> : vector<128x384xf32>
    %6 = tpu.matmul %4, %5, %cst {dimension_numbers = #tpu.dot_dimension_numbers<[1], [0], [0], [1], [0, 0, 1, 1], [], []>} : vector<128x128xbf16>, vector<128x384xbf16>, vector<128x384xf32> -> vector<128x384xf32>
    %7 = arith.addf %3, %6 : vector<128x384xf32>
    %c0_6 = arith.constant 0 : index
    %c0_7 = arith.constant 0 : index
    %8 = vector.load %arg7[%c0_6, %c0_7] : memref<128x384xf32, #tpu.memory_space<vmem>>, vector<128x384xf32>
    tpu.vector_store %arg7[%c0_6, %c0_7], %7 {strides = array<i32>} : memref<128x384xf32, #tpu.memory_space<vmem>>, vector<128x384xf32>,
    %c0_i32_8 = arith.constant 0 : i32
    %9 = arith.cmpi eq, %arg2, %c0_i32_8 : i32
    %10 = arith.extui %9 : i1 to i32
    %c0_i32_9 = arith.constant 0 : i32
    %11 = arith.cmpi ne, %10, %c0_i32_9 : i32
    scf.if %11 {
      %c0_10 = arith.constant 0 : index
      %c0_11 = arith.constant 0 : index
      %12 = vector.load %arg7[%c0_10, %c0_11] : memref<128x384xf32, #tpu.memory_space<vmem>>, vector<128x384xf32>
      %c0_12 = arith.constant 0 : index
      %c0_13 = arith.constant 0 : index
      %13 = vector.load %arg5[%c0_12, %c0_13] : memref<1x384xf32, #tpu.memory_space<vmem>>, vector<1x384xf32>
      %14 = vector.broadcast %13 : vector<1x384xf32> to vector<128x384xf32>
      %15 = arith.addf %12, %14 : vector<128x384xf32>
      %16 = arith.truncf %15 : vector<128x384xf32> to vector<128x384xbf16>
      %c0_14 = arith.constant 0 : index
      %c0_15 = arith.constant 0 : index
      %17 = vector.load %arg6[%c0_14, %c0_15] : memref<128x384xbf16, #tpu.memory_space<vmem>>, vector<128x384xbf16>
      tpu.vector_store %arg6[%c0_14, %c0_15], %16 {strides = array<i32>} : memref<128x384xbf16, #tpu.memory_space<vmem>>, vector<128x384xbf16>,
    } else {
    }
    return
  }
  func.func @transform_0(%arg0: i32, %arg1: i32, %arg2: i32) -> (i32, i32) {
    %c0_i32 = arith.constant 0 : i32
    return %arg0, %arg2 : i32, i32
  }
  func.func @transform_1(%arg0: i32, %arg1: i32, %arg2: i32) -> (i32, i32) {
    %c0_i32 = arith.constant 0 : i32
    return %arg2, %arg1 : i32, i32
  }
  func.func @transform_2(%arg0: i32, %arg1: i32, %arg2: i32) -> (i32, i32) {
    %c0_i32 = arith.constant 0 : i32
    %c0_i32_0 = arith.constant 0 : i32
    return %c0_i32, %arg1 : i32, i32
  }
  func.func @transform_3(%arg0: i32, %arg1: i32, %arg2: i32) -> (i32, i32) {
    %c0_i32 = arith.constant 0 : i32
    return %arg0, %arg1 : i32, i32
  }
}

module attributes {stable_mosaic.version = 11 : i64} {
  func.func @_attn_kernel(%arg0: i32, %arg1: i32, %arg2: memref<1x16x32xbf16, #tpu.memory_space<vmem>>, %arg3: memref<1x32x16xbf16, #tpu.memory_space<vmem>>, %arg4: memref<1x16x32xbf16, #tpu.memory_space<vmem>>, %arg5: memref<1x16x32xbf16, #tpu.memory_space<vmem>>) attributes {dimension_semantics = [#tpu.dimension_semantics<parallel>, #tpu.dimension_semantics<parallel>], iteration_bounds = array<i64: 32, 1>, scalar_prefetch = 0 : i64, scratch_operands = 0 : i64, tpu.core_type = #tpu.core_type<tc>, window_params = [{transform_indices = @transform_0, window_bounds = array<i64: 1, 16, 32>}, {transform_indices = @transform_1, window_bounds = array<i64: 1, 32, 16>}, {transform_indices = @transform_2, window_bounds = array<i64: 1, 16, 32>}, {transform_indices = @transform_3, window_bounds = array<i64: 1, 16, 32>}]} {
    %c0 = arith.constant 0 : index
    %c0_0 = arith.constant 0 : index
    %c0_1 = arith.constant 0 : index
    %0 = vector.load %arg2[%c0, %c0_0, %c0_1] : memref<1x16x32xbf16, #tpu.memory_space<vmem>>, vector<1x16x32xbf16>
    %1 = vector.shape_cast %0 : vector<1x16x32xbf16> to vector<16x32xbf16>
    %c0_2 = arith.constant 0 : index
    %c0_3 = arith.constant 0 : index
    %c0_4 = arith.constant 0 : index
    %2 = vector.load %arg3[%c0_2, %c0_3, %c0_4] : memref<1x32x16xbf16, #tpu.memory_space<vmem>>, vector<1x32x16xbf16>
    %3 = vector.shape_cast %2 : vector<1x32x16xbf16> to vector<32x16xbf16>
    %cst = arith.constant dense<0.000000e+00> : vector<16x16xf32>
    %4 = tpu.matmul %1, %3, %cst {dimension_numbers = #tpu.dot_dimension_numbers<[1], [0], [0], [1], [0, 0, 1, 1], [], []>} : vector<16x32xbf16>, vector<32x16xbf16>, vector<16x16xf32> -> vector<16x16xf32>
    %cst_5 = arith.constant 0.176776692 : f32
    %5 = vector.broadcast %cst_5 : f32 to vector<16x16xf32>
    %6 = arith.mulf %4, %5 : vector<16x16xf32>
    %c16_i32 = arith.constant 16 : i32
    %7 = arith.muli %arg1, %c16_i32 : i32
    %8 = tpu.iota {dimensions = array<i32: 0>} : vector<16x16xi32>
    %9 = vector.broadcast %7 : i32 to vector<16x16xi32>
    %10 = arith.addi %9, %8 : vector<16x16xi32>
    %11 = tpu.iota {dimensions = array<i32: 1>} : vector<16x16xi32>
    %12 = arith.cmpi sgt, %11, %10 : vector<16x16xi32>
    %cst_6 = arith.constant -1.000000e+09 : f32
    %cst_7 = arith.constant 0.000000e+00 : f32
    %13 = vector.broadcast %cst_6 : f32 to vector<16x16xf32>
    %14 = vector.broadcast %cst_7 : f32 to vector<16x16xf32>
    %15 = arith.select %12, %13, %14 : vector<16x16xi1>, vector<16x16xf32>
    %16 = arith.addf %6, %15 : vector<16x16xf32>
    %cst_8 = arith.constant dense<0xFF800000> : vector<16xf32>
    %17 = vector.multi_reduction <maximumf>, %16, %cst_8 [1] : vector<16x16xf32> to vector<16xf32>
    %18 = vector.shape_cast %17 : vector<16xf32> to vector<16x1xf32>
    %19 = vector.broadcast %18 : vector<16x1xf32> to vector<16x16xf32>
    %20 = arith.subf %16, %19 : vector<16x16xf32>
    %21 = math.exp %20 : vector<16x16xf32>
    %cst_9 = arith.constant dense<0.000000e+00> : vector<16xf32>
    %22 = vector.multi_reduction <add>, %21, %cst_9 [1] : vector<16x16xf32> to vector<16xf32>
    %23 = vector.shape_cast %22 : vector<16xf32> to vector<16x1xf32>
    %24 = arith.truncf %21 : vector<16x16xf32> to vector<16x16xbf16>
    %c0_10 = arith.constant 0 : index
    %c0_11 = arith.constant 0 : index
    %c0_12 = arith.constant 0 : index
    %25 = vector.load %arg4[%c0_10, %c0_11, %c0_12] : memref<1x16x32xbf16, #tpu.memory_space<vmem>>, vector<1x16x32xbf16>
    %26 = vector.shape_cast %25 : vector<1x16x32xbf16> to vector<16x32xbf16>
    %cst_13 = arith.constant dense<0.000000e+00> : vector<16x32xf32>
    %27 = tpu.matmul %24, %26, %cst_13 {dimension_numbers = #tpu.dot_dimension_numbers<[1], [0], [0], [1], [0, 0, 1, 1], [], []>} : vector<16x16xbf16>, vector<16x32xbf16>, vector<16x32xf32> -> vector<16x32xf32>
    %28 = tpu.reciprocal %23 {approx = true} : vector<16x1xf32> -> vector<16x1xf32>
    %29 = vector.broadcast %28 : vector<16x1xf32> to vector<16x32xf32>
    %30 = arith.mulf %27, %29 : vector<16x32xf32>
    %31 = arith.truncf %30 : vector<16x32xf32> to vector<16x32xbf16>
    %c0_14 = arith.constant 0 : index
    %c0_15 = arith.constant 0 : index
    %c0_16 = arith.constant 0 : index
    %32 = vector.load %arg5[%c0_14, %c0_15, %c0_16] : memref<1x16x32xbf16, #tpu.memory_space<vmem>>, vector<1x16x32xbf16>
    %33 = vector.shape_cast %32 : vector<1x16x32xbf16> to vector<16x32xbf16>
    %34 = vector.shape_cast %31 : vector<16x32xbf16> to vector<1x16x32xbf16>
    tpu.vector_store %arg5[%c0_14, %c0_15, %c0_16], %34 {strides = array<i32>} : memref<1x16x32xbf16, #tpu.memory_space<vmem>>, vector<1x16x32xbf16>,
    return
  }
  func.func @transform_0(%arg0: i32, %arg1: i32) -> (i32, i32, i32) {
    %c0_i32 = arith.constant 0 : i32
    %c0_i32_0 = arith.constant 0 : i32
    return %arg0, %arg1, %c0_i32 : i32, i32, i32
  }
  func.func @transform_1(%arg0: i32, %arg1: i32) -> (i32, i32, i32) {
    %c0_i32 = arith.constant 0 : i32
    %c0_i32_0 = arith.constant 0 : i32
    %c0_i32_1 = arith.constant 0 : i32
    return %arg0, %c0_i32, %c0_i32_0 : i32, i32, i32
  }
  func.func @transform_2(%arg0: i32, %arg1: i32) -> (i32, i32, i32) {
    %c0_i32 = arith.constant 0 : i32
    %c0_i32_0 = arith.constant 0 : i32
    %c0_i32_1 = arith.constant 0 : i32
    return %arg0, %c0_i32, %c0_i32_0 : i32, i32, i32
  }
  func.func @transform_3(%arg0: i32, %arg1: i32) -> (i32, i32, i32) {
    %c0_i32 = arith.constant 0 : i32
    %c0_i32_0 = arith.constant 0 : i32
    return %arg0, %arg1, %c0_i32 : i32, i32, i32
  }
}

module attributes {stable_mosaic.version = 11 : i64} {
  func.func @_matmul_res_ln_kernel(%arg0: i32, %arg1: i32, %arg2: memref<128x128xbf16, #tpu.memory_space<vmem>>, %arg3: memref<128x128xbf16, #tpu.memory_space<vmem>>, %arg4: memref<1x128xf32, #tpu.memory_space<vmem>>, %arg5: memref<128x128xbf16, #tpu.memory_space<vmem>>, %arg6: memref<1x128xf32, #tpu.memory_space<vmem>>, %arg7: memref<1x128xf32, #tpu.memory_space<vmem>>, %arg8: memref<128x128xbf16, #tpu.memory_space<vmem>>, %arg9: memref<128x128xf32, #tpu.memory_space<vmem>>) attributes {dimension_semantics = [#tpu.dimension_semantics<parallel>, #tpu.dimension_semantics<arbitrary>], iteration_bounds = array<i64: 1, 1>, scalar_prefetch = 0 : i64, scratch_operands = 1 : i64, tpu.core_type = #tpu.core_type<tc>, window_params = [{transform_indices = @transform_0, window_bounds = array<i64: 128, 128>}, {transform_indices = @transform_1, window_bounds = array<i64: 128, 128>}, {pipeline_mode = #tpu.pipeline_mode<synchronous>, transform_indices = @transform_2, window_bounds = array<i64: 1, 128>}, {transform_indices = @transform_3, window_bounds = array<i64: 128, 128>}, {pipeline_mode = #tpu.pipeline_mode<synchronous>, transform_indices = @transform_4, window_bounds = array<i64: 1, 128>}, {pipeline_mode = #tpu.pipeline_mode<synchronous>, transform_indices = @transform_5, window_bounds = array<i64: 1, 128>}, {transform_indices = @transform_6, window_bounds = array<i64: 128, 128>}]} {
    %c0_i32 = arith.constant 0 : i32
    %0 = arith.cmpi eq, %arg1, %c0_i32 : i32
    %1 = arith.extui %0 : i1 to i32
    %c0_i32_0 = arith.constant 0 : i32
    %2 = arith.cmpi ne, %1, %c0_i32_0 : i32
    scf.if %2 {
      %cst_10 = arith.constant 0.000000e+00 : f32
      %12 = vector.broadcast %cst_10 : f32 to vector<128x128xf32>
      %c0_11 = arith.constant 0 : index
      %c0_12 = arith.constant 0 : index
      %13 = vector.load %arg9[%c0_11, %c0_12] : memref<128x128xf32, #tpu.memory_space<vmem>>, vector<128x128xf32>
      tpu.vector_store %arg9[%c0_11, %c0_12], %12 {strides = array<i32>} : memref<128x128xf32, #tpu.memory_space<vmem>>, vector<128x128xf32>,
    } else {
    }
    %c0 = arith.constant 0 : index
    %c0_1 = arith.constant 0 : index
    %3 = vector.load %arg9[%c0, %c0_1] : memref<128x128xf32, #tpu.memory_space<vmem>>, vector<128x128xf32>
    %c0_2 = arith.constant 0 : index
    %c0_3 = arith.constant 0 : index
    %4 = vector.load %arg2[%c0_2, %c0_3] : memref<128x128xbf16, #tpu.memory_space<vmem>>, vector<128x128xbf16>
    %c0_4 = arith.constant 0 : index
    %c0_5 = arith.constant 0 : index
    %5 = vector.load %arg3[%c0_4, %c0_5] : memref<128x128xbf16, #tpu.memory_space<vmem>>, vector<128x128xbf16>
    %cst = arith.constant dense<0.000000e+00> : vector<128x128xf32>
    %6 = tpu.matmul %4, %5, %cst {dimension_numbers = #tpu.dot_dimension_numbers<[1], [0], [0], [1], [0, 0, 1, 1], [], []>} : vector<128x128xbf16>, vector<128x128xbf16>, vector<128x128xf32> -> vector<128x128xf32>
    %7 = arith.addf %3, %6 : vector<128x128xf32>
    %c0_6 = arith.constant 0 : index
    %c0_7 = arith.constant 0 : index
    %8 = vector.load %arg9[%c0_6, %c0_7] : memref<128x128xf32, #tpu.memory_space<vmem>>, vector<128x128xf32>
    tpu.vector_store %arg9[%c0_6, %c0_7], %7 {strides = array<i32>} : memref<128x128xf32, #tpu.memory_space<vmem>>, vector<128x128xf32>,
    %c0_i32_8 = arith.constant 0 : i32
    %9 = arith.cmpi eq, %arg1, %c0_i32_8 : i32
    %10 = arith.extui %9 : i1 to i32
    %c0_i32_9 = arith.constant 0 : i32
    %11 = arith.cmpi ne, %10, %c0_i32_9 : i32
    scf.if %11 {
      %c0_10 = arith.constant 0 : index
      %c0_11 = arith.constant 0 : index
      %12 = vector.load %arg9[%c0_10, %c0_11] : memref<128x128xf32, #tpu.memory_space<vmem>>, vector<128x128xf32>
      %c0_12 = arith.constant 0 : index
      %c0_13 = arith.constant 0 : index
      %13 = vector.load %arg4[%c0_12, %c0_13] : memref<1x128xf32, #tpu.memory_space<vmem>>, vector<1x128xf32>
      %14 = vector.broadcast %13 : vector<1x128xf32> to vector<128x128xf32>
      %15 = arith.addf %12, %14 : vector<128x128xf32>
      %c0_14 = arith.constant 0 : index
      %c0_15 = arith.constant 0 : index
      %16 = vector.load %arg5[%c0_14, %c0_15] : memref<128x128xbf16, #tpu.memory_space<vmem>>, vector<128x128xbf16>
      %17 = arith.extf %16 : vector<128x128xbf16> to vector<128x128xf32>
      %18 = arith.addf %15, %17 : vector<128x128xf32>
      %cst_16 = arith.constant dense<0.000000e+00> : vector<128xf32>
      %19 = vector.multi_reduction <add>, %18, %cst_16 [1] : vector<128x128xf32> to vector<128xf32>
      %20 = vector.shape_cast %19 : vector<128xf32> to vector<128x1xf32>
      %cst_17 = arith.constant 1.280000e+02 : f32
      %21 = vector.broadcast %cst_17 : f32 to vector<128x1xf32>
      %22 = arith.divf %20, %21 : vector<128x1xf32>
      %23 = vector.broadcast %22 : vector<128x1xf32> to vector<128x128xf32>
      %24 = arith.subf %18, %23 : vector<128x128xf32>
      %25 = arith.mulf %24, %24 : vector<128x128xf32>
      %cst_18 = arith.constant dense<0.000000e+00> : vector<128xf32>
      %26 = vector.multi_reduction <add>, %25, %cst_18 [1] : vector<128x128xf32> to vector<128xf32>
      %27 = vector.shape_cast %26 : vector<128xf32> to vector<128x1xf32>
      %cst_19 = arith.constant 1.280000e+02 : f32
      %28 = vector.broadcast %cst_19 : f32 to vector<128x1xf32>
      %29 = arith.divf %27, %28 : vector<128x1xf32>
      %cst_20 = arith.constant 9.99999974E-6 : f32
      %30 = vector.broadcast %cst_20 : f32 to vector<128x1xf32>
      %31 = arith.addf %29, %30 : vector<128x1xf32>
      %32 = math.rsqrt %31 : vector<128x1xf32>
      %33 = vector.broadcast %32 : vector<128x1xf32> to vector<128x128xf32>
      %34 = arith.mulf %24, %33 : vector<128x128xf32>
      %c0_21 = arith.constant 0 : index
      %c0_22 = arith.constant 0 : index
      %35 = vector.load %arg6[%c0_21, %c0_22] : memref<1x128xf32, #tpu.memory_space<vmem>>, vector<1x128xf32>
      %36 = vector.broadcast %35 : vector<1x128xf32> to vector<128x128xf32>
      %37 = arith.mulf %34, %36 : vector<128x128xf32>
      %c0_23 = arith.constant 0 : index
      %c0_24 = arith.constant 0 : index
      %38 = vector.load %arg7[%c0_23, %c0_24] : memref<1x128xf32, #tpu.memory_space<vmem>>, vector<1x128xf32>
      %39 = vector.broadcast %38 : vector<1x128xf32> to vector<128x128xf32>
      %40 = arith.addf %37, %39 : vector<128x128xf32>
      %41 = arith.truncf %40 : vector<128x128xf32> to vector<128x128xbf16>
      %c0_25 = arith.constant 0 : index
      %c0_26 = arith.constant 0 : index
      %42 = vector.load %arg8[%c0_25, %c0_26] : memref<128x128xbf16, #tpu.memory_space<vmem>>, vector<128x128xbf16>
      tpu.vector_store %arg8[%c0_25, %c0_26], %41 {strides = array<i32>} : memref<128x128xbf16, #tpu.memory_space<vmem>>, vector<128x128xbf16>,
    } else {
    }
    return
  }
  func.func @transform_0(%arg0: i32, %arg1: i32) -> (i32, i32) {
    %c0_i32 = arith.constant 0 : i32
    return %arg0, %arg1 : i32, i32
  }
  func.func @transform_1(%arg0: i32, %arg1: i32) -> (i32, i32) {
    %c0_i32 = arith.constant 0 : i32
    %c0_i32_0 = arith.constant 0 : i32
    return %arg1, %c0_i32 : i32, i32
  }
  func.func @transform_2(%arg0: i32, %arg1: i32) -> (i32, i32) {
    %c0_i32 = arith.constant 0 : i32
    %c0_i32_0 = arith.constant 0 : i32
    %c0_i32_1 = arith.constant 0 : i32
    return %c0_i32, %c0_i32_0 : i32, i32
  }
  func.func @transform_3(%arg0: i32, %arg1: i32) -> (i32, i32) {
    %c0_i32 = arith.constant 0 : i32
    %c0_i32_0 = arith.constant 0 : i32
    return %arg0, %c0_i32 : i32, i32
  }
  func.func @transform_4(%arg0: i32, %arg1: i32) -> (i32, i32) {
    %c0_i32 = arith.constant 0 : i32
    %c0_i32_0 = arith.constant 0 : i32
    %c0_i32_1 = arith.constant 0 : i32
    return %c0_i32, %c0_i32_0 : i32, i32
  }
  func.func @transform_5(%arg0: i32, %arg1: i32) -> (i32, i32) {
    %c0_i32 = arith.constant 0 : i32
    %c0_i32_0 = arith.constant 0 : i32
    %c0_i32_1 = arith.constant 0 : i32
    return %c0_i32, %c0_i32_0 : i32, i32
  }
  func.func @transform_6(%arg0: i32, %arg1: i32) -> (i32, i32) {
    %c0_i32 = arith.constant 0 : i32
    %c0_i32_0 = arith.constant 0 : i32
    return %arg0, %c0_i32 : i32, i32
  }
}

module attributes {stable_mosaic.version = 11 : i64} {
  func.func @_matmul_kernel(%arg0: i32, %arg1: i32, %arg2: i32, %arg3: memref<128x128xbf16, #tpu.memory_space<vmem>>, %arg4: memref<128x256xbf16, #tpu.memory_space<vmem>>, %arg5: memref<1x256xf32, #tpu.memory_space<vmem>>, %arg6: memref<128x256xf32, #tpu.memory_space<vmem>>, %arg7: memref<128x256xf32, #tpu.memory_space<vmem>>) attributes {dimension_semantics = [#tpu.dimension_semantics<parallel>, #tpu.dimension_semantics<parallel>, #tpu.dimension_semantics<arbitrary>], iteration_bounds = array<i64: 1, 1, 1>, scalar_prefetch = 0 : i64, scratch_operands = 1 : i64, tpu.core_type = #tpu.core_type<tc>, window_params = [{transform_indices = @transform_0, window_bounds = array<i64: 128, 128>}, {transform_indices = @transform_1, window_bounds = array<i64: 128, 256>}, {transform_indices = @transform_2, window_bounds = array<i64: 1, 256>}, {transform_indices = @transform_3, window_bounds = array<i64: 128, 256>}]} {
    %c0_i32 = arith.constant 0 : i32
    %0 = arith.cmpi eq, %arg2, %c0_i32 : i32
    %1 = arith.extui %0 : i1 to i32
    %c0_i32_0 = arith.constant 0 : i32
    %2 = arith.cmpi ne, %1, %c0_i32_0 : i32
    scf.if %2 {
      %cst_10 = arith.constant 0.000000e+00 : f32
      %12 = vector.broadcast %cst_10 : f32 to vector<128x256xf32>
      %c0_11 = arith.constant 0 : index
      %c0_12 = arith.constant 0 : index
      %13 = vector.load %arg7[%c0_11, %c0_12] : memref<128x256xf32, #tpu.memory_space<vmem>>, vector<128x256xf32>
      tpu.vector_store %arg7[%c0_11, %c0_12], %12 {strides = array<i32>} : memref<128x256xf32, #tpu.memory_space<vmem>>, vector<128x256xf32>,
    } else {
    }
    %c0 = arith.constant 0 : index
    %c0_1 = arith.constant 0 : index
    %3 = vector.load %arg7[%c0, %c0_1] : memref<128x256xf32, #tpu.memory_space<vmem>>, vector<128x256xf32>
    %c0_2 = arith.constant 0 : index
    %c0_3 = arith.constant 0 : index
    %4 = vector.load %arg3[%c0_2, %c0_3] : memref<128x128xbf16, #tpu.memory_space<vmem>>, vector<128x128xbf16>
    %c0_4 = arith.constant 0 : index
    %c0_5 = arith.constant 0 : index
    %5 = vector.load %arg4[%c0_4, %c0_5] : memref<128x256xbf16, #tpu.memory_space<vmem>>, vector<128x256xbf16>
    %cst = arith.constant dense<0.000000e+00> : vector<128x256xf32>
    %6 = tpu.matmul %4, %5, %cst {dimension_numbers = #tpu.dot_dimension_numbers<[1], [0], [0], [1], [0, 0, 1, 1], [], []>} : vector<128x128xbf16>, vector<128x256xbf16>, vector<128x256xf32> -> vector<128x256xf32>
    %7 = arith.addf %3, %6 : vector<128x256xf32>
    %c0_6 = arith.constant 0 : index
    %c0_7 = arith.constant 0 : index
    %8 = vector.load %arg7[%c0_6, %c0_7] : memref<128x256xf32, #tpu.memory_space<vmem>>, vector<128x256xf32>
    tpu.vector_store %arg7[%c0_6, %c0_7], %7 {strides = array<i32>} : memref<128x256xf32, #tpu.memory_space<vmem>>, vector<128x256xf32>,
    %c0_i32_8 = arith.constant 0 : i32
    %9 = arith.cmpi eq, %arg2, %c0_i32_8 : i32
    %10 = arith.extui %9 : i1 to i32
    %c0_i32_9 = arith.constant 0 : i32
    %11 = arith.cmpi ne, %10, %c0_i32_9 : i32
    scf.if %11 {
      %c0_10 = arith.constant 0 : index
      %c0_11 = arith.constant 0 : index
      %12 = vector.load %arg7[%c0_10, %c0_11] : memref<128x256xf32, #tpu.memory_space<vmem>>, vector<128x256xf32>
      %c0_12 = arith.constant 0 : index
      %c0_13 = arith.constant 0 : index
      %13 = vector.load %arg5[%c0_12, %c0_13] : memref<1x256xf32, #tpu.memory_space<vmem>>, vector<1x256xf32>
      %14 = vector.broadcast %13 : vector<1x256xf32> to vector<128x256xf32>
      %15 = arith.addf %12, %14 : vector<128x256xf32>
      %c0_14 = arith.constant 0 : index
      %c0_15 = arith.constant 0 : index
      %16 = vector.load %arg6[%c0_14, %c0_15] : memref<128x256xf32, #tpu.memory_space<vmem>>, vector<128x256xf32>
      tpu.vector_store %arg6[%c0_14, %c0_15], %15 {strides = array<i32>} : memref<128x256xf32, #tpu.memory_space<vmem>>, vector<128x256xf32>,
    } else {
    }
    return
  }
  func.func @transform_0(%arg0: i32, %arg1: i32, %arg2: i32) -> (i32, i32) {
    %c0_i32 = arith.constant 0 : i32
    return %arg0, %arg2 : i32, i32
  }
  func.func @transform_1(%arg0: i32, %arg1: i32, %arg2: i32) -> (i32, i32) {
    %c0_i32 = arith.constant 0 : i32
    return %arg2, %arg1 : i32, i32
  }
  func.func @transform_2(%arg0: i32, %arg1: i32, %arg2: i32) -> (i32, i32) {
    %c0_i32 = arith.constant 0 : i32
    %c0_i32_0 = arith.constant 0 : i32
    return %c0_i32, %arg1 : i32, i32
  }
  func.func @transform_3(%arg0: i32, %arg1: i32, %arg2: i32) -> (i32, i32) {
    %c0_i32 = arith.constant 0 : i32
    return %arg0, %arg1 : i32, i32
  }
}

module attributes {stable_mosaic.version = 11 : i64} {
  func.func @_ffn_res_ln_kernel(%arg0: i32, %arg1: memref<128x128xbf16, #tpu.memory_space<vmem>>, %arg2: memref<128x256xbf16, #tpu.memory_space<vmem>>, %arg3: memref<1x256xf32, #tpu.memory_space<vmem>>, %arg4: memref<256x128xbf16, #tpu.memory_space<vmem>>, %arg5: memref<1x128xf32, #tpu.memory_space<vmem>>, %arg6: memref<1x128xf32, #tpu.memory_space<vmem>>, %arg7: memref<1x128xf32, #tpu.memory_space<vmem>>, %arg8: memref<128x128xbf16, #tpu.memory_space<vmem>>) attributes {dimension_semantics = [#tpu.dimension_semantics<parallel>], iteration_bounds = array<i64: 1>, scalar_prefetch = 0 : i64, scratch_operands = 0 : i64, tpu.core_type = #tpu.core_type<tc>, window_params = [{transform_indices = @transform_0, window_bounds = array<i64: 128, 128>}, {pipeline_mode = #tpu.pipeline_mode<synchronous>, transform_indices = @transform_1, window_bounds = array<i64: 128, 256>}, {pipeline_mode = #tpu.pipeline_mode<synchronous>, transform_indices = @transform_2, window_bounds = array<i64: 1, 256>}, {pipeline_mode = #tpu.pipeline_mode<synchronous>, transform_indices = @transform_3, window_bounds = array<i64: 256, 128>}, {pipeline_mode = #tpu.pipeline_mode<synchronous>, transform_indices = @transform_4, window_bounds = array<i64: 1, 128>}, {pipeline_mode = #tpu.pipeline_mode<synchronous>, transform_indices = @transform_5, window_bounds = array<i64: 1, 128>}, {pipeline_mode = #tpu.pipeline_mode<synchronous>, transform_indices = @transform_6, window_bounds = array<i64: 1, 128>}, {transform_indices = @transform_7, window_bounds = array<i64: 128, 128>}]} {
    %c0 = arith.constant 0 : index
    %c0_0 = arith.constant 0 : index
    %0 = vector.load %arg1[%c0, %c0_0] : memref<128x128xbf16, #tpu.memory_space<vmem>>, vector<128x128xbf16>
    %c0_1 = arith.constant 0 : index
    %c0_2 = arith.constant 0 : index
    %1 = vector.load %arg2[%c0_1, %c0_2] : memref<128x256xbf16, #tpu.memory_space<vmem>>, vector<128x256xbf16>
    %cst = arith.constant dense<0.000000e+00> : vector<128x256xf32>
    %2 = tpu.matmul %0, %1, %cst {dimension_numbers = #tpu.dot_dimension_numbers<[1], [0], [0], [1], [0, 0, 1, 1], [], []>} : vector<128x128xbf16>, vector<128x256xbf16>, vector<128x256xf32> -> vector<128x256xf32>
    %c0_3 = arith.constant 0 : index
    %c0_4 = arith.constant 0 : index
    %3 = vector.load %arg3[%c0_3, %c0_4] : memref<1x256xf32, #tpu.memory_space<vmem>>, vector<1x256xf32>
    %4 = vector.broadcast %3 : vector<1x256xf32> to vector<128x256xf32>
    %5 = arith.addf %2, %4 : vector<128x256xf32>
    %cst_5 = arith.constant 0.000000e+00 : f32
    %6 = vector.broadcast %cst_5 : f32 to vector<128x256xf32>
    %7 = arith.maximumf %5, %6 : vector<128x256xf32>
    %8 = arith.truncf %7 : vector<128x256xf32> to vector<128x256xbf16>
    %c0_6 = arith.constant 0 : index
    %c0_7 = arith.constant 0 : index
    %9 = vector.load %arg4[%c0_6, %c0_7] : memref<256x128xbf16, #tpu.memory_space<vmem>>, vector<256x128xbf16>
    %cst_8 = arith.constant dense<0.000000e+00> : vector<128x128xf32>
    %10 = tpu.matmul %8, %9, %cst_8 {dimension_numbers = #tpu.dot_dimension_numbers<[1], [0], [0], [1], [0, 0, 1, 1], [], []>} : vector<128x256xbf16>, vector<256x128xbf16>, vector<128x128xf32> -> vector<128x128xf32>
    %c0_9 = arith.constant 0 : index
    %c0_10 = arith.constant 0 : index
    %11 = vector.load %arg5[%c0_9, %c0_10] : memref<1x128xf32, #tpu.memory_space<vmem>>, vector<1x128xf32>
    %12 = vector.broadcast %11 : vector<1x128xf32> to vector<128x128xf32>
    %13 = arith.addf %10, %12 : vector<128x128xf32>
    %14 = arith.extf %0 : vector<128x128xbf16> to vector<128x128xf32>
    %15 = arith.addf %13, %14 : vector<128x128xf32>
    %cst_11 = arith.constant dense<0.000000e+00> : vector<128xf32>
    %16 = vector.multi_reduction <add>, %15, %cst_11 [1] : vector<128x128xf32> to vector<128xf32>
    %17 = vector.shape_cast %16 : vector<128xf32> to vector<128x1xf32>
    %cst_12 = arith.constant 1.280000e+02 : f32
    %18 = vector.broadcast %cst_12 : f32 to vector<128x1xf32>
    %19 = arith.divf %17, %18 : vector<128x1xf32>
    %20 = vector.broadcast %19 : vector<128x1xf32> to vector<128x128xf32>
    %21 = arith.subf %15, %20 : vector<128x128xf32>
    %22 = arith.mulf %21, %21 : vector<128x128xf32>
    %cst_13 = arith.constant dense<0.000000e+00> : vector<128xf32>
    %23 = vector.multi_reduction <add>, %22, %cst_13 [1] : vector<128x128xf32> to vector<128xf32>
    %24 = vector.shape_cast %23 : vector<128xf32> to vector<128x1xf32>
    %cst_14 = arith.constant 1.280000e+02 : f32
    %25 = vector.broadcast %cst_14 : f32 to vector<128x1xf32>
    %26 = arith.divf %24, %25 : vector<128x1xf32>
    %cst_15 = arith.constant 9.99999974E-6 : f32
    %27 = vector.broadcast %cst_15 : f32 to vector<128x1xf32>
    %28 = arith.addf %26, %27 : vector<128x1xf32>
    %29 = math.rsqrt %28 : vector<128x1xf32>
    %30 = vector.broadcast %29 : vector<128x1xf32> to vector<128x128xf32>
    %31 = arith.mulf %21, %30 : vector<128x128xf32>
    %c0_16 = arith.constant 0 : index
    %c0_17 = arith.constant 0 : index
    %32 = vector.load %arg6[%c0_16, %c0_17] : memref<1x128xf32, #tpu.memory_space<vmem>>, vector<1x128xf32>
    %33 = vector.broadcast %32 : vector<1x128xf32> to vector<128x128xf32>
    %34 = arith.mulf %31, %33 : vector<128x128xf32>
    %c0_18 = arith.constant 0 : index
    %c0_19 = arith.constant 0 : index
    %35 = vector.load %arg7[%c0_18, %c0_19] : memref<1x128xf32, #tpu.memory_space<vmem>>, vector<1x128xf32>
    %36 = vector.broadcast %35 : vector<1x128xf32> to vector<128x128xf32>
    %37 = arith.addf %34, %36 : vector<128x128xf32>
    %38 = arith.truncf %37 : vector<128x128xf32> to vector<128x128xbf16>
    %c0_20 = arith.constant 0 : index
    %c0_21 = arith.constant 0 : index
    %39 = vector.load %arg8[%c0_20, %c0_21] : memref<128x128xbf16, #tpu.memory_space<vmem>>, vector<128x128xbf16>
    tpu.vector_store %arg8[%c0_20, %c0_21], %38 {strides = array<i32>} : memref<128x128xbf16, #tpu.memory_space<vmem>>, vector<128x128xbf16>,
    return
  }
  func.func @transform_0(%arg0: i32) -> (i32, i32) {
    %c0_i32 = arith.constant 0 : i32
    %c0_i32_0 = arith.constant 0 : i32
    return %arg0, %c0_i32 : i32, i32
  }
  func.func @transform_1(%arg0: i32) -> (i32, i32) {
    %c0_i32 = arith.constant 0 : i32
    %c0_i32_0 = arith.constant 0 : i32
    %c0_i32_1 = arith.constant 0 : i32
    return %c0_i32, %c0_i32_0 : i32, i32
  }
  func.func @transform_2(%arg0: i32) -> (i32, i32) {
    %c0_i32 = arith.constant 0 : i32
    %c0_i32_0 = arith.constant 0 : i32
    %c0_i32_1 = arith.constant 0 : i32
    return %c0_i32, %c0_i32_0 : i32, i32
  }
  func.func @transform_3(%arg0: i32) -> (i32, i32) {
    %c0_i32 = arith.constant 0 : i32
    %c0_i32_0 = arith.constant 0 : i32
    %c0_i32_1 = arith.constant 0 : i32
    return %c0_i32, %c0_i32_0 : i32, i32
  }
  func.func @transform_4(%arg0: i32) -> (i32, i32) {
    %c0_i32 = arith.constant 0 : i32
    %c0_i32_0 = arith.constant 0 : i32
    %c0_i32_1 = arith.constant 0 : i32
    return %c0_i32, %c0_i32_0 : i32, i32
  }
  func.func @transform_5(%arg0: i32) -> (i32, i32) {
    %c0_i32 = arith.constant 0 : i32
    %c0_i32_0 = arith.constant 0 : i32
    %c0_i32_1 = arith.constant 0 : i32
    return %c0_i32, %c0_i32_0 : i32, i32
  }
  func.func @transform_6(%arg0: i32) -> (i32, i32) {
    %c0_i32 = arith.constant 0 : i32
    %c0_i32_0 = arith.constant 0 : i32
    %c0_i32_1 = arith.constant 0 : i32
    return %c0_i32, %c0_i32_0 : i32, i32
  }
  func.func @transform_7(%arg0: i32) -> (i32, i32) {
    %c0_i32 = arith.constant 0 : i32
    %c0_i32_0 = arith.constant 0 : i32
    return %arg0, %c0_i32 : i32, i32
  }
}

</mosaic_0001>

<llo_original>
// kernel: transformer_forward.9
$region0: #{transformer_forward.9}
  #allocation0 [shape = 'u32[]', space=smem, size = 0x4, offset = 0x4, fixed_abs, tag = 'smem constant byte address 0x4 - core index']
  #allocation1 [shape = 'u32[144,128]{1,0:T(1,128)}', space=vmem, size = 0x12000, scoped, tag = 'internal scratch']
  #allocation2 [shape = 'f32[128,384]{1,0:T(8,128)}', space=vmem, size = 0x30000, scoped, tag = 'scratch operand']
  %s0 = inlined_call_operand.vmem [shape: bf16[128,128], index: 0, kind: input, shape index: {}]
  %s1 = inlined_call_operand.vmem [shape: bf16[128,384], index: 1, kind: input, shape index: {}]
  %s2 = inlined_call_operand.vmem [shape: f32[1,384], index: 2, kind: input, shape index: {}]
  %s3 = inlined_call_operand.vmem [shape: bf16[128,384], index: 3, kind: output, shape index: {}]
  %s4 = sld [smem:[#allocation0]]
  $region30: #{transformer_forward.9} parent=0
    _
  %s6 = ssub.s32 1, %s4
  %s7 = scalar_select 0, %s6, %s4
  // Predicated region
  $region2: #{transformer_forward.9} parent=0 // pred_check
    _
  $region3: #{transformer_forward.9} parent=0 // pred_check_branch
    %9 = sbr.rel (0) target = $region5
  $region4: #{transformer_forward.9} parent=0 // pred_region
    _
  $region5: #{transformer_forward.9} parent=0 // pred_fallthru
    _
  // Predicated region
  $region6: #{transformer_forward.9} parent=0 // pred_check
    _
  $region7: #{transformer_forward.9} parent=0 // pred_check_branch
    %11 = sbr.rel (0) target = $region9
  $region8: #{transformer_forward.9} parent=0 // pred_region
    _
  $region9: #{transformer_forward.9} parent=0 // pred_fallthru
    _
  // Predicated region
  $region10: #{transformer_forward.9} parent=0 // pred_check
    _
  $region11: #{transformer_forward.9} parent=0 // pred_check_branch
    %13 = sbr.rel (0) target = $region13
  $region12: #{transformer_forward.9} parent=0 // pred_region
    _
  $region13: #{transformer_forward.9} parent=0 // pred_fallthru
    _
  %p15 = scmp.eq.s32.totalorder 0, 0
  // Predicated region
  $region14: #{transformer_forward.9} parent=0 // pred_check
    %p16 = pneg %p15
  $region15: #{transformer_forward.9} parent=0 // pred_check_branch
    %18 = sbr.rel (%p16) target = $region17
  $region16: #{transformer_forward.9} parent=0 // pred_region
    %19 = vst [vmem:[#allocation2] sm:$0xff] 0.0
    %20 = vst [vmem:[#allocation2 + $0x8] sm:$0xff] 0.0
    %21 = vst [vmem:[#allocation2 + $0x10] sm:$0xff] 0.0
    %22 = vst [vmem:[#allocation2 + $0x18] sm:$0xff] 0.0
    %23 = vst [vmem:[#allocation2 + $0x20] sm:$0xff] 0.0
    %24 = vst [vmem:[#allocation2 + $0x28] sm:$0xff] 0.0
    %25 = vst [vmem:[#allocation2 + $0x30] sm:$0xff] 0.0
    %26 = vst [vmem:[#allocation2 + $0x38] sm:$0xff] 0.0
    %27 = vst [vmem:[#allocation2 + $0x40] sm:$0xff] 0.0
    %28 = vst [vmem:[#allocation2 + $0x48] sm:$0xff] 0.0
    %29 = vst [vmem:[#allocation2 + $0x50] sm:$0xff] 0.0
    %30 = vst [vmem:[#allocation2 + $0x58] sm:$0xff] 0.0
    %31 = vst [vmem:[#allocation2 + $0x60] sm:$0xff] 0.0
    %32 = vst [vmem:[#allocation2 + $0x68] sm:$0xff] 0.0
    %33 = vst [vmem:[#allocation2 + $0x70] sm:$0xff] 0.0
    %34 = vst [vmem:[#allocation2 + $0x78] sm:$0xff] 0.0
    %35 = vst [vmem:[#allocation2 + $0x80] sm:$0xff] 0.0
    %36 = vst [vmem:[#allocation2 + $0x88] sm:$0xff] 0.0
    %37 = vst [vmem:[#allocation2 + $0x90] sm:$0xff] 0.0
    %38 = vst [vmem:[#allocation2 + $0x98] sm:$0xff] 0.0
    %39 = vst [vmem:[#allocation2 + $0xa0] sm:$0xff] 0.0
    %40 = vst [vmem:[#allocation2 + $0xa8] sm:$0xff] 0.0
    %41 = vst [vmem:[#allocation2 + $0xb0] sm:$0xff] 0.0
    %42 = vst [vmem:[#allocation2 + $0xb8] sm:$0xff] 0.0
    %43 = vst [vmem:[#allocation2 + $0xc0] sm:$0xff] 0.0
    %44 = vst [vmem:[#allocation2 + $0xc8] sm:$0xff] 0.0
    %45 = vst [vmem:[#allocation2 + $0xd0] sm:$0xff] 0.0
    %46 = vst [vmem:[#allocation2 + $0xd8] sm:$0xff] 0.0
    %47 = vst [vmem:[#allocation2 + $0xe0] sm:$0xff] 0.0
    %48 = vst [vmem:[#allocation2 + $0xe8] sm:$0xff] 0.0
    %49 = vst [vmem:[#allocation2 + $0xf0] sm:$0xff] 0.0
    %50 = vst [vmem:[#allocation2 + $0xf8] sm:$0xff] 0.0
    %51 = vst [vmem:[#allocation2 + $0x100] sm:$0xff] 0.0
    %52 = vst [vmem:[#allocation2 + $0x108] sm:$0xff] 0.0
    %53 = vst [vmem:[#allocation2 + $0x110] sm:$0xff] 0.0
    %54 = vst [vmem:[#allocation2 + $0x118] sm:$0xff] 0.0
    %55 = vst [vmem:[#allocation2 + $0x120] sm:$0xff] 0.0
    %56 = vst [vmem:[#allocation2 + $0x128] sm:$0xff] 0.0
    %57 = vst [vmem:[#allocation2 + $0x130] sm:$0xff] 0.0
    %58 = vst [vmem:[#allocation2 + $0x138] sm:$0xff] 0.0
    %59 = vst [vmem:[#allocation2 + $0x140] sm:$0xff] 0.0
    %60 = vst [vmem:[#allocation2 + $0x148] sm:$0xff] 0.0
    %61 = vst [vmem:[#allocation2 + $0x150] sm:$0xff] 0.0
    %62 = vst [vmem:[#allocation2 + $0x158] sm:$0xff] 0.0
    %63 = vst [vmem:[#allocation2 + $0x160] sm:$0xff] 0.0
    %64 = vst [vmem:[#allocation2 + $0x168] sm:$0xff] 0.0
    %65 = vst [vmem:[#allocation2 + $0x170] sm:$0xff] 0.0
    %66 = vst [vmem:[#allocation2 + $0x178] sm:$0xff] 0.0
  $region17: #{transformer_forward.9} parent=0 // pred_fallthru
    _
  %v67 = vld [vmem:[#allocation2] sm:$0xff]
  %v68 = vld [vmem:[#allocation2 + $0x8] sm:$0xff]
  %v69 = vld [vmem:[#allocation2 + $0x10] sm:$0xff]
  %v70 = vld [vmem:[#allocation2 + $0x18] sm:$0xff]
  %v71 = vld [vmem:[#allocation2 + $0x20] sm:$0xff]
  %v72 = vld [vmem:[#allocation2 + $0x28] sm:$0xff]
  %v73 = vld [vmem:[#allocation2 + $0x30] sm:$0xff]
  %v74 = vld [vmem:[#allocation2 + $0x38] sm:$0xff]
  %v75 = vld [vmem:[#allocation2 + $0x40] sm:$0xff]
  %v76 = vld [vmem:[#allocation2 + $0x48] sm:$0xff]
  %v77 = vld [vmem:[#allocation2 + $0x50] sm:$0xff]
  %v78 = vld [vmem:[#allocation2 + $0x58] sm:$0xff]
  %v79 = vld [vmem:[#allocation2 + $0x60] sm:$0xff]
  %v80 = vld [vmem:[#allocation2 + $0x68] sm:$0xff]
  %v81 = vld [vmem:[#allocation2 + $0x70] sm:$0xff]
  %v82 = vld [vmem:[#allocation2 + $0x78] sm:$0xff]
  %v83 = vld [vmem:[#allocation2 + $0x80] sm:$0xff]
  %v84 = vld [vmem:[#allocation2 + $0x88] sm:$0xff]
  %v85 = vld [vmem:[#allocation2 + $0x90] sm:$0xff]
  %v86 = vld [vmem:[#allocation2 + $0x98] sm:$0xff]
  %v87 = vld [vmem:[#allocation2 + $0xa0] sm:$0xff]
  %v88 = vld [vmem:[#allocation2 + $0xa8] sm:$0xff]
  %v89 = vld [vmem:[#allocation2 + $0xb0] sm:$0xff]
  %v90 = vld [vmem:[#allocation2 + $0xb8] sm:$0xff]
  %v91 = vld [vmem:[#allocation2 + $0xc0] sm:$0xff]
  %v92 = vld [vmem:[#allocation2 + $0xc8] sm:$0xff]
  %v93 = vld [vmem:[#allocation2 + $0xd0] sm:$0xff]
  %v94 = vld [vmem:[#allocation2 + $0xd8] sm:$0xff]
  %v95 = vld [vmem:[#allocation2 + $0xe0] sm:$0xff]
  %v96 = vld [vmem:[#allocation2 + $0xe8] sm:$0xff]
  %v97 = vld [vmem:[#allocation2 + $0xf0] sm:$0xff]
  %v98 = vld [vmem:[#allocation2 + $0xf8] sm:$0xff]
  %v99 = vld [vmem:[#allocation2 + $0x100] sm:$0xff]
  %v100 = vld [vmem:[#allocation2 + $0x108] sm:$0xff]
  %v101 = vld [vmem:[#allocation2 + $0x110] sm:$0xff]
  %v102 = vld [vmem:[#allocation2 + $0x118] sm:$0xff]
  %v103 = vld [vmem:[#allocation2 + $0x120] sm:$0xff]
  %v104 = vld [vmem:[#allocation2 + $0x128] sm:$0xff]
  %v105 = vld [vmem:[#allocation2 + $0x130] sm:$0xff]
  %v106 = vld [vmem:[#allocation2 + $0x138] sm:$0xff]
  %v107 = vld [vmem:[#allocation2 + $0x140] sm:$0xff]
  %v108 = vld [vmem:[#allocation2 + $0x148] sm:$0xff]
  %v109 = vld [vmem:[#allocation2 + $0x150] sm:$0xff]
  %v110 = vld [vmem:[#allocation2 + $0x158] sm:$0xff]
  %v111 = vld [vmem:[#allocation2 + $0x160] sm:$0xff]
  %v112 = vld [vmem:[#allocation2 + $0x168] sm:$0xff]
  %v113 = vld [vmem:[#allocation2 + $0x170] sm:$0xff]
  %v114 = vld [vmem:[#allocation2 + $0x178] sm:$0xff]
  %v115 = vld [vmem:[%s0] sm:$0xf]
  %v116 = vld [vmem:[%s0 + $0x4] sm:$0xf]
  %v117 = vld [vmem:[%s0 + $0x8] sm:$0xf]
  %v118 = vld [vmem:[%s0 + $0xc] sm:$0xf]
  %v119 = vld [vmem:[%s0 + $0x10] sm:$0xf]
  %v120 = vld [vmem:[%s0 + $0x14] sm:$0xf]
  %v121 = vld [vmem:[%s0 + $0x18] sm:$0xf]
  %v122 = vld [vmem:[%s0 + $0x1c] sm:$0xf]
  %v123 = vld [vmem:[%s0 + $0x20] sm:$0xf]
  %v124 = vld [vmem:[%s0 + $0x24] sm:$0xf]
  %v125 = vld [vmem:[%s0 + $0x28] sm:$0xf]
  %v126 = vld [vmem:[%s0 + $0x2c] sm:$0xf]
  %v127 = vld [vmem:[%s0 + $0x30] sm:$0xf]
  %v128 = vld [vmem:[%s0 + $0x34] sm:$0xf]
  %v129 = vld [vmem:[%s0 + $0x38] sm:$0xf]
  %v130 = vld [vmem:[%s0 + $0x3c] sm:$0xf]
  %v131 = vld [vmem:[%s1] sm:$0xff]
  %v132 = vld [vmem:[%s1 + $0x8] sm:$0xf]
  %v133 = vld [vmem:[%s1 + $0xc] sm:$0xff]
  %v134 = vld [vmem:[%s1 + $0x14] sm:$0xf]
  %v135 = vld [vmem:[%s1 + $0x18] sm:$0xff]
  %v136 = vld [vmem:[%s1 + $0x20] sm:$0xf]
  %v137 = vld [vmem:[%s1 + $0x24] sm:$0xff]
  %v138 = vld [vmem:[%s1 + $0x2c] sm:$0xf]
  %v139 = vld [vmem:[%s1 + $0x30] sm:$0xff]
  %v140 = vld [vmem:[%s1 + $0x38] sm:$0xf]
  %v141 = vld [vmem:[%s1 + $0x3c] sm:$0xff]
  %v142 = vld [vmem:[%s1 + $0x44] sm:$0xf]
  %v143 = vld [vmem:[%s1 + $0x48] sm:$0xff]
  %v144 = vld [vmem:[%s1 + $0x50] sm:$0xf]
  %v145 = vld [vmem:[%s1 + $0x54] sm:$0xff]
  %v146 = vld [vmem:[%s1 + $0x5c] sm:$0xf]
  %v147 = vld [vmem:[%s1 + $0x60] sm:$0xff]
  %v148 = vld [vmem:[%s1 + $0x68] sm:$0xf]
  %v149 = vld [vmem:[%s1 + $0x6c] sm:$0xff]
  %v150 = vld [vmem:[%s1 + $0x74] sm:$0xf]
  %v151 = vld [vmem:[%s1 + $0x78] sm:$0xff]
  %v152 = vld [vmem:[%s1 + $0x80] sm:$0xf]
  %v153 = vld [vmem:[%s1 + $0x84] sm:$0xff]
  %v154 = vld [vmem:[%s1 + $0x8c] sm:$0xf]
  %v155 = vld [vmem:[%s1 + $0x90] sm:$0xff]
  %v156 = vld [vmem:[%s1 + $0x98] sm:$0xf]
  %v157 = vld [vmem:[%s1 + $0x9c] sm:$0xff]
  %v158 = vld [vmem:[%s1 + $0xa4] sm:$0xf]
  %v159 = vld [vmem:[%s1 + $0xa8] sm:$0xff]
  %v160 = vld [vmem:[%s1 + $0xb0] sm:$0xf]
  %v161 = vld [vmem:[%s1 + $0xb4] sm:$0xff]
  %v162 = vld [vmem:[%s1 + $0xbc] sm:$0xf]
  %v179 = vunpack.c.l.b16 %v115
  %v180 = vunpack.c.l.b16 %v116
  %v181 = vunpack.c.l.b16 %v117
  %v182 = vunpack.c.l.b16 %v118
  %v183 = vunpack.c.l.b16 %v119
  %v184 = vunpack.c.l.b16 %v120
  %v185 = vunpack.c.l.b16 %v121
  %v186 = vunpack.c.l.b16 %v122
  %v187 = vunpack.c.l.b16 %v123
  %v188 = vunpack.c.l.b16 %v124
  %v189 = vunpack.c.l.b16 %v125
  %v190 = vunpack.c.l.b16 %v126
  %v191 = vunpack.c.l.b16 %v127
  %v192 = vunpack.c.l.b16 %v128
  %v193 = vunpack.c.l.b16 %v129
  %v194 = vunpack.c.l.b16 %v130
  %v195 = vpack.c.b16 %v180, %v179
  %v196 = vpack.c.b16 %v182, %v181
  %v197 = vpack.c.b16 %v184, %v183
  %v198 = vpack.c.b16 %v186, %v185
  %v199 = vpack.c.b16 %v188, %v187
  %v200 = vpack.c.b16 %v190, %v189
  %v201 = vpack.c.b16 %v192, %v191
  %v202 = vpack.c.b16 %v194, %v193
  %v243 = vunpack.c.l.b16 %v131
  %v244 = vunpack.c.h.b16 %v131
  %v245 = vunpack.c.l.b16 %v132
  %v246 = vunpack.c.l.b16 %v133
  %v247 = vunpack.c.h.b16 %v133
  %v248 = vunpack.c.l.b16 %v134
  %v249 = vunpack.c.l.b16 %v135
  %v250 = vunpack.c.h.b16 %v135
  %v251 = vunpack.c.l.b16 %v136
  %v252 = vunpack.c.l.b16 %v137
  %v253 = vunpack.c.h.b16 %v137
  %v254 = vunpack.c.l.b16 %v138
  %v255 = vunpack.c.l.b16 %v139
  %v256 = vunpack.c.h.b16 %v139
  %v257 = vunpack.c.l.b16 %v140
  %v258 = vunpack.c.l.b16 %v141
  %v259 = vunpack.c.h.b16 %v141
  %v260 = vunpack.c.l.b16 %v142
  %v261 = vunpack.c.l.b16 %v143
  %v262 = vunpack.c.h.b16 %v143
  %v263 = vunpack.c.l.b16 %v144
  %v264 = vunpack.c.l.b16 %v145
  %v265 = vunpack.c.h.b16 %v145
  %v266 = vunpack.c.l.b16 %v146
  %v267 = vunpack.c.l.b16 %v147
  %v268 = vunpack.c.h.b16 %v147
  %v269 = vunpack.c.l.b16 %v148
  %v270 = vunpack.c.l.b16 %v149
  %v271 = vunpack.c.h.b16 %v149
  %v272 = vunpack.c.l.b16 %v150
  %v273 = vunpack.c.l.b16 %v151
  %v274 = vunpack.c.h.b16 %v151
  %v275 = vunpack.c.l.b16 %v152
  %v276 = vunpack.c.l.b16 %v153
  %v277 = vunpack.c.h.b16 %v153
  %v278 = vunpack.c.l.b16 %v154
  %v279 = vunpack.c.l.b16 %v155
  %v280 = vunpack.c.h.b16 %v155
  %v281 = vunpack.c.l.b16 %v156
  %v282 = vunpack.c.l.b16 %v157
  %v283 = vunpack.c.h.b16 %v157
  %v284 = vunpack.c.l.b16 %v158
  %v285 = vunpack.c.l.b16 %v159
  %v286 = vunpack.c.h.b16 %v159
  %v287 = vunpack.c.l.b16 %v160
  %v288 = vunpack.c.l.b16 %v161
  %v289 = vunpack.c.h.b16 %v161
  %v290 = vunpack.c.l.b16 %v162
  %v291 = vpack.c.b16 %v246, %v243
  %v292 = vpack.c.b16 %v247, %v244
  %v293 = vpack.c.b16 %v248, %v245
  %v294 = vpack.c.b16 %v252, %v249
  %v295 = vpack.c.b16 %v253, %v250
  %v296 = vpack.c.b16 %v254, %v251
  %v297 = vpack.c.b16 %v258, %v255
  %v298 = vpack.c.b16 %v259, %v256
  %v299 = vpack.c.b16 %v260, %v257
  %v300 = vpack.c.b16 %v264, %v261
  %v301 = vpack.c.b16 %v265, %v262
  %v302 = vpack.c.b16 %v266, %v263
  %v303 = vpack.c.b16 %v270, %v267
  %v304 = vpack.c.b16 %v271, %v268
  %v305 = vpack.c.b16 %v272, %v269
  %v306 = vpack.c.b16 %v276, %v273
  %v307 = vpack.c.b16 %v277, %v274
  %v308 = vpack.c.b16 %v278, %v275
  %v309 = vpack.c.b16 %v282, %v279
  %v310 = vpack.c.b16 %v283, %v280
  %v311 = vpack.c.b16 %v284, %v281
  %v312 = vpack.c.b16 %v288, %v285
  %v313 = vpack.c.b16 %v289, %v286
  %v314 = vpack.c.b16 %v290, %v287
  %339 = vmatprep.subr.bf16.mxu0 %v292
  %340 = vmatpush1.bf16.msra.mxu0 %v291
  %341 = vmatprep.subr.bf16.mxu0 %v295
  %342 = vmatpush1.bf16.msra.mxu0 %v294
  %343 = vmatprep.subr.bf16.mxu0 %v298
  %344 = vmatpush1.bf16.msra.mxu0 %v297
  %345 = vmatprep.subr.bf16.mxu0 %v301
  %346 = vmatpush1.bf16.msra.mxu0 %v300
  %347 = vmatprep.subr.bf16.mxu0 %v304
  %348 = vmatpush1.bf16.msra.mxu0 %v303
  %349 = vmatprep.subr.bf16.mxu0 %v307
  %350 = vmatpush1.bf16.msra.mxu0 %v306
  %351 = vmatprep.subr.bf16.mxu0 %v310
  %352 = vmatpush1.bf16.msra.mxu0 %v309
  %353 = vmatprep.subr.bf16.mxu0 %v313
  %354 = vmatpush1.bf16.msra.mxu0 %v312
  %355 = vmatprep.subr.bf16.mxu0 0
  %356 = vmatpush1.bf16.msra.mxu0 0
  %357 = vmatprep.subr.bf16.mxu0 0
  %358 = vmatpush1.bf16.msra.mxu0 0
  %359 = vmatprep.subr.bf16.mxu0 0
  %360 = vmatpush1.bf16.msra.mxu0 0
  %361 = vmatprep.subr.bf16.mxu0 0
  %362 = vmatpush1.bf16.msra.mxu0 0
  %363 = vmatprep.subr.bf16.mxu0 0
  %364 = vmatpush1.bf16.msra.mxu0 0
  %365 = vmatprep.subr.bf16.mxu0 0
  %366 = vmatpush1.bf16.msra.mxu0 0
  %367 = vmatprep.subr.bf16.mxu0 0
  %368 = vmatpush1.bf16.msra.mxu0 0
  %369 = vmatprep.subr.bf16.mxu0 0
  %370 = vmatpush1.bf16.msra.mxu0 0
  %371 = vmatprep.mubr.bf16.mxu0 0
  %372 = vmatmul.mubr.bf16.gmra.mrb[0].mxu0 %v195
  %v373 = vpop.f32.mrb[0].mxu0
  %v374 = vadd.f32 0.0, %v373
  %v375 = vpop.f32.mrb[0].mxu0
  %v376 = vadd.f32 0.0, %v375
  %v377 = vpop.f32.mrb[0].mxu0
  %v378 = vadd.f32 0.0, %v377
  %v379 = vpop.f32.mrb[0].mxu0
  %v380 = vadd.f32 0.0, %v379
  %381 = vmatprep.mubr.bf16.mxu0 0
  %382 = vmatmul.mubr.bf16.gmra.mrb[0].mxu0 %v196
  %v383 = vpop.f32.mrb[0].mxu0
  %v384 = vadd.f32 0.0, %v383
  %v385 = vpop.f32.mrb[0].mxu0
  %v386 = vadd.f32 0.0, %v385
  %v387 = vpop.f32.mrb[0].mxu0
  %v388 = vadd.f32 0.0, %v387
  %v389 = vpop.f32.mrb[0].mxu0
  %v390 = vadd.f32 0.0, %v389
  %391 = vmatprep.mubr.bf16.mxu0 0
  %392 = vmatmul.mubr.bf16.gmra.mrb[0].mxu0 %v197
  %v393 = vpop.f32.mrb[0].mxu0
  %v394 = vadd.f32 0.0, %v393
  %v395 = vpop.f32.mrb[0].mxu0
  %v396 = vadd.f32 0.0, %v395
  %v397 = vpop.f32.mrb[0].mxu0
  %v398 = vadd.f32 0.0, %v397
  %v399 = vpop.f32.mrb[0].mxu0
  %v400 = vadd.f32 0.0, %v399
  %401 = vmatprep.mubr.bf16.mxu0 0
  %402 = vmatmul.mubr.bf16.gmra.mrb[0].mxu0 %v198
  %v403 = vpop.f32.mrb[0].mxu0
  %v404 = vadd.f32 0.0, %v403
  %v405 = vpop.f32.mrb[0].mxu0
  %v406 = vadd.f32 0.0, %v405
  %v407 = vpop.f32.mrb[0].mxu0
  %v408 = vadd.f32 0.0, %v407
  %v409 = vpop.f32.mrb[0].mxu0
  %v410 = vadd.f32 0.0, %v409
  %411 = vmatprep.mubr.bf16.mxu0 0
  %412 = vmatmul.mubr.bf16.gmra.mrb[0].mxu0 %v199
  %v413 = vpop.f32.mrb[0].mxu0
  %v414 = vadd.f32 0.0, %v413
  %v415 = vpop.f32.mrb[0].mxu0
  %v416 = vadd.f32 0.0, %v415
  %v417 = vpop.f32.mrb[0].mxu0
  %v418 = vadd.f32 0.0, %v417
  %v419 = vpop.f32.mrb[0].mxu0
  %v420 = vadd.f32 0.0, %v419
  %421 = vmatprep.mubr.bf16.mxu0 0
  %422 = vmatmul.mubr.bf16.gmra.mrb[0].mxu0 %v200
  %v423 = vpop.f32.mrb[0].mxu0
  %v424 = vadd.f32 0.0, %v423
  %v425 = vpop.f32.mrb[0].mxu0
  %v426 = vadd.f32 0.0, %v425
  %v427 = vpop.f32.mrb[0].mxu0
  %v428 = vadd.f32 0.0, %v427
  %v429 = vpop.f32.mrb[0].mxu0
  %v430 = vadd.f32 0.0, %v429
  %431 = vmatprep.mubr.bf16.mxu0 0
  %432 = vmatmul.mubr.bf16.gmra.mrb[0].mxu0 %v201
  %v433 = vpop.f32.mrb[0].mxu0
  %v434 = vadd.f32 0.0, %v433
  %v435 = vpop.f32.mrb[0].mxu0
  %v436 = vadd.f32 0.0, %v435
  %v437 = vpop.f32.mrb[0].mxu0
  %v438 = vadd.f32 0.0, %v437
  %v439 = vpop.f32.mrb[0].mxu0
  %v440 = vadd.f32 0.0, %v439
  %441 = vmatprep.mubr.bf16.mxu0 0
  %442 = vmatmul.mubr.bf16.gmra.mrb[0].mxu0 %v202
  %v443 = vpop.f32.mrb[0].mxu0
  %v444 = vadd.f32 0.0, %v443
  %v445 = vpop.f32.mrb[0].mxu0
  %v446 = vadd.f32 0.0, %v445
  %v447 = vpop.f32.mrb[0].mxu0
  %v448 = vadd.f32 0.0, %v447
  %v449 = vpop.f32.mrb[0].mxu0
  %v450 = vadd.f32 0.0, %v449
  %451 = vdwg.mxu0
  %452 = vmatprep.subr.bf16.mxu0 0
  %453 = vmatpush1.bf16.msra.mxu0 %v293
  %454 = vmatprep.subr.bf16.mxu0 0
  %455 = vmatpush1.bf16.msra.mxu0 %v296
  %456 = vmatprep.subr.bf16.mxu0 0
  %457 = vmatpush1.bf16.msra.mxu0 %v299
  %458 = vmatprep.subr.bf16.mxu0 0
  %459 = vmatpush1.bf16.msra.mxu0 %v302
  %460 = vmatprep.subr.bf16.mxu0 0
  %461 = vmatpush1.bf16.msra.mxu0 %v305
  %462 = vmatprep.subr.bf16.mxu0 0
  %463 = vmatpush1.bf16.msra.mxu0 %v308
  %464 = vmatprep.subr.bf16.mxu0 0
  %465 = vmatpush1.bf16.msra.mxu0 %v311
  %466 = vmatprep.subr.bf16.mxu0 0
  %467 = vmatpush1.bf16.msra.mxu0 %v314
  %468 = vmatprep.subr.bf16.mxu0 0
  %469 = vmatpush1.bf16.msra.mxu0 0
  %470 = vmatprep.subr.bf16.mxu0 0
  %471 = vmatpush1.bf16.msra.mxu0 0
  %472 = vmatprep.subr.bf16.mxu0 0
  %473 = vmatpush1.bf16.msra.mxu0 0
  %474 = vmatprep.subr.bf16.mxu0 0
  %475 = vmatpush1.bf16.msra.mxu0 0
  %476 = vmatprep.subr.bf16.mxu0 0
  %477 = vmatpush1.bf16.msra.mxu0 0
  %478 = vmatprep.subr.bf16.mxu0 0
  %479 = vmatpush1.bf16.msra.mxu0 0
  %480 = vmatprep.subr.bf16.mxu0 0
  %481 = vmatpush1.bf16.msra.mxu0 0
  %482 = vmatprep.subr.bf16.mxu0 0
  %483 = vmatpush1.bf16.msra.mxu0 0
  %484 = vmatprep.mubr.bf16.mxu0 0
  %485 = vmatmul.mubr.bf16.gmra.mrb[0].mxu0 %v195
  %v486 = vpop.f32.mrb[0].mxu0
  %v487 = vadd.f32 0.0, %v486
  %v488 = vpop.f32.mrb[0].mxu0
  %v489 = vpop.f32.mrb[0].mxu0
  %v490 = vadd.f32 0.0, %v489
  %v491 = vpop.f32.mrb[0].mxu0
  %492 = vmatprep.mubr.bf16.mxu0 0
  %493 = vmatmul.mubr.bf16.gmra.mrb[0].mxu0 %v196
  %v494 = vpop.f32.mrb[0].mxu0
  %v495 = vadd.f32 0.0, %v494
  %v496 = vpop.f32.mrb[0].mxu0
  %v497 = vpop.f32.mrb[0].mxu0
  %v498 = vadd.f32 0.0, %v497
  %v499 = vpop.f32.mrb[0].mxu0
  %500 = vmatprep.mubr.bf16.mxu0 0
  %501 = vmatmul.mubr.bf16.gmra.mrb[0].mxu0 %v197
  %v502 = vpop.f32.mrb[0].mxu0
  %v503 = vadd.f32 0.0, %v502
  %v504 = vpop.f32.mrb[0].mxu0
  %v505 = vpop.f32.mrb[0].mxu0
  %v506 = vadd.f32 0.0, %v505
  %v507 = vpop.f32.mrb[0].mxu0
  %508 = vmatprep.mubr.bf16.mxu0 0
  %509 = vmatmul.mubr.bf16.gmra.mrb[0].mxu0 %v198
  %v510 = vpop.f32.mrb[0].mxu0
  %v511 = vadd.f32 0.0, %v510
  %v512 = vpop.f32.mrb[0].mxu0
  %v513 = vpop.f32.mrb[0].mxu0
  %v514 = vadd.f32 0.0, %v513
  %v515 = vpop.f32.mrb[0].mxu0
  %516 = vmatprep.mubr.bf16.mxu0 0
  %517 = vmatmul.mubr.bf16.gmra.mrb[0].mxu0 %v199
  %v518 = vpop.f32.mrb[0].mxu0
  %v519 = vadd.f32 0.0, %v518
  %v520 = vpop.f32.mrb[0].mxu0
  %v521 = vpop.f32.mrb[0].mxu0
  %v522 = vadd.f32 0.0, %v521
  %v523 = vpop.f32.mrb[0].mxu0
  %524 = vmatprep.mubr.bf16.mxu0 0
  %525 = vmatmul.mubr.bf16.gmra.mrb[0].mxu0 %v200
  %v526 = vpop.f32.mrb[0].mxu0
  %v527 = vadd.f32 0.0, %v526
  %v528 = vpop.f32.mrb[0].mxu0
  %v529 = vpop.f32.mrb[0].mxu0
  %v530 = vadd.f32 0.0, %v529
  %v531 = vpop.f32.mrb[0].mxu0
  %532 = vmatprep.mubr.bf16.mxu0 0
  %533 = vmatmul.mubr.bf16.gmra.mrb[0].mxu0 %v201
  %v534 = vpop.f32.mrb[0].mxu0
  %v535 = vadd.f32 0.0, %v534
  %v536 = vpop.f32.mrb[0].mxu0
  %v537 = vpop.f32.mrb[0].mxu0
  %v538 = vadd.f32 0.0, %v537
  %v539 = vpop.f32.mrb[0].mxu0
  %540 = vmatprep.mubr.bf16.mxu0 0
  %541 = vmatmul.mubr.bf16.gmra.mrb[0].mxu0 %v202
  %v542 = vpop.f32.mrb[0].mxu0
  %v543 = vadd.f32 0.0, %v542
  %v544 = vpop.f32.mrb[0].mxu0
  %v545 = vpop.f32.mrb[0].mxu0
  %v546 = vadd.f32 0.0, %v545
  %v547 = vpop.f32.mrb[0].mxu0
  %548 = vdwg.mxu0
  %v549 = vadd.f32 %v67, %v374
  %v550 = vadd.f32 %v68, %v376
  %v551 = vadd.f32 %v69, %v487
  %v552 = vadd.f32 %v70, %v378
  %v553 = vadd.f32 %v71, %v380
  %v554 = vadd.f32 %v72, %v490
  %v555 = vadd.f32 %v73, %v384
  %v556 = vadd.f32 %v74, %v386
  %v557 = vadd.f32 %v75, %v495
  %v558 = vadd.f32 %v76, %v388
  %v559 = vadd.f32 %v77, %v390
  %v560 = vadd.f32 %v78, %v498
  %v561 = vadd.f32 %v79, %v394
  %v562 = vadd.f32 %v80, %v396
  %v563 = vadd.f32 %v81, %v503
  %v564 = vadd.f32 %v82, %v398
  %v565 = vadd.f32 %v83, %v400
  %v566 = vadd.f32 %v84, %v506
  %v567 = vadd.f32 %v85, %v404
  %v568 = vadd.f32 %v86, %v406
  %v569 = vadd.f32 %v87, %v511
  %v570 = vadd.f32 %v88, %v408
  %v571 = vadd.f32 %v89, %v410
  %v572 = vadd.f32 %v90, %v514
  %v573 = vadd.f32 %v91, %v414
  %v574 = vadd.f32 %v92, %v416
  %v575 = vadd.f32 %v93, %v519
  %v576 = vadd.f32 %v94, %v418
  %v577 = vadd.f32 %v95, %v420
  %v578 = vadd.f32 %v96, %v522
  %v579 = vadd.f32 %v97, %v424
  %v580 = vadd.f32 %v98, %v426
  %v581 = vadd.f32 %v99, %v527
  %v582 = vadd.f32 %v100, %v428
  %v583 = vadd.f32 %v101, %v430
  %v584 = vadd.f32 %v102, %v530
  %v585 = vadd.f32 %v103, %v434
  %v586 = vadd.f32 %v104, %v436
  %v587 = vadd.f32 %v105, %v535
  %v588 = vadd.f32 %v106, %v438
  %v589 = vadd.f32 %v107, %v440
  %v590 = vadd.f32 %v108, %v538
  %v591 = vadd.f32 %v109, %v444
  %v592 = vadd.f32 %v110, %v446
  %v593 = vadd.f32 %v111, %v543
  %v594 = vadd.f32 %v112, %v448
  %v595 = vadd.f32 %v113, %v450
  %v596 = vadd.f32 %v114, %v546
  %597 = vst [vmem:[#allocation2] sm:$0xff] %v549
  %598 = vst [vmem:[#allocation2 + $0x8] sm:$0xff] %v550
  %599 = vst [vmem:[#allocation2 + $0x10] sm:$0xff] %v551
  %600 = vst [vmem:[#allocation2 + $0x18] sm:$0xff] %v552
  %601 = vst [vmem:[#allocation2 + $0x20] sm:$0xff] %v553
  %602 = vst [vmem:[#allocation2 + $0x28] sm:$0xff] %v554
  %603 = vst [vmem:[#allocation2 + $0x30] sm:$0xff] %v555
  %604 = vst [vmem:[#allocation2 + $0x38] sm:$0xff] %v556
  %605 = vst [vmem:[#allocation2 + $0x40] sm:$0xff] %v557
  %606 = vst [vmem:[#allocation2 + $0x48] sm:$0xff] %v558
  %607 = vst [vmem:[#allocation2 + $0x50] sm:$0xff] %v559
  %608 = vst [vmem:[#allocation2 + $0x58] sm:$0xff] %v560
  %609 = vst [vmem:[#allocation2 + $0x60] sm:$0xff] %v561
  %610 = vst [vmem:[#allocation2 + $0x68] sm:$0xff] %v562
  %611 = vst [vmem:[#allocation2 + $0x70] sm:$0xff] %v563
  %612 = vst [vmem:[#allocation2 + $0x78] sm:$0xff] %v564
  %613 = vst [vmem:[#allocation2 + $0x80] sm:$0xff] %v565
  %614 = vst [vmem:[#allocation2 + $0x88] sm:$0xff] %v566
  %615 = vst [vmem:[#allocation2 + $0x90] sm:$0xff] %v567
  %616 = vst [vmem:[#allocation2 + $0x98] sm:$0xff] %v568
  %617 = vst [vmem:[#allocation2 + $0xa0] sm:$0xff] %v569
  %618 = vst [vmem:[#allocation2 + $0xa8] sm:$0xff] %v570
  %619 = vst [vmem:[#allocation2 + $0xb0] sm:$0xff] %v571
  %620 = vst [vmem:[#allocation2 + $0xb8] sm:$0xff] %v572
  %621 = vst [vmem:[#allocation2 + $0xc0] sm:$0xff] %v573
  %622 = vst [vmem:[#allocation2 + $0xc8] sm:$0xff] %v574
  %623 = vst [vmem:[#allocation2 + $0xd0] sm:$0xff] %v575
  %624 = vst [vmem:[#allocation2 + $0xd8] sm:$0xff] %v576
  %625 = vst [vmem:[#allocation2 + $0xe0] sm:$0xff] %v577
  %626 = vst [vmem:[#allocation2 + $0xe8] sm:$0xff] %v578
  %627 = vst [vmem:[#allocation2 + $0xf0] sm:$0xff] %v579
  %628 = vst [vmem:[#allocation2 + $0xf8] sm:$0xff] %v580
  %629 = vst [vmem:[#allocation2 + $0x100] sm:$0xff] %v581
  %630 = vst [vmem:[#allocation2 + $0x108] sm:$0xff] %v582
  %631 = vst [vmem:[#allocation2 + $0x110] sm:$0xff] %v583
  %632 = vst [vmem:[#allocation2 + $0x118] sm:$0xff] %v584
  %633 = vst [vmem:[#allocation2 + $0x120] sm:$0xff] %v585
  %634 = vst [vmem:[#allocation2 + $0x128] sm:$0xff] %v586
  %635 = vst [vmem:[#allocation2 + $0x130] sm:$0xff] %v587
  %636 = vst [vmem:[#allocation2 + $0x138] sm:$0xff] %v588
  %637 = vst [vmem:[#allocation2 + $0x140] sm:$0xff] %v589
  %638 = vst [vmem:[#allocation2 + $0x148] sm:$0xff] %v590
  %639 = vst [vmem:[#allocation2 + $0x150] sm:$0xff] %v591
  %640 = vst [vmem:[#allocation2 + $0x158] sm:$0xff] %v592
  %641 = vst [vmem:[#allocation2 + $0x160] sm:$0xff] %v593
  %642 = vst [vmem:[#allocation2 + $0x168] sm:$0xff] %v594
  %643 = vst [vmem:[#allocation2 + $0x170] sm:$0xff] %v595
  %644 = vst [vmem:[#allocation2 + $0x178] sm:$0xff] %v596
  // Predicated region
  $region18: #{transformer_forward.9} parent=0 // pred_check
    %p645 = pneg %p15
  $region19: #{transformer_forward.9} parent=0 // pred_check_branch
    %647 = sbr.rel (%p645) target = $region21
  $region20: #{transformer_forward.9} parent=0 // pred_region
    %v648 = vld [vmem:[#allocation2] sm:$0xff]
    %v649 = vld [vmem:[#allocation2 + $0x8] sm:$0xff]
    %v650 = vld [vmem:[#allocation2 + $0x10] sm:$0xff]
    %v651 = vld [vmem:[#allocation2 + $0x18] sm:$0xff]
    %v652 = vld [vmem:[#allocation2 + $0x20] sm:$0xff]
    %v653 = vld [vmem:[#allocation2 + $0x28] sm:$0xff]
    %v654 = vld [vmem:[#allocation2 + $0x30] sm:$0xff]
    %v655 = vld [vmem:[#allocation2 + $0x38] sm:$0xff]
    %v656 = vld [vmem:[#allocation2 + $0x40] sm:$0xff]
    %v657 = vld [vmem:[#allocation2 + $0x48] sm:$0xff]
    %v658 = vld [vmem:[#allocation2 + $0x50] sm:$0xff]
    %v659 = vld [vmem:[#allocation2 + $0x58] sm:$0xff]
    %v660 = vld [vmem:[#allocation2 + $0x60] sm:$0xff]
    %v661 = vld [vmem:[#allocation2 + $0x68] sm:$0xff]
    %v662 = vld [vmem:[#allocation2 + $0x70] sm:$0xff]
    %v663 = vld [vmem:[#allocation2 + $0x78] sm:$0xff]
    %v664 = vld [vmem:[#allocation2 + $0x80] sm:$0xff]
    %v665 = vld [vmem:[#allocation2 + $0x88] sm:$0xff]
    %v666 = vld [vmem:[#allocation2 + $0x90] sm:$0xff]
    %v667 = vld [vmem:[#allocation2 + $0x98] sm:$0xff]
    %v668 = vld [vmem:[#allocation2 + $0xa0] sm:$0xff]
    %v669 = vld [vmem:[#allocation2 + $0xa8] sm:$0xff]
    %v670 = vld [vmem:[#allocation2 + $0xb0] sm:$0xff]
    %v671 = vld [vmem:[#allocation2 + $0xb8] sm:$0xff]
    %v672 = vld [vmem:[#allocation2 + $0xc0] sm:$0xff]
    %v673 = vld [vmem:[#allocation2 + $0xc8] sm:$0xff]
    %v674 = vld [vmem:[#allocation2 + $0xd0] sm:$0xff]
    %v675 = vld [vmem:[#allocation2 + $0xd8] sm:$0xff]
    %v676 = vld [vmem:[#allocation2 + $0xe0] sm:$0xff]
    %v677 = vld [vmem:[#allocation2 + $0xe8] sm:$0xff]
    %v678 = vld [vmem:[#allocation2 + $0xf0] sm:$0xff]
    %v679 = vld [vmem:[#allocation2 + $0xf8] sm:$0xff]
    %v680 = vld [vmem:[#allocation2 + $0x100] sm:$0xff]
    %v681 = vld [vmem:[#allocation2 + $0x108] sm:$0xff]
    %v682 = vld [vmem:[#allocation2 + $0x110] sm:$0xff]
    %v683 = vld [vmem:[#allocation2 + $0x118] sm:$0xff]
    %v684 = vld [vmem:[#allocation2 + $0x120] sm:$0xff]
    %v685 = vld [vmem:[#allocation2 + $0x128] sm:$0xff]
    %v686 = vld [vmem:[#allocation2 + $0x130] sm:$0xff]
    %v687 = vld [vmem:[#allocation2 + $0x138] sm:$0xff]
    %v688 = vld [vmem:[#allocation2 + $0x140] sm:$0xff]
    %v689 = vld [vmem:[#allocation2 + $0x148] sm:$0xff]
    %v690 = vld [vmem:[#allocation2 + $0x150] sm:$0xff]
    %v691 = vld [vmem:[#allocation2 + $0x158] sm:$0xff]
    %v692 = vld [vmem:[#allocation2 + $0x160] sm:$0xff]
    %v693 = vld [vmem:[#allocation2 + $0x168] sm:$0xff]
    %v694 = vld [vmem:[#allocation2 + $0x170] sm:$0xff]
    %v695 = vld [vmem:[#allocation2 + $0x178] sm:$0xff]
    %v696 = vld [vmem:[%s2] sm:$0x7]
    %v698 = vlaneseq
    %v699 = vshrl.u32 %v698, 7
    %v700 = vsub.s32 0, %v699
    %v701 = vrot.slane %v696, %v700
    %v702 = vlaneseq
    %v703 = vshrl.u32 %v702, 7
    %v704 = vsub.s32 1, %v703
    %v705 = vrot.slane %v696, %v704
    %v706 = vlaneseq
    %v707 = vshrl.u32 %v706, 7
    %v708 = vsub.s32 2, %v707
    %v709 = vrot.slane %v696, %v708
    %v713 = vadd.f32 %v648, %v701
    %v714 = vadd.f32 %v649, %v705
    %v715 = vadd.f32 %v650, %v709
    %v716 = vadd.f32 %v651, %v701
    %v717 = vadd.f32 %v652, %v705
    %v718 = vadd.f32 %v653, %v709
    %v719 = vadd.f32 %v654, %v701
    %v720 = vadd.f32 %v655, %v705
    %v721 = vadd.f32 %v656, %v709
    %v722 = vadd.f32 %v657, %v701
    %v723 = vadd.f32 %v658, %v705
    %v724 = vadd.f32 %v659, %v709
    %v725 = vadd.f32 %v660, %v701
    %v726 = vadd.f32 %v661, %v705
    %v727 = vadd.f32 %v662, %v709
    %v728 = vadd.f32 %v663, %v701
    %v729 = vadd.f32 %v664, %v705
    %v730 = vadd.f32 %v665, %v709
    %v731 = vadd.f32 %v666, %v701
    %v732 = vadd.f32 %v667, %v705
    %v733 = vadd.f32 %v668, %v709
    %v734 = vadd.f32 %v669, %v701
    %v735 = vadd.f32 %v670, %v705
    %v736 = vadd.f32 %v671, %v709
    %v737 = vadd.f32 %v672, %v701
    %v738 = vadd.f32 %v673, %v705
    %v739 = vadd.f32 %v674, %v709
    %v740 = vadd.f32 %v675, %v701
    %v741 = vadd.f32 %v676, %v705
    %v742 = vadd.f32 %v677, %v709
    %v743 = vadd.f32 %v678, %v701
    %v744 = vadd.f32 %v679, %v705
    %v745 = vadd.f32 %v680, %v709
    %v746 = vadd.f32 %v681, %v701
    %v747 = vadd.f32 %v682, %v705
    %v748 = vadd.f32 %v683, %v709
    %v749 = vadd.f32 %v684, %v701
    %v750 = vadd.f32 %v685, %v705
    %v751 = vadd.f32 %v686, %v709
    %v752 = vadd.f32 %v687, %v701
    %v753 = vadd.f32 %v688, %v705
    %v754 = vadd.f32 %v689, %v709
    %v755 = vadd.f32 %v690, %v701
    %v756 = vadd.f32 %v691, %v705
    %v757 = vadd.f32 %v692, %v709
    %v758 = vadd.f32 %v693, %v701
    %v759 = vadd.f32 %v694, %v705
    %v760 = vadd.f32 %v695, %v709
    %v761 = vpack.c.bf16 %v716, %v713
    %v762 = vpack.c.bf16 %v717, %v714
    %v763 = vpack.c.bf16 %v718, %v715
    %v764 = vpack.c.bf16 %v722, %v719
    %v765 = vpack.c.bf16 %v723, %v720
    %v766 = vpack.c.bf16 %v724, %v721
    %v767 = vpack.c.bf16 %v728, %v725
    %v768 = vpack.c.bf16 %v729, %v726
    %v769 = vpack.c.bf16 %v730, %v727
    %v770 = vpack.c.bf16 %v734, %v731
    %v771 = vpack.c.bf16 %v735, %v732
    %v772 = vpack.c.bf16 %v736, %v733
    %v773 = vpack.c.bf16 %v740, %v737
    %v774 = vpack.c.bf16 %v741, %v738
    %v775 = vpack.c.bf16 %v742, %v739
    %v776 = vpack.c.bf16 %v746, %v743
    %v777 = vpack.c.bf16 %v747, %v744
    %v778 = vpack.c.bf16 %v748, %v745
    %v779 = vpack.c.bf16 %v752, %v749
    %v780 = vpack.c.bf16 %v753, %v750
    %v781 = vpack.c.bf16 %v754, %v751
    %v782 = vpack.c.bf16 %v758, %v755
    %v783 = vpack.c.bf16 %v759, %v756
    %v784 = vpack.c.bf16 %v760, %v757
    %v809 = vunpack.c.l.b16 %v761
    %v810 = vunpack.c.l.b16 %v762
    %v811 = vunpack.c.l.b16 %v763
    %v812 = vunpack.c.h.b16 %v761
    %v813 = vunpack.c.h.b16 %v762
    %v814 = vunpack.c.h.b16 %v763
    %v815 = vunpack.c.l.b16 %v764
    %v816 = vunpack.c.l.b16 %v765
    %v817 = vunpack.c.l.b16 %v766
    %v818 = vunpack.c.h.b16 %v764
    %v819 = vunpack.c.h.b16 %v765
    %v820 = vunpack.c.h.b16 %v766
    %v821 = vunpack.c.l.b16 %v767
    %v822 = vunpack.c.l.b16 %v768
    %v823 = vunpack.c.l.b16 %v769
    %v824 = vunpack.c.h.b16 %v767
    %v825 = vunpack.c.h.b16 %v768
    %v826 = vunpack.c.h.b16 %v769
    %v827 = vunpack.c.l.b16 %v770
    %v828 = vunpack.c.l.b16 %v771
    %v829 = vunpack.c.l.b16 %v772
    %v830 = vunpack.c.h.b16 %v770
    %v831 = vunpack.c.h.b16 %v771
    %v832 = vunpack.c.h.b16 %v772
    %v833 = vunpack.c.l.b16 %v773
    %v834 = vunpack.c.l.b16 %v774
    %v835 = vunpack.c.l.b16 %v775
    %v836 = vunpack.c.h.b16 %v773
    %v837 = vunpack.c.h.b16 %v774
    %v838 = vunpack.c.h.b16 %v775
    %v839 = vunpack.c.l.b16 %v776
    %v840 = vunpack.c.l.b16 %v777
    %v841 = vunpack.c.l.b16 %v778
    %v842 = vunpack.c.h.b16 %v776
    %v843 = vunpack.c.h.b16 %v777
    %v844 = vunpack.c.h.b16 %v778
    %v845 = vunpack.c.l.b16 %v779
    %v846 = vunpack.c.l.b16 %v780
    %v847 = vunpack.c.l.b16 %v781
    %v848 = vunpack.c.h.b16 %v779
    %v849 = vunpack.c.h.b16 %v780
    %v850 = vunpack.c.h.b16 %v781
    %v851 = vunpack.c.l.b16 %v782
    %v852 = vunpack.c.l.b16 %v783
    %v853 = vunpack.c.l.b16 %v784
    %v854 = vunpack.c.h.b16 %v782
    %v855 = vunpack.c.h.b16 %v783
    %v856 = vunpack.c.h.b16 %v784
    %v857 = vpack.c.b16 %v810, %v809
    %v858 = vpack.c.b16 %v811, %v811
    %v859 = vpack.c.b16 %v813, %v812
    %v860 = vpack.c.b16 %v814, %v814
    %v861 = vpack.c.b16 %v816, %v815
    %v862 = vpack.c.b16 %v817, %v817
    %v863 = vpack.c.b16 %v819, %v818
    %v864 = vpack.c.b16 %v820, %v820
    %v865 = vpack.c.b16 %v822, %v821
    %v866 = vpack.c.b16 %v823, %v823
    %v867 = vpack.c.b16 %v825, %v824
    %v868 = vpack.c.b16 %v826, %v826
    %v869 = vpack.c.b16 %v828, %v827
    %v870 = vpack.c.b16 %v829, %v829
    %v871 = vpack.c.b16 %v831, %v830
    %v872 = vpack.c.b16 %v832, %v832
    %v873 = vpack.c.b16 %v834, %v833
    %v874 = vpack.c.b16 %v835, %v835
    %v875 = vpack.c.b16 %v837, %v836
    %v876 = vpack.c.b16 %v838, %v838
    %v877 = vpack.c.b16 %v840, %v839
    %v878 = vpack.c.b16 %v841, %v841
    %v879 = vpack.c.b16 %v843, %v842
    %v880 = vpack.c.b16 %v844, %v844
    %v881 = vpack.c.b16 %v846, %v845
    %v882 = vpack.c.b16 %v847, %v847
    %v883 = vpack.c.b16 %v849, %v848
    %v884 = vpack.c.b16 %v850, %v850
    %v885 = vpack.c.b16 %v852, %v851
    %v886 = vpack.c.b16 %v853, %v853
    %v887 = vpack.c.b16 %v855, %v854
    %v888 = vpack.c.b16 %v856, %v856
    %921 = vst [vmem:[%s3] sm:$0xff] %v857
    %922 = vst [vmem:[%s3 + $0x8] sm:$0xf] %v858
    %923 = vst [vmem:[%s3 + $0xc] sm:$0xff] %v859
    %924 = vst [vmem:[%s3 + $0x14] sm:$0xf] %v860
    %925 = vst [vmem:[%s3 + $0x18] sm:$0xff] %v861
    %926 = vst [vmem:[%s3 + $0x20] sm:$0xf] %v862
    %927 = vst [vmem:[%s3 + $0x24] sm:$0xff] %v863
    %928 = vst [vmem:[%s3 + $0x2c] sm:$0xf] %v864
    %929 = vst [vmem:[%s3 + $0x30] sm:$0xff] %v865
    %930 = vst [vmem:[%s3 + $0x38] sm:$0xf] %v866
    %931 = vst [vmem:[%s3 + $0x3c] sm:$0xff] %v867
    %932 = vst [vmem:[%s3 + $0x44] sm:$0xf] %v868
    %933 = vst [vmem:[%s3 + $0x48] sm:$0xff] %v869
    %934 = vst [vmem:[%s3 + $0x50] sm:$0xf] %v870
    %935 = vst [vmem:[%s3 + $0x54] sm:$0xff] %v871
    %936 = vst [vmem:[%s3 + $0x5c] sm:$0xf] %v872
    %937 = vst [vmem:[%s3 + $0x60] sm:$0xff] %v873
    %938 = vst [vmem:[%s3 + $0x68] sm:$0xf] %v874
    %939 = vst [vmem:[%s3 + $0x6c] sm:$0xff] %v875
    %940 = vst [vmem:[%s3 + $0x74] sm:$0xf] %v876
    %941 = vst [vmem:[%s3 + $0x78] sm:$0xff] %v877
    %942 = vst [vmem:[%s3 + $0x80] sm:$0xf] %v878
    %943 = vst [vmem:[%s3 + $0x84] sm:$0xff] %v879
    %944 = vst [vmem:[%s3 + $0x8c] sm:$0xf] %v880
    %945 = vst [vmem:[%s3 + $0x90] sm:$0xff] %v881
    %946 = vst [vmem:[%s3 + $0x98] sm:$0xf] %v882
    %947 = vst [vmem:[%s3 + $0x9c] sm:$0xff] %v883
    %948 = vst [vmem:[%s3 + $0xa4] sm:$0xf] %v884
    %949 = vst [vmem:[%s3 + $0xa8] sm:$0xff] %v885
    %950 = vst [vmem:[%s3 + $0xb0] sm:$0xf] %v886
    %951 = vst [vmem:[%s3 + $0xb4] sm:$0xff] %v887
    %952 = vst [vmem:[%s3 + $0xbc] sm:$0xf] %v888
  $region21: #{transformer_forward.9} parent=0 // pred_fallthru
    _
  // Predicated region
  $region22: #{transformer_forward.9} parent=0 // pred_check
    _
  $region23: #{transformer_forward.9} parent=0 // pred_check_branch
    %954 = sbr.rel (0) target = $region25
  $region24: #{transformer_forward.9} parent=0 // pred_region
    _
  $region25: #{transformer_forward.9} parent=0 // pred_fallthru
    _
  // Predicated region
  $region26: #{transformer_forward.9} parent=0 // pred_check
    _
  $region27: #{transformer_forward.9} parent=0 // pred_check_branch
    %956 = sbr.rel (0) target = $region29
  $region28: #{transformer_forward.9} parent=0 // pred_region
    _
  $region29: #{transformer_forward.9} parent=0 // pred_fallthru
    _

// kernel: transformer_forward.10
$region0: #{transformer_forward.10}
  #allocation0 [shape = 'u32[]', space=smem, size = 0x4, offset = 0x4, fixed_abs, tag = 'smem constant byte address 0x4 - core index']
  #allocation1 [shape = 'u32[144,128]{1,0:T(1,128)}', space=vmem, size = 0x12000, scoped, tag = 'internal scratch']
  %s0 = inlined_call_operand.vmem [shape: bf16[32,16,32], index: 0, kind: input, shape index: {}]
  %s1 = inlined_call_operand.vmem [shape: bf16[32,32,16], index: 1, kind: input, shape index: {}]
  %s2 = inlined_call_operand.vmem [shape: bf16[32,16,32], index: 2, kind: input, shape index: {}]
  %s3 = inlined_call_operand.vmem [shape: bf16[32,16,32], index: 3, kind: output, shape index: {}]
  %s4 = sld [smem:[#allocation0]]
  $region45: #{transformer_forward.10} parent=0
    _
  %s6 = ssub.s32 1, %s4
  %s7 = scalar_select 0, %s6, %s4
  loop: start=0, step=1, limit=34
  $region2: #{transformer_forward.10} parent=0 // loop_pre_header
    _
  $region3: #{transformer_forward.10} parent=0 // loop_header
    %s9 = sphi 0, %s13
    %p10 = scmp.ge.s32.totalorder %s9, 34
    %s16 = sphi 0, %s28
    %s17 = sphi 0, %s24
    %s18 = sphi 0, %s16
    %s19 = sphi 0, %s17
    %s20 = sphi 0, %s18
    %s21 = sphi 0, %s19
    %s33 = sphi 0, %s35
    %s36 = sphi 0, %s33
    %s37 = sphi 0, %s36
    %s53 = sphi 0, %s37
    %s59 = sphi 0, %s61
    %s62 = sphi 0, %s59
    %s63 = sphi 0, %s62
    %s79 = sphi 0, %s63
    %s85 = sphi 0, %s87
    %s88 = sphi 0, %s85
    %s89 = sphi 0, %s88
    %s105 = sphi 0, %s89
    %s113 = sphi 0, %s115
    %s116 = sphi 0, %s113
    %s117 = sphi 0, %s116
    %s133 = sphi 0, %s117
  $region4: #{transformer_forward.10} parent=0 // loop_header_branch
    %12 = sbr.rel (%p10) target = $region8
  $region5: #{transformer_forward.10} parent=0 // loop_body
    %s14 = ssub.s32 %s9, 1
    %s15 = ssub.s32 %s9, 2
    %s22 = sadd.s32 1, %s17
    %p23 = scmp.ge.s32.totalorder %s22, 1
    %s24 = scalar_select %p23, 0, %s22
    %s25 = sadd.s32 1, %s16
    %s26 = scalar_select %p23, %s25, %s16
    %p27 = scmp.ge.s32.totalorder %s26, 32
    %s28 = scalar_select %p27, 0, %s26
    %s29 = ssub.s32 %s16, %s28
    %s30 = ssub.s32 %s17, %s24
    %s31 = sor.u32 %s29, %s30
    %p32 = scmp.eq.s32.totalorder %s31, 0
    %s34 = sadd.s32 %s33, 1
    %s35 = scalar_select %p32, %s33, %s34
    %p38 = pneg %p32
    %p39 = scmp.eq.s32.totalorder %s9, 31
    %p40 = por %p38, %p39
    %p41 = scmp.ne.s32.totalorder %s33, %s36
    %p42 = scmp.eq.s32.totalorder %s9, 0
    %p43 = por %p41, %p42
    %p44 = scmp.ne.s32.totalorder %s33, %s36
    %p45 = scmp.eq.s32.totalorder %s14, 31
    %p46 = por %p44, %p45
    %p47 = scmp.ne.s32.totalorder %s36, %s37
    %p48 = scmp.eq.s32.totalorder %s14, 0
    %p49 = por %p47, %p48
    %p50 = scmp.ne.s32.totalorder %s36, %s37
    %p51 = scmp.eq.s32.totalorder %s15, 31
    %p52 = por %p50, %p51
    %p54 = scmp.ne.s32.totalorder %s37, %s53
    %p55 = scmp.eq.s32.totalorder %s15, 0
    %p56 = por %p54, %p55
    %s57 = ssub.s32 %s16, %s28
    %p58 = scmp.eq.s32.totalorder %s57, 0
    %s60 = sadd.s32 %s59, 1
    %s61 = scalar_select %p58, %s59, %s60
    %p64 = pneg %p58
    %p65 = scmp.eq.s32.totalorder %s9, 31
    %p66 = por %p64, %p65
    %p67 = scmp.ne.s32.totalorder %s59, %s62
    %p68 = scmp.eq.s32.totalorder %s9, 0
    %p69 = por %p67, %p68
    %p70 = scmp.ne.s32.totalorder %s59, %s62
    %p71 = scmp.eq.s32.totalorder %s14, 31
    %p72 = por %p70, %p71
    %p73 = scmp.ne.s32.totalorder %s62, %s63
    %p74 = scmp.eq.s32.totalorder %s14, 0
    %p75 = por %p73, %p74
    %p76 = scmp.ne.s32.totalorder %s62, %s63
    %p77 = scmp.eq.s32.totalorder %s15, 31
    %p78 = por %p76, %p77
    %p80 = scmp.ne.s32.totalorder %s63, %s79
    %p81 = scmp.eq.s32.totalorder %s15, 0
    %p82 = por %p80, %p81
    %s83 = ssub.s32 %s16, %s28
    %p84 = scmp.eq.s32.totalorder %s83, 0
    %s86 = sadd.s32 %s85, 1
    %s87 = scalar_select %p84, %s85, %s86
    %p90 = pneg %p84
    %p91 = scmp.eq.s32.totalorder %s9, 31
    %p92 = por %p90, %p91
    %p93 = scmp.ne.s32.totalorder %s85, %s88
    %p94 = scmp.eq.s32.totalorder %s9, 0
    %p95 = por %p93, %p94
    %p96 = scmp.ne.s32.totalorder %s85, %s88
    %p97 = scmp.eq.s32.totalorder %s14, 31
    %p98 = por %p96, %p97
    %p99 = scmp.ne.s32.totalorder %s88, %s89
    %p100 = scmp.eq.s32.totalorder %s14, 0
    %p101 = por %p99, %p100
    %p102 = scmp.ne.s32.totalorder %s88, %s89
    %p103 = scmp.eq.s32.totalorder %s15, 31
    %p104 = por %p102, %p103
    %p106 = scmp.ne.s32.totalorder %s89, %s105
    %p107 = scmp.eq.s32.totalorder %s15, 0
    %p108 = por %p106, %p107
    %s109 = ssub.s32 %s16, %s28
    %s110 = ssub.s32 %s17, %s24
    %s111 = sor.u32 %s109, %s110
    %p112 = scmp.eq.s32.totalorder %s111, 0
    %s114 = sadd.s32 %s113, 1
    %s115 = scalar_select %p112, %s113, %s114
    %p118 = pneg %p112
    %p119 = scmp.eq.s32.totalorder %s9, 31
    %p120 = por %p118, %p119
    %p121 = scmp.ne.s32.totalorder %s113, %s116
    %p122 = scmp.eq.s32.totalorder %s9, 0
    %p123 = por %p121, %p122
    %p124 = scmp.ne.s32.totalorder %s113, %s116
    %p125 = scmp.eq.s32.totalorder %s14, 31
    %p126 = por %p124, %p125
    %p127 = scmp.ne.s32.totalorder %s116, %s117
    %p128 = scmp.eq.s32.totalorder %s14, 0
    %p129 = por %p127, %p128
    %p130 = scmp.ne.s32.totalorder %s116, %s117
    %p131 = scmp.eq.s32.totalorder %s15, 31
    %p132 = por %p130, %p131
    %p134 = scmp.ne.s32.totalorder %s117, %s133
    %p135 = scmp.eq.s32.totalorder %s15, 0
    %p136 = por %p134, %p135
    %p137 = scmp.le.s32.totalorder 1, %s9
    %p138 = scmp.lt.s32.totalorder %s9, 33
    %p139 = pnand %p137, %p138
    %p140 = pneg %p139
    // Predicated region
    $region9: #{transformer_forward.10} parent=5 // pred_check
      _
    $region10: #{transformer_forward.10} parent=5 // pred_check_branch
      %142 = sbr.rel (%p139) target = $region12
    $region11: #{transformer_forward.10} parent=5 // pred_region
      %s143 = ssub.s32 %s9, 1
    $region12: #{transformer_forward.10} parent=5 // pred_fallthru
      _
    %p144 = scmp.lt.s32.totalorder %s9, 32
    // Predicated region
    $region13: #{transformer_forward.10} parent=5 // pred_check
      %p145 = pneg %p144
    $region14: #{transformer_forward.10} parent=5 // pred_check_branch
      %147 = sbr.rel (%p145) target = $region16
    $region15: #{transformer_forward.10} parent=5 // pred_region
      // Predicated region
      $region17: #{transformer_forward.10} parent=15 // pred_check
        %p148 = pneg %p43
      $region18: #{transformer_forward.10} parent=15 // pred_check_branch
        %150 = sbr.rel (%p148) target = $region20
      $region19: #{transformer_forward.10} parent=15 // pred_region
        %s151 = smul.u32 2, %s17
        %p152 = scmp.lt.s32.totalorder %s16, 31
        %s153 = scalar_select %p152, %s16, 31
        %p154 = scmp.lt.s32.totalorder %s151, 1
        %s155 = scalar_select %p154, %s151, 1
        %s156 = smul.addr %s153, 2
        %s157 = sadd.s32 %s155, %s156
        %s158 = smul.addr %s157, 4
        %s159 = scalar_lea.vmem %s0, %s158
        %s160 = smul.u32 2, %s17
      $region20: #{transformer_forward.10} parent=15 // pred_fallthru
        _
      // Predicated region
      $region21: #{transformer_forward.10} parent=15 // pred_check
        %p161 = pneg %p69
      $region22: #{transformer_forward.10} parent=15 // pred_check_branch
        %163 = sbr.rel (%p161) target = $region24
      $region23: #{transformer_forward.10} parent=15 // pred_region
        %p164 = scmp.lt.s32.totalorder %s16, 31
        %s165 = scalar_select %p164, %s16, 31
        %s166 = smul.addr %s165, 4
        %s167 = smul.addr %s166, 4
        %s168 = scalar_lea.vmem %s1, %s167
      $region24: #{transformer_forward.10} parent=15 // pred_fallthru
        _
      // Predicated region
      $region25: #{transformer_forward.10} parent=15 // pred_check
        %p169 = pneg %p95
      $region26: #{transformer_forward.10} parent=15 // pred_check_branch
        %171 = sbr.rel (%p169) target = $region28
      $region27: #{transformer_forward.10} parent=15 // pred_region
        %p172 = scmp.lt.s32.totalorder %s16, 31
        %s173 = scalar_select %p172, %s16, 31
        %s174 = smul.addr %s173, 2
        %s175 = smul.addr %s174, 4
        %s176 = scalar_lea.vmem %s2, %s175
      $region28: #{transformer_forward.10} parent=15 // pred_fallthru
        _
    $region16: #{transformer_forward.10} parent=5 // pred_fallthru
      _
    %p177 = scmp.le.s32.totalorder 1, %s9
    %p178 = scmp.lt.s32.totalorder %s9, 33
    %p179 = pnand %p177, %p178
    %p180 = pneg %p179
    // Predicated region
    $region29: #{transformer_forward.10} parent=5 // pred_check
      _
    $region30: #{transformer_forward.10} parent=5 // pred_check_branch
      %182 = sbr.rel (%p179) target = $region32
    $region31: #{transformer_forward.10} parent=5 // pred_region
      %s183 = ssub.s32 %s9, 1
      %s184 = smul.u32 2, %s19
      %p185 = scmp.lt.s32.totalorder %s18, 31
      %s186 = scalar_select %p185, %s18, 31
      %p187 = scmp.lt.s32.totalorder %s184, 1
      %s188 = scalar_select %p187, %s184, 1
      %s189 = smul.addr %s186, 2
      %s190 = sadd.s32 %s188, %s189
      %s191 = smul.addr %s190, 4
      %s192 = scalar_lea.vmem %s0, %s191
      %p193 = pneg %p49
      %p194 = pneg %p46
      %p195 = scmp.lt.s32.totalorder %s18, 31
      %s196 = scalar_select %p195, %s18, 31
      %s197 = smul.addr %s196, 4
      %s198 = smul.addr %s197, 4
      %s199 = scalar_lea.vmem %s1, %s198
      %p200 = pneg %p75
      %p201 = pneg %p72
      %p202 = scmp.lt.s32.totalorder %s18, 31
      %s203 = scalar_select %p202, %s18, 31
      %s204 = smul.addr %s203, 2
      %s205 = smul.addr %s204, 4
      %s206 = scalar_lea.vmem %s2, %s205
      %p207 = pneg %p101
      %p208 = pneg %p98
      %p209 = pneg %p129
      %p210 = pneg %p126
      %s211 = smul.u32 2, %s19
      %p212 = scmp.lt.s32.totalorder %s18, 31
      %s213 = scalar_select %p212, %s18, 31
      %p214 = scmp.lt.s32.totalorder %s211, 1
      %s215 = scalar_select %p214, %s211, 1
      %s216 = smul.addr %s213, 2
      %s217 = sadd.s32 %s215, %s216
      %s218 = smul.addr %s217, 4
      %s219 = scalar_lea.vmem %s3, %s218
      %s220 = smul.u32 2, %s19
      %p221 = scmp.lt.s32.totalorder %s18, 31
      %s222 = scalar_select %p221, %s18, 31
      %p223 = scmp.lt.s32.totalorder %s220, 1
      %s224 = scalar_select %p223, %s220, 1
      %s225 = smul.addr %s222, 2
      %s226 = sadd.s32 %s224, %s225
      %s227 = smul.addr %s226, 4
      %s228 = scalar_lea.vmem %s0, %s227
      %s229 = smul.u32 2, %s19
      %p230 = scmp.lt.s32.totalorder %s18, 31
      %s231 = scalar_select %p230, %s18, 31
      %s232 = smul.addr %s231, 4
      %s233 = smul.addr %s232, 4
      %s234 = scalar_lea.vmem %s1, %s233
      %p235 = scmp.lt.s32.totalorder %s18, 31
      %s236 = scalar_select %p235, %s18, 31
      %s237 = smul.addr %s236, 2
      %s238 = smul.addr %s237, 4
      %s239 = scalar_lea.vmem %s2, %s238
      %s240 = smul.u32 2, %s19
      %p241 = scmp.lt.s32.totalorder %s18, 31
      %s242 = scalar_select %p241, %s18, 31
      %p243 = scmp.lt.s32.totalorder %s240, 1
      %s244 = scalar_select %p243, %s240, 1
      %s245 = smul.addr %s242, 2
      %s246 = sadd.s32 %s244, %s245
      %s247 = smul.addr %s246, 4
      %s248 = scalar_lea.vmem %s3, %s247
      %s249 = smul.u32 2, %s19
      %v251 = vld [vmem:[%s228] sm:$0xf]
      %v252 = vld [vmem:[%s228 + $0x4] sm:$0xf]
      %v253 = vld [vmem:[%s234] sm:$0xf]
      %v254 = vld [vmem:[%s234 + $0x4] sm:$0xf]
      %v255 = vld [vmem:[%s234 + $0x8] sm:$0xf]
      %v256 = vld [vmem:[%s234 + $0xc] sm:$0xf]
      %v259 = vunpack.c.l.b16 %v251
      %v260 = vunpack.c.l.b16 %v252
      %v261 = vpack.c.b16 %v260, %v259
      %v266 = vunpack.c.l.b16 %v253
      %v267 = vunpack.c.l.b16 %v254
      %v268 = vunpack.c.l.b16 %v255
      %v269 = vunpack.c.l.b16 %v256
      %v270 = vpack.c.b16 %v267, %v266
      %v271 = vpack.c.b16 %v269, %v268
      %vm274 = vcmask 261120
      %v276 = vsel %vm274, %v261, 0
      %278 = vmatprep.subr.bf16.mxu0 0
      %279 = vmatpush1.bf16.msra.mxu0 %v270
      %280 = vmatprep.subr.bf16.mxu0 0
      %281 = vmatpush1.bf16.msra.mxu0 %v271
      %282 = vmatprep.subr.bf16.mxu0 0
      %283 = vmatpush1.bf16.msra.mxu0 0
      %284 = vmatprep.subr.bf16.mxu0 0
      %285 = vmatpush1.bf16.msra.mxu0 0
      %286 = vmatprep.subr.bf16.mxu0 0
      %287 = vmatpush1.bf16.msra.mxu0 0
      %288 = vmatprep.subr.bf16.mxu0 0
      %289 = vmatpush1.bf16.msra.mxu0 0
      %290 = vmatprep.subr.bf16.mxu0 0
      %291 = vmatpush1.bf16.msra.mxu0 0
      %292 = vmatprep.subr.bf16.mxu0 0
      %293 = vmatpush1.bf16.msra.mxu0 0
      %294 = vmatprep.subr.bf16.mxu0 0
      %295 = vmatpush1.bf16.msra.mxu0 0
      %296 = vmatprep.subr.bf16.mxu0 0
      %297 = vmatpush1.bf16.msra.mxu0 0
      %298 = vmatprep.subr.bf16.mxu0 0
      %299 = vmatpush1.bf16.msra.mxu0 0
      %300 = vmatprep.subr.bf16.mxu0 0
      %301 = vmatpush1.bf16.msra.mxu0 0
      %302 = vmatprep.subr.bf16.mxu0 0
      %303 = vmatpush1.bf16.msra.mxu0 0
      %304 = vmatprep.subr.bf16.mxu0 0
      %305 = vmatpush1.bf16.msra.mxu0 0
      %306 = vmatprep.subr.bf16.mxu0 0
      %307 = vmatpush1.bf16.msra.mxu0 0
      %308 = vmatprep.subr.bf16.mxu0 0
      %309 = vmatpush1.bf16.msra.mxu0 0
      %310 = vmatprep.mubr.bf16.mxu0 0
      %311 = vmatmul.mubr.bf16.gmra.mrb[0].mxu0 %v276
      %v312 = vpop.f32.mrb[0].mxu0
      %v313 = vadd.f32 0.0, %v312
      %v314 = vpop.f32.mrb[0].mxu0
      %v315 = vpop.f32.mrb[0].mxu0
      %v316 = vadd.f32 0.0, %v315
      %v317 = vpop.f32.mrb[0].mxu0
      %318 = vdwg.mxu0
      %v319 = vmul.f32 %v313, 0.17677669
      %v320 = vmul.f32 %v316, 0.17677669
      %s321 = smul.u32 %s19, 16
      %v322 = vlaneseq
      %v323 = vshrl.u32 %v322, 7
      %v324 = vadd.s32 %v323, 8
      %v325 = vstv %s321
      %v326 = vadd.s32 %v325, %v323
      %v327 = vadd.s32 %v325, %v324
      %v328 = vlaneseq
      %v329 = vand.u32 %v328, 127
      %vm330 = vcmp.gt.s32.totalorder %v329, %v326
      %vm331 = vcmp.gt.s32.totalorder %v329, %v327
      %v332 = vsel %vm330, -1e+09, 0.0
      %v333 = vsel %vm331, -1e+09, 0.0
      %v334 = vadd.f32 %v319, %v332
      %v335 = vadd.f32 %v320, %v333
      %vm336 = vcmask 130048
      %v337 = vsel %vm336, %v334, -inf
      %338 = vmax.xlane.f32.xlu0 %v337
      %v339 = vpop.xlane.xlu0 %338
      %v340 = vsel %vm336, %v335, -inf
      %341 = vmax.xlane.f32.xlu0 %v340
      %v342 = vpop.xlane.xlu0 %341
      %v343 = vsub.f32 %v334, %v339
      %v344 = vsub.f32 %v335, %v342
      %v345 = vmul.f32 %v343, 1.442695
      %v346 = vpow.pop %v345
      %v347 = vmul.f32 %v344, 1.442695
      %v348 = vpow.pop %v347
      %v349 = vsel %vm336, %v346, 0.0
      %350 = vadd.xlane.f32.xlu0 %v349
      %v351 = vpop.xlane.xlu0 %350
      %v352 = vsel %vm336, %v348, 0.0
      %353 = vadd.xlane.f32.xlu0 %v352
      %v354 = vpop.xlane.xlu0 %353
      %v355 = vpack.c.bf16 %v348, %v346
      %v356 = vld [vmem:[%s239] sm:$0xf]
      %v357 = vld [vmem:[%s239 + $0x4] sm:$0xf]
      %v360 = vunpack.c.l.b16 %v356
      %v361 = vunpack.c.l.b16 %v357
      %v362 = vpack.c.b16 %v361, %v360
      %v365 = vsel %vm336, %v355, 0
      %367 = vmatprep.subr.bf16.mxu0 0
      %368 = vmatpush1.bf16.msra.mxu0 %v362
      %369 = vmatprep.subr.bf16.mxu0 0
      %370 = vmatpush1.bf16.msra.mxu0 0
      %371 = vmatprep.subr.bf16.mxu0 0
      %372 = vmatpush1.bf16.msra.mxu0 0
      %373 = vmatprep.subr.bf16.mxu0 0
      %374 = vmatpush1.bf16.msra.mxu0 0
      %375 = vmatprep.subr.bf16.mxu0 0
      %376 = vmatpush1.bf16.msra.mxu0 0
      %377 = vmatprep.subr.bf16.mxu0 0
      %378 = vmatpush1.bf16.msra.mxu0 0
      %379 = vmatprep.subr.bf16.mxu0 0
      %380 = vmatpush1.bf16.msra.mxu0 0
      %381 = vmatprep.subr.bf16.mxu0 0
      %382 = vmatpush1.bf16.msra.mxu0 0
      %383 = vmatprep.subr.bf16.mxu0 0
      %384 = vmatpush1.bf16.msra.mxu0 0
      %385 = vmatprep.subr.bf16.mxu0 0
      %386 = vmatpush1.bf16.msra.mxu0 0
      %387 = vmatprep.subr.bf16.mxu0 0
      %388 = vmatpush1.bf16.msra.mxu0 0
      %389 = vmatprep.subr.bf16.mxu0 0
      %390 = vmatpush1.bf16.msra.mxu0 0
      %391 = vmatprep.subr.bf16.mxu0 0
      %392 = vmatpush1.bf16.msra.mxu0 0
      %393 = vmatprep.subr.bf16.mxu0 0
      %394 = vmatpush1.bf16.msra.mxu0 0
      %395 = vmatprep.subr.bf16.mxu0 0
      %396 = vmatpush1.bf16.msra.mxu0 0
      %397 = vmatprep.subr.bf16.mxu0 0
      %398 = vmatpush1.bf16.msra.mxu0 0
      %399 = vmatprep.mubr.bf16.mxu0 0
      %400 = vmatmul.mubr.bf16.gmra.mrb[0].mxu0 %v365
      %v401 = vpop.f32.mrb[0].mxu0
      %v402 = vadd.f32 0.0, %v401
      %v403 = vpop.f32.mrb[0].mxu0
      %v404 = vpop.f32.mrb[0].mxu0
      %v405 = vadd.f32 0.0, %v404
      %v406 = vpop.f32.mrb[0].mxu0
      %407 = vdwg.mxu0
      %v408 = vrcp.pop %v351
      %v409 = vrcp.pop %v354
      %v410 = vmul.f32 %v402, %v408
      %v411 = vmul.f32 %v405, %v409
      %v412 = vpack.c.bf16 %v411, %v410
      %v414 = vunpack.c.l.b16 %v412
      %v415 = vunpack.c.h.b16 %v412
      %v416 = vpack.c.b16 %v414, %v414
      %v417 = vpack.c.b16 %v415, %v415
      %vm420 = vcmask 257024
      %421 = vst.msk [vmem:[%s248] sm:$0xf] %vm420, %v416
      %422 = vst.msk [vmem:[%s248 + $0x4] sm:$0xf] %vm420, %v417
      %s423 = smul.u32 2, %s19
      %p424 = scmp.lt.s32.totalorder %s18, 31
      %s425 = scalar_select %p424, %s18, 31
      %p426 = scmp.lt.s32.totalorder %s423, 1
      %s427 = scalar_select %p426, %s423, 1
      %s428 = smul.addr %s425, 2
      %s429 = sadd.s32 %s427, %s428
      %s430 = smul.addr %s429, 4
      %s431 = scalar_lea.vmem %s3, %s430
      // Predicated region
      $region33: #{transformer_forward.10} parent=31 // pred_check
        %p432 = pneg %p126
      $region34: #{transformer_forward.10} parent=31 // pred_check_branch
        %434 = sbr.rel (%p432) target = $region36
      $region35: #{transformer_forward.10} parent=31 // pred_region
        %s435 = smul.u32 2, %s19
      $region36: #{transformer_forward.10} parent=31 // pred_fallthru
        _
    $region32: #{transformer_forward.10} parent=5 // pred_fallthru
      _
    %p436 = scmp.le.s32.totalorder 2, %s9
    // Predicated region
    $region37: #{transformer_forward.10} parent=5 // pred_check
      %p437 = pneg %p436
    $region38: #{transformer_forward.10} parent=5 // pred_check_branch
      %439 = sbr.rel (%p437) target = $region40
    $region39: #{transformer_forward.10} parent=5 // pred_region
      %s440 = ssub.s32 %s9, 2
      // Predicated region
      $region41: #{transformer_forward.10} parent=39 // pred_check
        %p441 = pneg %p132
      $region42: #{transformer_forward.10} parent=39 // pred_check_branch
        %443 = sbr.rel (%p441) target = $region44
      $region43: #{transformer_forward.10} parent=39 // pred_region
        %s444 = smul.u32 2, %s21
        %p445 = scmp.lt.s32.totalorder %s20, 31
        %s446 = scalar_select %p445, %s20, 31
        %p447 = scmp.lt.s32.totalorder %s444, 1
        %s448 = scalar_select %p447, %s444, 1
        %s449 = smul.addr %s446, 2
        %s450 = sadd.s32 %s448, %s449
        %s451 = smul.addr %s450, 4
        %s452 = scalar_lea.vmem %s3, %s451
      $region44: #{transformer_forward.10} parent=39 // pred_fallthru
        _
    $region40: #{transformer_forward.10} parent=5 // pred_fallthru
      _
  $region6: #{transformer_forward.10} parent=0 // loop_footer
    %s13 = sadd.s32 1, %s9
  $region7: #{transformer_forward.10} parent=0 // loop_footer_branch
    %8 = sbr.rel target = $region3
  $region8: #{transformer_forward.10} parent=0 // loop_exit
    _

// kernel: transformer_forward.17
$region0: #{transformer_forward.17}
  #allocation0 [shape = 'u32[]', space=smem, size = 0x4, offset = 0x4, fixed_abs, tag = 'smem constant byte address 0x4 - core index']
  #allocation1 [shape = 'u32[144,128]{1,0:T(1,128)}', space=vmem, size = 0x12000, scoped, tag = 'internal scratch']
  #allocation2 [shape = 'f32[128,256]{1,0:T(8,128)}', space=vmem, size = 0x20000, scoped, tag = 'scratch operand']
  %s0 = inlined_call_operand.vmem [shape: bf16[128,128], index: 0, kind: input, shape index: {}]
  %s1 = inlined_call_operand.vmem [shape: bf16[128,256], index: 1, kind: input, shape index: {}]
  %s2 = inlined_call_operand.vmem [shape: f32[1,256], index: 2, kind: input, shape index: {}]
  %s3 = inlined_call_operand.hbm [shape: f32[128,256], index: 3, kind: output, shape index: {}]
  %s4 = sld [smem:[#allocation0]]
  $region30: #{transformer_forward.17} parent=0
    _
  %s6 = ssub.s32 1, %s4
  %s7 = scalar_select 0, %s6, %s4
  $region1: #{transformer_forward.17} parent=0
    #allocation3 [shape = 'u8[131072]{0}', space=vmem, size = 0x20000, scoped, tag = 'output window, operand 0, single buffered']
    #allocation4 [shape = 's32[1]{0}', space=sflag, size = 0x4, scoped, tag = 'scoped memory for transformer_forward.17']
    %8 = vsyncpa [#allocation4], 0
    // Predicated region
    $region2: #{transformer_forward.17} parent=1 // pred_check
      _
    $region3: #{transformer_forward.17} parent=1 // pred_check_branch
      %10 = sbr.rel (0) target = $region5
    $region4: #{transformer_forward.17} parent=1 // pred_region
      _
    $region5: #{transformer_forward.17} parent=1 // pred_fallthru
      _
    // Predicated region
    $region6: #{transformer_forward.17} parent=1 // pred_check
      _
    $region7: #{transformer_forward.17} parent=1 // pred_check_branch
      %12 = sbr.rel (0) target = $region9
    $region8: #{transformer_forward.17} parent=1 // pred_region
      _
    $region9: #{transformer_forward.17} parent=1 // pred_fallthru
      _
    // Predicated region
    $region10: #{transformer_forward.17} parent=1 // pred_check
      _
    $region11: #{transformer_forward.17} parent=1 // pred_check_branch
      %14 = sbr.rel (0) target = $region13
    $region12: #{transformer_forward.17} parent=1 // pred_region
      _
    $region13: #{transformer_forward.17} parent=1 // pred_fallthru
      _
    %p16 = scmp.eq.s32.totalorder 0, 0
    // Predicated region
    $region14: #{transformer_forward.17} parent=1 // pred_check
      %p17 = pneg %p16
    $region15: #{transformer_forward.17} parent=1 // pred_check_branch
      %19 = sbr.rel (%p17) target = $region17
    $region16: #{transformer_forward.17} parent=1 // pred_region
      %20 = vst [vmem:[#allocation2] sm:$0xff] 0.0
      %21 = vst [vmem:[#allocation2 + $0x8] sm:$0xff] 0.0
      %22 = vst [vmem:[#allocation2 + $0x10] sm:$0xff] 0.0
      %23 = vst [vmem:[#allocation2 + $0x18] sm:$0xff] 0.0
      %24 = vst [vmem:[#allocation2 + $0x20] sm:$0xff] 0.0
      %25 = vst [vmem:[#allocation2 + $0x28] sm:$0xff] 0.0
      %26 = vst [vmem:[#allocation2 + $0x30] sm:$0xff] 0.0
      %27 = vst [vmem:[#allocation2 + $0x38] sm:$0xff] 0.0
      %28 = vst [vmem:[#allocation2 + $0x40] sm:$0xff] 0.0
      %29 = vst [vmem:[#allocation2 + $0x48] sm:$0xff] 0.0
      %30 = vst [vmem:[#allocation2 + $0x50] sm:$0xff] 0.0
      %31 = vst [vmem:[#allocation2 + $0x58] sm:$0xff] 0.0
      %32 = vst [vmem:[#allocation2 + $0x60] sm:$0xff] 0.0
      %33 = vst [vmem:[#allocation2 + $0x68] sm:$0xff] 0.0
      %34 = vst [vmem:[#allocation2 + $0x70] sm:$0xff] 0.0
      %35 = vst [vmem:[#allocation2 + $0x78] sm:$0xff] 0.0
      %36 = vst [vmem:[#allocation2 + $0x80] sm:$0xff] 0.0
      %37 = vst [vmem:[#allocation2 + $0x88] sm:$0xff] 0.0
      %38 = vst [vmem:[#allocation2 + $0x90] sm:$0xff] 0.0
      %39 = vst [vmem:[#allocation2 + $0x98] sm:$0xff] 0.0
      %40 = vst [vmem:[#allocation2 + $0xa0] sm:$0xff] 0.0
      %41 = vst [vmem:[#allocation2 + $0xa8] sm:$0xff] 0.0
      %42 = vst [vmem:[#allocation2 + $0xb0] sm:$0xff] 0.0
      %43 = vst [vmem:[#allocation2 + $0xb8] sm:$0xff] 0.0
      %44 = vst [vmem:[#allocation2 + $0xc0] sm:$0xff] 0.0
      %45 = vst [vmem:[#allocation2 + $0xc8] sm:$0xff] 0.0
      %46 = vst [vmem:[#allocation2 + $0xd0] sm:$0xff] 0.0
      %47 = vst [vmem:[#allocation2 + $0xd8] sm:$0xff] 0.0
      %48 = vst [vmem:[#allocation2 + $0xe0] sm:$0xff] 0.0
      %49 = vst [vmem:[#allocation2 + $0xe8] sm:$0xff] 0.0
      %50 = vst [vmem:[#allocation2 + $0xf0] sm:$0xff] 0.0
      %51 = vst [vmem:[#allocation2 + $0xf8] sm:$0xff] 0.0
    $region17: #{transformer_forward.17} parent=1 // pred_fallthru
      _
    %v52 = vld [vmem:[#allocation2] sm:$0xff]
    %v53 = vld [vmem:[#allocation2 + $0x8] sm:$0xff]
    %v54 = vld [vmem:[#allocation2 + $0x10] sm:$0xff]
    %v55 = vld [vmem:[#allocation2 + $0x18] sm:$0xff]
    %v56 = vld [vmem:[#allocation2 + $0x20] sm:$0xff]
    %v57 = vld [vmem:[#allocation2 + $0x28] sm:$0xff]
    %v58 = vld [vmem:[#allocation2 + $0x30] sm:$0xff]
    %v59 = vld [vmem:[#allocation2 + $0x38] sm:$0xff]
    %v60 = vld [vmem:[#allocation2 + $0x40] sm:$0xff]
    %v61 = vld [vmem:[#allocation2 + $0x48] sm:$0xff]
    %v62 = vld [vmem:[#allocation2 + $0x50] sm:$0xff]
    %v63 = vld [vmem:[#allocation2 + $0x58] sm:$0xff]
    %v64 = vld [vmem:[#allocation2 + $0x60] sm:$0xff]
    %v65 = vld [vmem:[#allocation2 + $0x68] sm:$0xff]
    %v66 = vld [vmem:[#allocation2 + $0x70] sm:$0xff]
    %v67 = vld [vmem:[#allocation2 + $0x78] sm:$0xff]
    %v68 = vld [vmem:[#allocation2 + $0x80] sm:$0xff]
    %v69 = vld [vmem:[#allocation2 + $0x88] sm:$0xff]
    %v70 = vld [vmem:[#allocation2 + $0x90] sm:$0xff]
    %v71 = vld [vmem:[#allocation2 + $0x98] sm:$0xff]
    %v72 = vld [vmem:[#allocation2 + $0xa0] sm:$0xff]
    %v73 = vld [vmem:[#allocation2 + $0xa8] sm:$0xff]
    %v74 = vld [vmem:[#allocation2 + $0xb0] sm:$0xff]
    %v75 = vld [vmem:[#allocation2 + $0xb8] sm:$0xff]
    %v76 = vld [vmem:[#allocation2 + $0xc0] sm:$0xff]
    %v77 = vld [vmem:[#allocation2 + $0xc8] sm:$0xff]
    %v78 = vld [vmem:[#allocation2 + $0xd0] sm:$0xff]
    %v79 = vld [vmem:[#allocation2 + $0xd8] sm:$0xff]
    %v80 = vld [vmem:[#allocation2 + $0xe0] sm:$0xff]
    %v81 = vld [vmem:[#allocation2 + $0xe8] sm:$0xff]
    %v82 = vld [vmem:[#allocation2 + $0xf0] sm:$0xff]
    %v83 = vld [vmem:[#allocation2 + $0xf8] sm:$0xff]
    %v84 = vld [vmem:[%s0] sm:$0xf]
    %v85 = vld [vmem:[%s0 + $0x4] sm:$0xf]
    %v86 = vld [vmem:[%s0 + $0x8] sm:$0xf]
    %v87 = vld [vmem:[%s0 + $0xc] sm:$0xf]
    %v88 = vld [vmem:[%s0 + $0x10] sm:$0xf]
    %v89 = vld [vmem:[%s0 + $0x14] sm:$0xf]
    %v90 = vld [vmem:[%s0 + $0x18] sm:$0xf]
    %v91 = vld [vmem:[%s0 + $0x1c] sm:$0xf]
    %v92 = vld [vmem:[%s0 + $0x20] sm:$0xf]
    %v93 = vld [vmem:[%s0 + $0x24] sm:$0xf]
    %v94 = vld [vmem:[%s0 + $0x28] sm:$0xf]
    %v95 = vld [vmem:[%s0 + $0x2c] sm:$0xf]
    %v96 = vld [vmem:[%s0 + $0x30] sm:$0xf]
    %v97 = vld [vmem:[%s0 + $0x34] sm:$0xf]
    %v98 = vld [vmem:[%s0 + $0x38] sm:$0xf]
    %v99 = vld [vmem:[%s0 + $0x3c] sm:$0xf]
    %v100 = vld [vmem:[%s1] sm:$0xff]
    %v101 = vld [vmem:[%s1 + $0x8] sm:$0xff]
    %v102 = vld [vmem:[%s1 + $0x10] sm:$0xff]
    %v103 = vld [vmem:[%s1 + $0x18] sm:$0xff]
    %v104 = vld [vmem:[%s1 + $0x20] sm:$0xff]
    %v105 = vld [vmem:[%s1 + $0x28] sm:$0xff]
    %v106 = vld [vmem:[%s1 + $0x30] sm:$0xff]
    %v107 = vld [vmem:[%s1 + $0x38] sm:$0xff]
    %v108 = vld [vmem:[%s1 + $0x40] sm:$0xff]
    %v109 = vld [vmem:[%s1 + $0x48] sm:$0xff]
    %v110 = vld [vmem:[%s1 + $0x50] sm:$0xff]
    %v111 = vld [vmem:[%s1 + $0x58] sm:$0xff]
    %v112 = vld [vmem:[%s1 + $0x60] sm:$0xff]
    %v113 = vld [vmem:[%s1 + $0x68] sm:$0xff]
    %v114 = vld [vmem:[%s1 + $0x70] sm:$0xff]
    %v115 = vld [vmem:[%s1 + $0x78] sm:$0xff]
    %v132 = vunpack.c.l.b16 %v84
    %v133 = vunpack.c.l.b16 %v85
    %v134 = vunpack.c.l.b16 %v86
    %v135 = vunpack.c.l.b16 %v87
    %v136 = vunpack.c.l.b16 %v88
    %v137 = vunpack.c.l.b16 %v89
    %v138 = vunpack.c.l.b16 %v90
    %v139 = vunpack.c.l.b16 %v91
    %v140 = vunpack.c.l.b16 %v92
    %v141 = vunpack.c.l.b16 %v93
    %v142 = vunpack.c.l.b16 %v94
    %v143 = vunpack.c.l.b16 %v95
    %v144 = vunpack.c.l.b16 %v96
    %v145 = vunpack.c.l.b16 %v97
    %v146 = vunpack.c.l.b16 %v98
    %v147 = vunpack.c.l.b16 %v99
    %v148 = vpack.c.b16 %v133, %v132
    %v149 = vpack.c.b16 %v135, %v134
    %v150 = vpack.c.b16 %v137, %v136
    %v151 = vpack.c.b16 %v139, %v138
    %v152 = vpack.c.b16 %v141, %v140
    %v153 = vpack.c.b16 %v143, %v142
    %v154 = vpack.c.b16 %v145, %v144
    %v155 = vpack.c.b16 %v147, %v146
    %v180 = vunpack.c.l.b16 %v100
    %v181 = vunpack.c.h.b16 %v100
    %v182 = vunpack.c.l.b16 %v101
    %v183 = vunpack.c.h.b16 %v101
    %v184 = vunpack.c.l.b16 %v102
    %v185 = vunpack.c.h.b16 %v102
    %v186 = vunpack.c.l.b16 %v103
    %v187 = vunpack.c.h.b16 %v103
    %v188 = vunpack.c.l.b16 %v104
    %v189 = vunpack.c.h.b16 %v104
    %v190 = vunpack.c.l.b16 %v105
    %v191 = vunpack.c.h.b16 %v105
    %v192 = vunpack.c.l.b16 %v106
    %v193 = vunpack.c.h.b16 %v106
    %v194 = vunpack.c.l.b16 %v107
    %v195 = vunpack.c.h.b16 %v107
    %v196 = vunpack.c.l.b16 %v108
    %v197 = vunpack.c.h.b16 %v108
    %v198 = vunpack.c.l.b16 %v109
    %v199 = vunpack.c.h.b16 %v109
    %v200 = vunpack.c.l.b16 %v110
    %v201 = vunpack.c.h.b16 %v110
    %v202 = vunpack.c.l.b16 %v111
    %v203 = vunpack.c.h.b16 %v111
    %v204 = vunpack.c.l.b16 %v112
    %v205 = vunpack.c.h.b16 %v112
    %v206 = vunpack.c.l.b16 %v113
    %v207 = vunpack.c.h.b16 %v113
    %v208 = vunpack.c.l.b16 %v114
    %v209 = vunpack.c.h.b16 %v114
    %v210 = vunpack.c.l.b16 %v115
    %v211 = vunpack.c.h.b16 %v115
    %v212 = vpack.c.b16 %v182, %v180
    %v213 = vpack.c.b16 %v183, %v181
    %v214 = vpack.c.b16 %v186, %v184
    %v215 = vpack.c.b16 %v187, %v185
    %v216 = vpack.c.b16 %v190, %v188
    %v217 = vpack.c.b16 %v191, %v189
    %v218 = vpack.c.b16 %v194, %v192
    %v219 = vpack.c.b16 %v195, %v193
    %v220 = vpack.c.b16 %v198, %v196
    %v221 = vpack.c.b16 %v199, %v197
    %v222 = vpack.c.b16 %v202, %v200
    %v223 = vpack.c.b16 %v203, %v201
    %v224 = vpack.c.b16 %v206, %v204
    %v225 = vpack.c.b16 %v207, %v205
    %v226 = vpack.c.b16 %v210, %v208
    %v227 = vpack.c.b16 %v211, %v209
    %244 = vmatprep.subr.bf16.mxu0 %v213
    %245 = vmatpush1.bf16.msra.mxu0 %v212
    %246 = vmatprep.subr.bf16.mxu0 %v215
    %247 = vmatpush1.bf16.msra.mxu0 %v214
    %248 = vmatprep.subr.bf16.mxu0 %v217
    %249 = vmatpush1.bf16.msra.mxu0 %v216
    %250 = vmatprep.subr.bf16.mxu0 %v219
    %251 = vmatpush1.bf16.msra.mxu0 %v218
    %252 = vmatprep.subr.bf16.mxu0 %v221
    %253 = vmatpush1.bf16.msra.mxu0 %v220
    %254 = vmatprep.subr.bf16.mxu0 %v223
    %255 = vmatpush1.bf16.msra.mxu0 %v222
    %256 = vmatprep.subr.bf16.mxu0 %v225
    %257 = vmatpush1.bf16.msra.mxu0 %v224
    %258 = vmatprep.subr.bf16.mxu0 %v227
    %259 = vmatpush1.bf16.msra.mxu0 %v226
    %260 = vmatprep.subr.bf16.mxu0 0
    %261 = vmatpush1.bf16.msra.mxu0 0
    %262 = vmatprep.subr.bf16.mxu0 0
    %263 = vmatpush1.bf16.msra.mxu0 0
    %264 = vmatprep.subr.bf16.mxu0 0
    %265 = vmatpush1.bf16.msra.mxu0 0
    %266 = vmatprep.subr.bf16.mxu0 0
    %267 = vmatpush1.bf16.msra.mxu0 0
    %268 = vmatprep.subr.bf16.mxu0 0
    %269 = vmatpush1.bf16.msra.mxu0 0
    %270 = vmatprep.subr.bf16.mxu0 0
    %271 = vmatpush1.bf16.msra.mxu0 0
    %272 = vmatprep.subr.bf16.mxu0 0
    %273 = vmatpush1.bf16.msra.mxu0 0
    %274 = vmatprep.subr.bf16.mxu0 0
    %275 = vmatpush1.bf16.msra.mxu0 0
    %276 = vmatprep.mubr.bf16.mxu0 0
    %277 = vmatmul.mubr.bf16.gmra.mrb[0].mxu0 %v148
    %v278 = vpop.f32.mrb[0].mxu0
    %v279 = vadd.f32 0.0, %v278
    %v280 = vpop.f32.mrb[0].mxu0
    %v281 = vadd.f32 0.0, %v280
    %v282 = vpop.f32.mrb[0].mxu0
    %v283 = vadd.f32 0.0, %v282
    %v284 = vpop.f32.mrb[0].mxu0
    %v285 = vadd.f32 0.0, %v284
    %286 = vmatprep.mubr.bf16.mxu0 0
    %287 = vmatmul.mubr.bf16.gmra.mrb[0].mxu0 %v149
    %v288 = vpop.f32.mrb[0].mxu0
    %v289 = vadd.f32 0.0, %v288
    %v290 = vpop.f32.mrb[0].mxu0
    %v291 = vadd.f32 0.0, %v290
    %v292 = vpop.f32.mrb[0].mxu0
    %v293 = vadd.f32 0.0, %v292
    %v294 = vpop.f32.mrb[0].mxu0
    %v295 = vadd.f32 0.0, %v294
    %296 = vmatprep.mubr.bf16.mxu0 0
    %297 = vmatmul.mubr.bf16.gmra.mrb[0].mxu0 %v150
    %v298 = vpop.f32.mrb[0].mxu0
    %v299 = vadd.f32 0.0, %v298
    %v300 = vpop.f32.mrb[0].mxu0
    %v301 = vadd.f32 0.0, %v300
    %v302 = vpop.f32.mrb[0].mxu0
    %v303 = vadd.f32 0.0, %v302
    %v304 = vpop.f32.mrb[0].mxu0
    %v305 = vadd.f32 0.0, %v304
    %306 = vmatprep.mubr.bf16.mxu0 0
    %307 = vmatmul.mubr.bf16.gmra.mrb[0].mxu0 %v151
    %v308 = vpop.f32.mrb[0].mxu0
    %v309 = vadd.f32 0.0, %v308
    %v310 = vpop.f32.mrb[0].mxu0
    %v311 = vadd.f32 0.0, %v310
    %v312 = vpop.f32.mrb[0].mxu0
    %v313 = vadd.f32 0.0, %v312
    %v314 = vpop.f32.mrb[0].mxu0
    %v315 = vadd.f32 0.0, %v314
    %316 = vmatprep.mubr.bf16.mxu0 0
    %317 = vmatmul.mubr.bf16.gmra.mrb[0].mxu0 %v152
    %v318 = vpop.f32.mrb[0].mxu0
    %v319 = vadd.f32 0.0, %v318
    %v320 = vpop.f32.mrb[0].mxu0
    %v321 = vadd.f32 0.0, %v320
    %v322 = vpop.f32.mrb[0].mxu0
    %v323 = vadd.f32 0.0, %v322
    %v324 = vpop.f32.mrb[0].mxu0
    %v325 = vadd.f32 0.0, %v324
    %326 = vmatprep.mubr.bf16.mxu0 0
    %327 = vmatmul.mubr.bf16.gmra.mrb[0].mxu0 %v153
    %v328 = vpop.f32.mrb[0].mxu0
    %v329 = vadd.f32 0.0, %v328
    %v330 = vpop.f32.mrb[0].mxu0
    %v331 = vadd.f32 0.0, %v330
    %v332 = vpop.f32.mrb[0].mxu0
    %v333 = vadd.f32 0.0, %v332
    %v334 = vpop.f32.mrb[0].mxu0
    %v335 = vadd.f32 0.0, %v334
    %336 = vmatprep.mubr.bf16.mxu0 0
    %337 = vmatmul.mubr.bf16.gmra.mrb[0].mxu0 %v154
    %v338 = vpop.f32.mrb[0].mxu0
    %v339 = vadd.f32 0.0, %v338
    %v340 = vpop.f32.mrb[0].mxu0
    %v341 = vadd.f32 0.0, %v340
    %v342 = vpop.f32.mrb[0].mxu0
    %v343 = vadd.f32 0.0, %v342
    %v344 = vpop.f32.mrb[0].mxu0
    %v345 = vadd.f32 0.0, %v344
    %346 = vmatprep.mubr.bf16.mxu0 0
    %347 = vmatmul.mubr.bf16.gmra.mrb[0].mxu0 %v155
    %v348 = vpop.f32.mrb[0].mxu0
    %v349 = vadd.f32 0.0, %v348
    %v350 = vpop.f32.mrb[0].mxu0
    %v351 = vadd.f32 0.0, %v350
    %v352 = vpop.f32.mrb[0].mxu0
    %v353 = vadd.f32 0.0, %v352
    %v354 = vpop.f32.mrb[0].mxu0
    %v355 = vadd.f32 0.0, %v354
    %356 = vdwg.mxu0
    %v357 = vadd.f32 %v52, %v279
    %v358 = vadd.f32 %v53, %v281
    %v359 = vadd.f32 %v54, %v283
    %v360 = vadd.f32 %v55, %v285
    %v361 = vadd.f32 %v56, %v289
    %v362 = vadd.f32 %v57, %v291
    %v363 = vadd.f32 %v58, %v293
    %v364 = vadd.f32 %v59, %v295
    %v365 = vadd.f32 %v60, %v299
    %v366 = vadd.f32 %v61, %v301
    %v367 = vadd.f32 %v62, %v303
    %v368 = vadd.f32 %v63, %v305
    %v369 = vadd.f32 %v64, %v309
    %v370 = vadd.f32 %v65, %v311
    %v371 = vadd.f32 %v66, %v313
    %v372 = vadd.f32 %v67, %v315
    %v373 = vadd.f32 %v68, %v319
    %v374 = vadd.f32 %v69, %v321
    %v375 = vadd.f32 %v70, %v323
    %v376 = vadd.f32 %v71, %v325
    %v377 = vadd.f32 %v72, %v329
    %v378 = vadd.f32 %v73, %v331
    %v379 = vadd.f32 %v74, %v333
    %v380 = vadd.f32 %v75, %v335
    %v381 = vadd.f32 %v76, %v339
    %v382 = vadd.f32 %v77, %v341
    %v383 = vadd.f32 %v78, %v343
    %v384 = vadd.f32 %v79, %v345
    %v385 = vadd.f32 %v80, %v349
    %v386 = vadd.f32 %v81, %v351
    %v387 = vadd.f32 %v82, %v353
    %v388 = vadd.f32 %v83, %v355
    %389 = vst [vmem:[#allocation2] sm:$0xff] %v357
    %390 = vst [vmem:[#allocation2 + $0x8] sm:$0xff] %v358
    %391 = vst [vmem:[#allocation2 + $0x10] sm:$0xff] %v359
    %392 = vst [vmem:[#allocation2 + $0x18] sm:$0xff] %v360
    %393 = vst [vmem:[#allocation2 + $0x20] sm:$0xff] %v361
    %394 = vst [vmem:[#allocation2 + $0x28] sm:$0xff] %v362
    %395 = vst [vmem:[#allocation2 + $0x30] sm:$0xff] %v363
    %396 = vst [vmem:[#allocation2 + $0x38] sm:$0xff] %v364
    %397 = vst [vmem:[#allocation2 + $0x40] sm:$0xff] %v365
    %398 = vst [vmem:[#allocation2 + $0x48] sm:$0xff] %v366
    %399 = vst [vmem:[#allocation2 + $0x50] sm:$0xff] %v367
    %400 = vst [vmem:[#allocation2 + $0x58] sm:$0xff] %v368
    %401 = vst [vmem:[#allocation2 + $0x60] sm:$0xff] %v369
    %402 = vst [vmem:[#allocation2 + $0x68] sm:$0xff] %v370
    %403 = vst [vmem:[#allocation2 + $0x70] sm:$0xff] %v371
    %404 = vst [vmem:[#allocation2 + $0x78] sm:$0xff] %v372
    %405 = vst [vmem:[#allocation2 + $0x80] sm:$0xff] %v373
    %406 = vst [vmem:[#allocation2 + $0x88] sm:$0xff] %v374
    %407 = vst [vmem:[#allocation2 + $0x90] sm:$0xff] %v375
    %408 = vst [vmem:[#allocation2 + $0x98] sm:$0xff] %v376
    %409 = vst [vmem:[#allocation2 + $0xa0] sm:$0xff] %v377
    %410 = vst [vmem:[#allocation2 + $0xa8] sm:$0xff] %v378
    %411 = vst [vmem:[#allocation2 + $0xb0] sm:$0xff] %v379
    %412 = vst [vmem:[#allocation2 + $0xb8] sm:$0xff] %v380
    %413 = vst [vmem:[#allocation2 + $0xc0] sm:$0xff] %v381
    %414 = vst [vmem:[#allocation2 + $0xc8] sm:$0xff] %v382
    %415 = vst [vmem:[#allocation2 + $0xd0] sm:$0xff] %v383
    %416 = vst [vmem:[#allocation2 + $0xd8] sm:$0xff] %v384
    %417 = vst [vmem:[#allocation2 + $0xe0] sm:$0xff] %v385
    %418 = vst [vmem:[#allocation2 + $0xe8] sm:$0xff] %v386
    %419 = vst [vmem:[#allocation2 + $0xf0] sm:$0xff] %v387
    %420 = vst [vmem:[#allocation2 + $0xf8] sm:$0xff] %v388
    // Predicated region
    $region18: #{transformer_forward.17} parent=1 // pred_check
      %p421 = pneg %p16
    $region19: #{transformer_forward.17} parent=1 // pred_check_branch
      %423 = sbr.rel (%p421) target = $region21
    $region20: #{transformer_forward.17} parent=1 // pred_region
      %v424 = vld [vmem:[#allocation2] sm:$0xff]
      %v425 = vld [vmem:[#allocation2 + $0x8] sm:$0xff]
      %v426 = vld [vmem:[#allocation2 + $0x10] sm:$0xff]
      %v427 = vld [vmem:[#allocation2 + $0x18] sm:$0xff]
      %v428 = vld [vmem:[#allocation2 + $0x20] sm:$0xff]
      %v429 = vld [vmem:[#allocation2 + $0x28] sm:$0xff]
      %v430 = vld [vmem:[#allocation2 + $0x30] sm:$0xff]
      %v431 = vld [vmem:[#allocation2 + $0x38] sm:$0xff]
      %v432 = vld [vmem:[#allocation2 + $0x40] sm:$0xff]
      %v433 = vld [vmem:[#allocation2 + $0x48] sm:$0xff]
      %v434 = vld [vmem:[#allocation2 + $0x50] sm:$0xff]
      %v435 = vld [vmem:[#allocation2 + $0x58] sm:$0xff]
      %v436 = vld [vmem:[#allocation2 + $0x60] sm:$0xff]
      %v437 = vld [vmem:[#allocation2 + $0x68] sm:$0xff]
      %v438 = vld [vmem:[#allocation2 + $0x70] sm:$0xff]
      %v439 = vld [vmem:[#allocation2 + $0x78] sm:$0xff]
      %v440 = vld [vmem:[#allocation2 + $0x80] sm:$0xff]
      %v441 = vld [vmem:[#allocation2 + $0x88] sm:$0xff]
      %v442 = vld [vmem:[#allocation2 + $0x90] sm:$0xff]
      %v443 = vld [vmem:[#allocation2 + $0x98] sm:$0xff]
      %v444 = vld [vmem:[#allocation2 + $0xa0] sm:$0xff]
      %v445 = vld [vmem:[#allocation2 + $0xa8] sm:$0xff]
      %v446 = vld [vmem:[#allocation2 + $0xb0] sm:$0xff]
      %v447 = vld [vmem:[#allocation2 + $0xb8] sm:$0xff]
      %v448 = vld [vmem:[#allocation2 + $0xc0] sm:$0xff]
      %v449 = vld [vmem:[#allocation2 + $0xc8] sm:$0xff]
      %v450 = vld [vmem:[#allocation2 + $0xd0] sm:$0xff]
      %v451 = vld [vmem:[#allocation2 + $0xd8] sm:$0xff]
      %v452 = vld [vmem:[#allocation2 + $0xe0] sm:$0xff]
      %v453 = vld [vmem:[#allocation2 + $0xe8] sm:$0xff]
      %v454 = vld [vmem:[#allocation2 + $0xf0] sm:$0xff]
      %v455 = vld [vmem:[#allocation2 + $0xf8] sm:$0xff]
      %v456 = vld [vmem:[%s2] sm:$0x3]
      %v458 = vlaneseq
      %v459 = vshrl.u32 %v458, 7
      %v460 = vsub.s32 0, %v459
      %v461 = vrot.slane %v456, %v460
      %v462 = vlaneseq
      %v463 = vshrl.u32 %v462, 7
      %v464 = vsub.s32 1, %v463
      %v465 = vrot.slane %v456, %v464
      %v468 = vadd.f32 %v424, %v461
      %v469 = vadd.f32 %v425, %v465
      %v470 = vadd.f32 %v426, %v461
      %v471 = vadd.f32 %v427, %v465
      %v472 = vadd.f32 %v428, %v461
      %v473 = vadd.f32 %v429, %v465
      %v474 = vadd.f32 %v430, %v461
      %v475 = vadd.f32 %v431, %v465
      %v476 = vadd.f32 %v432, %v461
      %v477 = vadd.f32 %v433, %v465
      %v478 = vadd.f32 %v434, %v461
      %v479 = vadd.f32 %v435, %v465
      %v480 = vadd.f32 %v436, %v461
      %v481 = vadd.f32 %v437, %v465
      %v482 = vadd.f32 %v438, %v461
      %v483 = vadd.f32 %v439, %v465
      %v484 = vadd.f32 %v440, %v461
      %v485 = vadd.f32 %v441, %v465
      %v486 = vadd.f32 %v442, %v461
      %v487 = vadd.f32 %v443, %v465
      %v488 = vadd.f32 %v444, %v461
      %v489 = vadd.f32 %v445, %v465
      %v490 = vadd.f32 %v446, %v461
      %v491 = vadd.f32 %v447, %v465
      %v492 = vadd.f32 %v448, %v461
      %v493 = vadd.f32 %v449, %v465
      %v494 = vadd.f32 %v450, %v461
      %v495 = vadd.f32 %v451, %v465
      %v496 = vadd.f32 %v452, %v461
      %v497 = vadd.f32 %v453, %v465
      %v498 = vadd.f32 %v454, %v461
      %v499 = vadd.f32 %v455, %v465
      %500 = vst [vmem:[#allocation3] sm:$0xff] %v468
      %501 = vst [vmem:[#allocation3 + $0x8] sm:$0xff] %v469
      %502 = vst [vmem:[#allocation3 + $0x10] sm:$0xff] %v470
      %503 = vst [vmem:[#allocation3 + $0x18] sm:$0xff] %v471
      %504 = vst [vmem:[#allocation3 + $0x20] sm:$0xff] %v472
      %505 = vst [vmem:[#allocation3 + $0x28] sm:$0xff] %v473
      %506 = vst [vmem:[#allocation3 + $0x30] sm:$0xff] %v474
      %507 = vst [vmem:[#allocation3 + $0x38] sm:$0xff] %v475
      %508 = vst [vmem:[#allocation3 + $0x40] sm:$0xff] %v476
      %509 = vst [vmem:[#allocation3 + $0x48] sm:$0xff] %v477
      %510 = vst [vmem:[#allocation3 + $0x50] sm:$0xff] %v478
      %511 = vst [vmem:[#allocation3 + $0x58] sm:$0xff] %v479
      %512 = vst [vmem:[#allocation3 + $0x60] sm:$0xff] %v480
      %513 = vst [vmem:[#allocation3 + $0x68] sm:$0xff] %v481
      %514 = vst [vmem:[#allocation3 + $0x70] sm:$0xff] %v482
      %515 = vst [vmem:[#allocation3 + $0x78] sm:$0xff] %v483
      %516 = vst [vmem:[#allocation3 + $0x80] sm:$0xff] %v484
      %517 = vst [vmem:[#allocation3 + $0x88] sm:$0xff] %v485
      %518 = vst [vmem:[#allocation3 + $0x90] sm:$0xff] %v486
      %519 = vst [vmem:[#allocation3 + $0x98] sm:$0xff] %v487
      %520 = vst [vmem:[#allocation3 + $0xa0] sm:$0xff] %v488
      %521 = vst [vmem:[#allocation3 + $0xa8] sm:$0xff] %v489
      %522 = vst [vmem:[#allocation3 + $0xb0] sm:$0xff] %v490
      %523 = vst [vmem:[#allocation3 + $0xb8] sm:$0xff] %v491
      %524 = vst [vmem:[#allocation3 + $0xc0] sm:$0xff] %v492
      %525 = vst [vmem:[#allocation3 + $0xc8] sm:$0xff] %v493
      %526 = vst [vmem:[#allocation3 + $0xd0] sm:$0xff] %v494
      %527 = vst [vmem:[#allocation3 + $0xd8] sm:$0xff] %v495
      %528 = vst [vmem:[#allocation3 + $0xe0] sm:$0xff] %v496
      %529 = vst [vmem:[#allocation3 + $0xe8] sm:$0xff] %v497
      %530 = vst [vmem:[#allocation3 + $0xf0] sm:$0xff] %v498
      %531 = vst [vmem:[#allocation3 + $0xf8] sm:$0xff] %v499
    $region21: #{transformer_forward.17} parent=1 // pred_fallthru
      _
    // Predicated region
    $region22: #{transformer_forward.17} parent=1 // pred_check
      _
    $region23: #{transformer_forward.17} parent=1 // pred_check_branch
      %533 = sbr.rel (0) target = $region25
    $region24: #{transformer_forward.17} parent=1 // pred_region
      %s535 = ssub.s32 4096, 4096
      %536 = vsyncadd [#allocation4], %s535
      %s537 = sshll.u32 [#allocation3], 4
      %s538 = int_to_ptr.vmem [resolvable:$true] %s537
      %543 = dma.vmem_to_hbm [thread:$0]  %s538, 4096, %s3, [#allocation4], 256, 256, 16
    $region25: #{transformer_forward.17} parent=1 // pred_fallthru
      _
    // Predicated region
    $region26: #{transformer_forward.17} parent=1 // pred_check
      _
    $region27: #{transformer_forward.17} parent=1 // pred_check_branch
      %545 = sbr.rel (0) target = $region29
    $region28: #{transformer_forward.17} parent=1 // pred_region
      %546 = dma.done [#allocation4], 4096
    $region29: #{transformer_forward.17} parent=1 // pred_fallthru
      _
    %547 = vsyncpa [#allocation4], 1

// kernel: transformer_forward.11
$region0: #{transformer_forward.11}
  #allocation0 [shape = 'u32[]', space=smem, size = 0x4, offset = 0x4, fixed_abs, tag = 'smem constant byte address 0x4 - core index']
  #allocation1 [shape = 'u32[144,128]{1,0:T(1,128)}', space=vmem, size = 0x12000, scoped, tag = 'internal scratch']
  #allocation2 [shape = 'f32[128,128]{1,0:T(8,128)}', space=vmem, size = 0x10000, scoped, tag = 'scratch operand']
  %s0 = inlined_call_operand.vmem [shape: bf16[128,128], index: 0, kind: input, shape index: {}]
  %s1 = inlined_call_operand.vmem [shape: bf16[128,128], index: 1, kind: input, shape index: {}]
  %s2 = inlined_call_operand.vmem [shape: f32[1,128], index: 2, kind: input, shape index: {}]
  %s3 = inlined_call_operand.vmem [shape: bf16[128,128], index: 3, kind: input, shape index: {}]
  %s4 = inlined_call_operand.vmem [shape: f32[1,128], index: 4, kind: input, shape index: {}]
  %s5 = inlined_call_operand.vmem [shape: f32[1,128], index: 5, kind: input, shape index: {}]
  %s6 = inlined_call_operand.vmem [shape: bf16[128,128], index: 6, kind: output, shape index: {}]
  %s7 = sld [smem:[#allocation0]]
  $region42: #{transformer_forward.11} parent=0
    _
  %s9 = ssub.s32 1, %s7
  %s10 = scalar_select 0, %s9, %s7
  // Predicated region
  $region2: #{transformer_forward.11} parent=0 // pred_check
    _
  $region3: #{transformer_forward.11} parent=0 // pred_check_branch
    %12 = sbr.rel (0) target = $region5
  $region4: #{transformer_forward.11} parent=0 // pred_region
    _
  $region5: #{transformer_forward.11} parent=0 // pred_fallthru
    _
  // Predicated region
  $region6: #{transformer_forward.11} parent=0 // pred_check
    _
  $region7: #{transformer_forward.11} parent=0 // pred_check_branch
    %14 = sbr.rel (0) target = $region9
  $region8: #{transformer_forward.11} parent=0 // pred_region
    _
  $region9: #{transformer_forward.11} parent=0 // pred_fallthru
    _
  // Predicated region
  $region10: #{transformer_forward.11} parent=0 // pred_check
    _
  $region11: #{transformer_forward.11} parent=0 // pred_check_branch
    %16 = sbr.rel (0) target = $region13
  $region12: #{transformer_forward.11} parent=0 // pred_region
    _
  $region13: #{transformer_forward.11} parent=0 // pred_fallthru
    _
  // Predicated region
  $region14: #{transformer_forward.11} parent=0 // pred_check
    _
  $region15: #{transformer_forward.11} parent=0 // pred_check_branch
    %18 = sbr.rel (0) target = $region17
  $region16: #{transformer_forward.11} parent=0 // pred_region
    _
  $region17: #{transformer_forward.11} parent=0 // pred_fallthru
    _
  // Predicated region
  $region18: #{transformer_forward.11} parent=0 // pred_check
    _
  $region19: #{transformer_forward.11} parent=0 // pred_check_branch
    %20 = sbr.rel (0) target = $region21
  $region20: #{transformer_forward.11} parent=0 // pred_region
    _
  $region21: #{transformer_forward.11} parent=0 // pred_fallthru
    _
  // Predicated region
  $region22: #{transformer_forward.11} parent=0 // pred_check
    _
  $region23: #{transformer_forward.11} parent=0 // pred_check_branch
    %22 = sbr.rel (0) target = $region25
  $region24: #{transformer_forward.11} parent=0 // pred_region
    _
  $region25: #{transformer_forward.11} parent=0 // pred_fallthru
    _
  %p24 = scmp.eq.s32.totalorder 0, 0
  // Predicated region
  $region26: #{transformer_forward.11} parent=0 // pred_check
    %p25 = pneg %p24
  $region27: #{transformer_forward.11} parent=0 // pred_check_branch
    %27 = sbr.rel (%p25) target = $region29
  $region28: #{transformer_forward.11} parent=0 // pred_region
    %28 = vst [vmem:[#allocation2] sm:$0xff] 0.0
    %29 = vst [vmem:[#allocation2 + $0x8] sm:$0xff] 0.0
    %30 = vst [vmem:[#allocation2 + $0x10] sm:$0xff] 0.0
    %31 = vst [vmem:[#allocation2 + $0x18] sm:$0xff] 0.0
    %32 = vst [vmem:[#allocation2 + $0x20] sm:$0xff] 0.0
    %33 = vst [vmem:[#allocation2 + $0x28] sm:$0xff] 0.0
    %34 = vst [vmem:[#allocation2 + $0x30] sm:$0xff] 0.0
    %35 = vst [vmem:[#allocation2 + $0x38] sm:$0xff] 0.0
    %36 = vst [vmem:[#allocation2 + $0x40] sm:$0xff] 0.0
    %37 = vst [vmem:[#allocation2 + $0x48] sm:$0xff] 0.0
    %38 = vst [vmem:[#allocation2 + $0x50] sm:$0xff] 0.0
    %39 = vst [vmem:[#allocation2 + $0x58] sm:$0xff] 0.0
    %40 = vst [vmem:[#allocation2 + $0x60] sm:$0xff] 0.0
    %41 = vst [vmem:[#allocation2 + $0x68] sm:$0xff] 0.0
    %42 = vst [vmem:[#allocation2 + $0x70] sm:$0xff] 0.0
    %43 = vst [vmem:[#allocation2 + $0x78] sm:$0xff] 0.0
  $region29: #{transformer_forward.11} parent=0 // pred_fallthru
    _
  %v44 = vld [vmem:[#allocation2] sm:$0xff]
  %v45 = vld [vmem:[#allocation2 + $0x8] sm:$0xff]
  %v46 = vld [vmem:[#allocation2 + $0x10] sm:$0xff]
  %v47 = vld [vmem:[#allocation2 + $0x18] sm:$0xff]
  %v48 = vld [vmem:[#allocation2 + $0x20] sm:$0xff]
  %v49 = vld [vmem:[#allocation2 + $0x28] sm:$0xff]
  %v50 = vld [vmem:[#allocation2 + $0x30] sm:$0xff]
  %v51 = vld [vmem:[#allocation2 + $0x38] sm:$0xff]
  %v52 = vld [vmem:[#allocation2 + $0x40] sm:$0xff]
  %v53 = vld [vmem:[#allocation2 + $0x48] sm:$0xff]
  %v54 = vld [vmem:[#allocation2 + $0x50] sm:$0xff]
  %v55 = vld [vmem:[#allocation2 + $0x58] sm:$0xff]
  %v56 = vld [vmem:[#allocation2 + $0x60] sm:$0xff]
  %v57 = vld [vmem:[#allocation2 + $0x68] sm:$0xff]
  %v58 = vld [vmem:[#allocation2 + $0x70] sm:$0xff]
  %v59 = vld [vmem:[#allocation2 + $0x78] sm:$0xff]
  %v60 = vld [vmem:[%s0] sm:$0xf]
  %v61 = vld [vmem:[%s0 + $0x4] sm:$0xf]
  %v62 = vld [vmem:[%s0 + $0x8] sm:$0xf]
  %v63 = vld [vmem:[%s0 + $0xc] sm:$0xf]
  %v64 = vld [vmem:[%s0 + $0x10] sm:$0xf]
  %v65 = vld [vmem:[%s0 + $0x14] sm:$0xf]
  %v66 = vld [vmem:[%s0 + $0x18] sm:$0xf]
  %v67 = vld [vmem:[%s0 + $0x1c] sm:$0xf]
  %v68 = vld [vmem:[%s0 + $0x20] sm:$0xf]
  %v69 = vld [vmem:[%s0 + $0x24] sm:$0xf]
  %v70 = vld [vmem:[%s0 + $0x28] sm:$0xf]
  %v71 = vld [vmem:[%s0 + $0x2c] sm:$0xf]
  %v72 = vld [vmem:[%s0 + $0x30] sm:$0xf]
  %v73 = vld [vmem:[%s0 + $0x34] sm:$0xf]
  %v74 = vld [vmem:[%s0 + $0x38] sm:$0xf]
  %v75 = vld [vmem:[%s0 + $0x3c] sm:$0xf]
  %v76 = vld [vmem:[%s1] sm:$0xf]
  %v77 = vld [vmem:[%s1 + $0x4] sm:$0xf]
  %v78 = vld [vmem:[%s1 + $0x8] sm:$0xf]
  %v79 = vld [vmem:[%s1 + $0xc] sm:$0xf]
  %v80 = vld [vmem:[%s1 + $0x10] sm:$0xf]
  %v81 = vld [vmem:[%s1 + $0x14] sm:$0xf]
  %v82 = vld [vmem:[%s1 + $0x18] sm:$0xf]
  %v83 = vld [vmem:[%s1 + $0x1c] sm:$0xf]
  %v84 = vld [vmem:[%s1 + $0x20] sm:$0xf]
  %v85 = vld [vmem:[%s1 + $0x24] sm:$0xf]
  %v86 = vld [vmem:[%s1 + $0x28] sm:$0xf]
  %v87 = vld [vmem:[%s1 + $0x2c] sm:$0xf]
  %v88 = vld [vmem:[%s1 + $0x30] sm:$0xf]
  %v89 = vld [vmem:[%s1 + $0x34] sm:$0xf]
  %v90 = vld [vmem:[%s1 + $0x38] sm:$0xf]
  %v91 = vld [vmem:[%s1 + $0x3c] sm:$0xf]
  %v108 = vunpack.c.l.b16 %v60
  %v109 = vunpack.c.l.b16 %v61
  %v110 = vunpack.c.l.b16 %v62
  %v111 = vunpack.c.l.b16 %v63
  %v112 = vunpack.c.l.b16 %v64
  %v113 = vunpack.c.l.b16 %v65
  %v114 = vunpack.c.l.b16 %v66
  %v115 = vunpack.c.l.b16 %v67
  %v116 = vunpack.c.l.b16 %v68
  %v117 = vunpack.c.l.b16 %v69
  %v118 = vunpack.c.l.b16 %v70
  %v119 = vunpack.c.l.b16 %v71
  %v120 = vunpack.c.l.b16 %v72
  %v121 = vunpack.c.l.b16 %v73
  %v122 = vunpack.c.l.b16 %v74
  %v123 = vunpack.c.l.b16 %v75
  %v124 = vpack.c.b16 %v109, %v108
  %v125 = vpack.c.b16 %v111, %v110
  %v126 = vpack.c.b16 %v113, %v112
  %v127 = vpack.c.b16 %v115, %v114
  %v128 = vpack.c.b16 %v117, %v116
  %v129 = vpack.c.b16 %v119, %v118
  %v130 = vpack.c.b16 %v121, %v120
  %v131 = vpack.c.b16 %v123, %v122
  %v156 = vunpack.c.l.b16 %v76
  %v157 = vunpack.c.l.b16 %v77
  %v158 = vunpack.c.l.b16 %v78
  %v159 = vunpack.c.l.b16 %v79
  %v160 = vunpack.c.l.b16 %v80
  %v161 = vunpack.c.l.b16 %v81
  %v162 = vunpack.c.l.b16 %v82
  %v163 = vunpack.c.l.b16 %v83
  %v164 = vunpack.c.l.b16 %v84
  %v165 = vunpack.c.l.b16 %v85
  %v166 = vunpack.c.l.b16 %v86
  %v167 = vunpack.c.l.b16 %v87
  %v168 = vunpack.c.l.b16 %v88
  %v169 = vunpack.c.l.b16 %v89
  %v170 = vunpack.c.l.b16 %v90
  %v171 = vunpack.c.l.b16 %v91
  %v172 = vpack.c.b16 %v157, %v156
  %v173 = vpack.c.b16 %v159, %v158
  %v174 = vpack.c.b16 %v161, %v160
  %v175 = vpack.c.b16 %v163, %v162
  %v176 = vpack.c.b16 %v165, %v164
  %v177 = vpack.c.b16 %v167, %v166
  %v178 = vpack.c.b16 %v169, %v168
  %v179 = vpack.c.b16 %v171, %v170
  %188 = vmatprep.subr.bf16.mxu0 0
  %189 = vmatpush1.bf16.msra.mxu0 %v172
  %190 = vmatprep.subr.bf16.mxu0 0
  %191 = vmatpush1.bf16.msra.mxu0 %v173
  %192 = vmatprep.subr.bf16.mxu0 0
  %193 = vmatpush1.bf16.msra.mxu0 %v174
  %194 = vmatprep.subr.bf16.mxu0 0
  %195 = vmatpush1.bf16.msra.mxu0 %v175
  %196 = vmatprep.subr.bf16.mxu0 0
  %197 = vmatpush1.bf16.msra.mxu0 %v176
  %198 = vmatprep.subr.bf16.mxu0 0
  %199 = vmatpush1.bf16.msra.mxu0 %v177
  %200 = vmatprep.subr.bf16.mxu0 0
  %201 = vmatpush1.bf16.msra.mxu0 %v178
  %202 = vmatprep.subr.bf16.mxu0 0
  %203 = vmatpush1.bf16.msra.mxu0 %v179
  %204 = vmatprep.subr.bf16.mxu0 0
  %205 = vmatpush1.bf16.msra.mxu0 0
  %206 = vmatprep.subr.bf16.mxu0 0
  %207 = vmatpush1.bf16.msra.mxu0 0
  %208 = vmatprep.subr.bf16.mxu0 0
  %209 = vmatpush1.bf16.msra.mxu0 0
  %210 = vmatprep.subr.bf16.mxu0 0
  %211 = vmatpush1.bf16.msra.mxu0 0
  %212 = vmatprep.subr.bf16.mxu0 0
  %213 = vmatpush1.bf16.msra.mxu0 0
  %214 = vmatprep.subr.bf16.mxu0 0
  %215 = vmatpush1.bf16.msra.mxu0 0
  %216 = vmatprep.subr.bf16.mxu0 0
  %217 = vmatpush1.bf16.msra.mxu0 0
  %218 = vmatprep.subr.bf16.mxu0 0
  %219 = vmatpush1.bf16.msra.mxu0 0
  %220 = vmatprep.mubr.bf16.mxu0 0
  %221 = vmatmul.mubr.bf16.gmra.mrb[0].mxu0 %v124
  %v222 = vpop.f32.mrb[0].mxu0
  %v223 = vadd.f32 0.0, %v222
  %v224 = vpop.f32.mrb[0].mxu0
  %v225 = vpop.f32.mrb[0].mxu0
  %v226 = vadd.f32 0.0, %v225
  %v227 = vpop.f32.mrb[0].mxu0
  %228 = vmatprep.mubr.bf16.mxu0 0
  %229 = vmatmul.mubr.bf16.gmra.mrb[0].mxu0 %v125
  %v230 = vpop.f32.mrb[0].mxu0
  %v231 = vadd.f32 0.0, %v230
  %v232 = vpop.f32.mrb[0].mxu0
  %v233 = vpop.f32.mrb[0].mxu0
  %v234 = vadd.f32 0.0, %v233
  %v235 = vpop.f32.mrb[0].mxu0
  %236 = vmatprep.mubr.bf16.mxu0 0
  %237 = vmatmul.mubr.bf16.gmra.mrb[0].mxu0 %v126
  %v238 = vpop.f32.mrb[0].mxu0
  %v239 = vadd.f32 0.0, %v238
  %v240 = vpop.f32.mrb[0].mxu0
  %v241 = vpop.f32.mrb[0].mxu0
  %v242 = vadd.f32 0.0, %v241
  %v243 = vpop.f32.mrb[0].mxu0
  %244 = vmatprep.mubr.bf16.mxu0 0
  %245 = vmatmul.mubr.bf16.gmra.mrb[0].mxu0 %v127
  %v246 = vpop.f32.mrb[0].mxu0
  %v247 = vadd.f32 0.0, %v246
  %v248 = vpop.f32.mrb[0].mxu0
  %v249 = vpop.f32.mrb[0].mxu0
  %v250 = vadd.f32 0.0, %v249
  %v251 = vpop.f32.mrb[0].mxu0
  %252 = vmatprep.mubr.bf16.mxu0 0
  %253 = vmatmul.mubr.bf16.gmra.mrb[0].mxu0 %v128
  %v254 = vpop.f32.mrb[0].mxu0
  %v255 = vadd.f32 0.0, %v254
  %v256 = vpop.f32.mrb[0].mxu0
  %v257 = vpop.f32.mrb[0].mxu0
  %v258 = vadd.f32 0.0, %v257
  %v259 = vpop.f32.mrb[0].mxu0
  %260 = vmatprep.mubr.bf16.mxu0 0
  %261 = vmatmul.mubr.bf16.gmra.mrb[0].mxu0 %v129
  %v262 = vpop.f32.mrb[0].mxu0
  %v263 = vadd.f32 0.0, %v262
  %v264 = vpop.f32.mrb[0].mxu0
  %v265 = vpop.f32.mrb[0].mxu0
  %v266 = vadd.f32 0.0, %v265
  %v267 = vpop.f32.mrb[0].mxu0
  %268 = vmatprep.mubr.bf16.mxu0 0
  %269 = vmatmul.mubr.bf16.gmra.mrb[0].mxu0 %v130
  %v270 = vpop.f32.mrb[0].mxu0
  %v271 = vadd.f32 0.0, %v270
  %v272 = vpop.f32.mrb[0].mxu0
  %v273 = vpop.f32.mrb[0].mxu0
  %v274 = vadd.f32 0.0, %v273
  %v275 = vpop.f32.mrb[0].mxu0
  %276 = vmatprep.mubr.bf16.mxu0 0
  %277 = vmatmul.mubr.bf16.gmra.mrb[0].mxu0 %v131
  %v278 = vpop.f32.mrb[0].mxu0
  %v279 = vadd.f32 0.0, %v278
  %v280 = vpop.f32.mrb[0].mxu0
  %v281 = vpop.f32.mrb[0].mxu0
  %v282 = vadd.f32 0.0, %v281
  %v283 = vpop.f32.mrb[0].mxu0
  %284 = vdwg.mxu0
  %v285 = vadd.f32 %v44, %v223
  %v286 = vadd.f32 %v45, %v226
  %v287 = vadd.f32 %v46, %v231
  %v288 = vadd.f32 %v47, %v234
  %v289 = vadd.f32 %v48, %v239
  %v290 = vadd.f32 %v49, %v242
  %v291 = vadd.f32 %v50, %v247
  %v292 = vadd.f32 %v51, %v250
  %v293 = vadd.f32 %v52, %v255
  %v294 = vadd.f32 %v53, %v258
  %v295 = vadd.f32 %v54, %v263
  %v296 = vadd.f32 %v55, %v266
  %v297 = vadd.f32 %v56, %v271
  %v298 = vadd.f32 %v57, %v274
  %v299 = vadd.f32 %v58, %v279
  %v300 = vadd.f32 %v59, %v282
  %301 = vst [vmem:[#allocation2] sm:$0xff] %v285
  %302 = vst [vmem:[#allocation2 + $0x8] sm:$0xff] %v286
  %303 = vst [vmem:[#allocation2 + $0x10] sm:$0xff] %v287
  %304 = vst [vmem:[#allocation2 + $0x18] sm:$0xff] %v288
  %305 = vst [vmem:[#allocation2 + $0x20] sm:$0xff] %v289
  %306 = vst [vmem:[#allocation2 + $0x28] sm:$0xff] %v290
  %307 = vst [vmem:[#allocation2 + $0x30] sm:$0xff] %v291
  %308 = vst [vmem:[#allocation2 + $0x38] sm:$0xff] %v292
  %309 = vst [vmem:[#allocation2 + $0x40] sm:$0xff] %v293
  %310 = vst [vmem:[#allocation2 + $0x48] sm:$0xff] %v294
  %311 = vst [vmem:[#allocation2 + $0x50] sm:$0xff] %v295
  %312 = vst [vmem:[#allocation2 + $0x58] sm:$0xff] %v296
  %313 = vst [vmem:[#allocation2 + $0x60] sm:$0xff] %v297
  %314 = vst [vmem:[#allocation2 + $0x68] sm:$0xff] %v298
  %315 = vst [vmem:[#allocation2 + $0x70] sm:$0xff] %v299
  %316 = vst [vmem:[#allocation2 + $0x78] sm:$0xff] %v300
  // Predicated region
  $region30: #{transformer_forward.11} parent=0 // pred_check
    %p317 = pneg %p24
  $region31: #{transformer_forward.11} parent=0 // pred_check_branch
    %319 = sbr.rel (%p317) target = $region33
  $region32: #{transformer_forward.11} parent=0 // pred_region
    %v320 = vld [vmem:[#allocation2] sm:$0xff]
    %v321 = vld [vmem:[#allocation2 + $0x8] sm:$0xff]
    %v322 = vld [vmem:[#allocation2 + $0x10] sm:$0xff]
    %v323 = vld [vmem:[#allocation2 + $0x18] sm:$0xff]
    %v324 = vld [vmem:[#allocation2 + $0x20] sm:$0xff]
    %v325 = vld [vmem:[#allocation2 + $0x28] sm:$0xff]
    %v326 = vld [vmem:[#allocation2 + $0x30] sm:$0xff]
    %v327 = vld [vmem:[#allocation2 + $0x38] sm:$0xff]
    %v328 = vld [vmem:[#allocation2 + $0x40] sm:$0xff]
    %v329 = vld [vmem:[#allocation2 + $0x48] sm:$0xff]
    %v330 = vld [vmem:[#allocation2 + $0x50] sm:$0xff]
    %v331 = vld [vmem:[#allocation2 + $0x58] sm:$0xff]
    %v332 = vld [vmem:[#allocation2 + $0x60] sm:$0xff]
    %v333 = vld [vmem:[#allocation2 + $0x68] sm:$0xff]
    %v334 = vld [vmem:[#allocation2 + $0x70] sm:$0xff]
    %v335 = vld [vmem:[#allocation2 + $0x78] sm:$0xff]
    %v336 = vld [vmem:[%s2] sm:$0x1]
    %v338 = vlaneseq
    %v339 = vshrl.u32 %v338, 7
    %v340 = vsub.s32 0, %v339
    %v341 = vrot.slane %v336, %v340
    %v343 = vadd.f32 %v320, %v341
    %v344 = vadd.f32 %v321, %v341
    %v345 = vadd.f32 %v322, %v341
    %v346 = vadd.f32 %v323, %v341
    %v347 = vadd.f32 %v324, %v341
    %v348 = vadd.f32 %v325, %v341
    %v349 = vadd.f32 %v326, %v341
    %v350 = vadd.f32 %v327, %v341
    %v351 = vadd.f32 %v328, %v341
    %v352 = vadd.f32 %v329, %v341
    %v353 = vadd.f32 %v330, %v341
    %v354 = vadd.f32 %v331, %v341
    %v355 = vadd.f32 %v332, %v341
    %v356 = vadd.f32 %v333, %v341
    %v357 = vadd.f32 %v334, %v341
    %v358 = vadd.f32 %v335, %v341
    %v359 = vld [vmem:[%s3] sm:$0xf]
    %v360 = vld [vmem:[%s3 + $0x4] sm:$0xf]
    %v361 = vld [vmem:[%s3 + $0x8] sm:$0xf]
    %v362 = vld [vmem:[%s3 + $0xc] sm:$0xf]
    %v363 = vld [vmem:[%s3 + $0x10] sm:$0xf]
    %v364 = vld [vmem:[%s3 + $0x14] sm:$0xf]
    %v365 = vld [vmem:[%s3 + $0x18] sm:$0xf]
    %v366 = vld [vmem:[%s3 + $0x1c] sm:$0xf]
    %v367 = vld [vmem:[%s3 + $0x20] sm:$0xf]
    %v368 = vld [vmem:[%s3 + $0x24] sm:$0xf]
    %v369 = vld [vmem:[%s3 + $0x28] sm:$0xf]
    %v370 = vld [vmem:[%s3 + $0x2c] sm:$0xf]
    %v371 = vld [vmem:[%s3 + $0x30] sm:$0xf]
    %v372 = vld [vmem:[%s3 + $0x34] sm:$0xf]
    %v373 = vld [vmem:[%s3 + $0x38] sm:$0xf]
    %v374 = vld [vmem:[%s3 + $0x3c] sm:$0xf]
    %v375 = vunpack.c.l.bf16 %v359
    %v376 = vunpack.c.l.bf16 %v360
    %v377 = vunpack.c.l.bf16 %v361
    %v378 = vunpack.c.l.bf16 %v362
    %v379 = vunpack.c.l.bf16 %v363
    %v380 = vunpack.c.l.bf16 %v364
    %v381 = vunpack.c.l.bf16 %v365
    %v382 = vunpack.c.l.bf16 %v366
    %v383 = vunpack.c.l.bf16 %v367
    %v384 = vunpack.c.l.bf16 %v368
    %v385 = vunpack.c.l.bf16 %v369
    %v386 = vunpack.c.l.bf16 %v370
    %v387 = vunpack.c.l.bf16 %v371
    %v388 = vunpack.c.l.bf16 %v372
    %v389 = vunpack.c.l.bf16 %v373
    %v390 = vunpack.c.l.bf16 %v374
    %v391 = vadd.f32 %v343, %v375
    %v392 = vadd.f32 %v344, %v376
    %v393 = vadd.f32 %v345, %v377
    %v394 = vadd.f32 %v346, %v378
    %v395 = vadd.f32 %v347, %v379
    %v396 = vadd.f32 %v348, %v380
    %v397 = vadd.f32 %v349, %v381
    %v398 = vadd.f32 %v350, %v382
    %v399 = vadd.f32 %v351, %v383
    %v400 = vadd.f32 %v352, %v384
    %v401 = vadd.f32 %v353, %v385
    %v402 = vadd.f32 %v354, %v386
    %v403 = vadd.f32 %v355, %v387
    %v404 = vadd.f32 %v356, %v388
    %v405 = vadd.f32 %v357, %v389
    %v406 = vadd.f32 %v358, %v390
    %407 = vadd.xlane.f32.xlu0 %v391
    %v408 = vpop.xlane.xlu0 %407
    %409 = vadd.xlane.f32.xlu0 %v392
    %v410 = vpop.xlane.xlu0 %409
    %411 = vadd.xlane.f32.xlu0 %v393
    %v412 = vpop.xlane.xlu0 %411
    %413 = vadd.xlane.f32.xlu0 %v394
    %v414 = vpop.xlane.xlu0 %413
    %415 = vadd.xlane.f32.xlu0 %v395
    %v416 = vpop.xlane.xlu0 %415
    %417 = vadd.xlane.f32.xlu0 %v396
    %v418 = vpop.xlane.xlu0 %417
    %419 = vadd.xlane.f32.xlu0 %v397
    %v420 = vpop.xlane.xlu0 %419
    %421 = vadd.xlane.f32.xlu0 %v398
    %v422 = vpop.xlane.xlu0 %421
    %423 = vadd.xlane.f32.xlu0 %v399
    %v424 = vpop.xlane.xlu0 %423
    %425 = vadd.xlane.f32.xlu0 %v400
    %v426 = vpop.xlane.xlu0 %425
    %427 = vadd.xlane.f32.xlu0 %v401
    %v428 = vpop.xlane.xlu0 %427
    %429 = vadd.xlane.f32.xlu0 %v402
    %v430 = vpop.xlane.xlu0 %429
    %431 = vadd.xlane.f32.xlu0 %v403
    %v432 = vpop.xlane.xlu0 %431
    %433 = vadd.xlane.f32.xlu0 %v404
    %v434 = vpop.xlane.xlu0 %433
    %435 = vadd.xlane.f32.xlu0 %v405
    %v436 = vpop.xlane.xlu0 %435
    %437 = vadd.xlane.f32.xlu0 %v406
    %v438 = vpop.xlane.xlu0 %437
    %v439 = vrcp.pop 128.0
    %v440 = vmul.f32 %v408, %v439
    %v441 = vmul.f32 %v410, %v439
    %v442 = vmul.f32 %v412, %v439
    %v443 = vmul.f32 %v414, %v439
    %v444 = vmul.f32 %v416, %v439
    %v445 = vmul.f32 %v418, %v439
    %v446 = vmul.f32 %v420, %v439
    %v447 = vmul.f32 %v422, %v439
    %v448 = vmul.f32 %v424, %v439
    %v449 = vmul.f32 %v426, %v439
    %v450 = vmul.f32 %v428, %v439
    %v451 = vmul.f32 %v430, %v439
    %v452 = vmul.f32 %v432, %v439
    %v453 = vmul.f32 %v434, %v439
    %v454 = vmul.f32 %v436, %v439
    %v455 = vmul.f32 %v438, %v439
    %v456 = vsub.f32 %v391, %v440
    %v457 = vsub.f32 %v392, %v441
    %v458 = vsub.f32 %v393, %v442
    %v459 = vsub.f32 %v394, %v443
    %v460 = vsub.f32 %v395, %v444
    %v461 = vsub.f32 %v396, %v445
    %v462 = vsub.f32 %v397, %v446
    %v463 = vsub.f32 %v398, %v447
    %v464 = vsub.f32 %v399, %v448
    %v465 = vsub.f32 %v400, %v449
    %v466 = vsub.f32 %v401, %v450
    %v467 = vsub.f32 %v402, %v451
    %v468 = vsub.f32 %v403, %v452
    %v469 = vsub.f32 %v404, %v453
    %v470 = vsub.f32 %v405, %v454
    %v471 = vsub.f32 %v406, %v455
    %v472 = vmul.f32 %v456, %v456
    %v473 = vmul.f32 %v457, %v457
    %v474 = vmul.f32 %v458, %v458
    %v475 = vmul.f32 %v459, %v459
    %v476 = vmul.f32 %v460, %v460
    %v477 = vmul.f32 %v461, %v461
    %v478 = vmul.f32 %v462, %v462
    %v479 = vmul.f32 %v463, %v463
    %v480 = vmul.f32 %v464, %v464
    %v481 = vmul.f32 %v465, %v465
    %v482 = vmul.f32 %v466, %v466
    %v483 = vmul.f32 %v467, %v467
    %v484 = vmul.f32 %v468, %v468
    %v485 = vmul.f32 %v469, %v469
    %v486 = vmul.f32 %v470, %v470
    %v487 = vmul.f32 %v471, %v471
    %488 = vadd.xlane.f32.xlu0 %v472
    %v489 = vpop.xlane.xlu0 %488
    %490 = vadd.xlane.f32.xlu0 %v473
    %v491 = vpop.xlane.xlu0 %490
    %492 = vadd.xlane.f32.xlu0 %v474
    %v493 = vpop.xlane.xlu0 %492
    %494 = vadd.xlane.f32.xlu0 %v475
    %v495 = vpop.xlane.xlu0 %494
    %496 = vadd.xlane.f32.xlu0 %v476
    %v497 = vpop.xlane.xlu0 %496
    %498 = vadd.xlane.f32.xlu0 %v477
    %v499 = vpop.xlane.xlu0 %498
    %500 = vadd.xlane.f32.xlu0 %v478
    %v501 = vpop.xlane.xlu0 %500
    %502 = vadd.xlane.f32.xlu0 %v479
    %v503 = vpop.xlane.xlu0 %502
    %504 = vadd.xlane.f32.xlu0 %v480
    %v505 = vpop.xlane.xlu0 %504
    %506 = vadd.xlane.f32.xlu0 %v481
    %v507 = vpop.xlane.xlu0 %506
    %508 = vadd.xlane.f32.xlu0 %v482
    %v509 = vpop.xlane.xlu0 %508
    %510 = vadd.xlane.f32.xlu0 %v483
    %v511 = vpop.xlane.xlu0 %510
    %512 = vadd.xlane.f32.xlu0 %v484
    %v513 = vpop.xlane.xlu0 %512
    %514 = vadd.xlane.f32.xlu0 %v485
    %v515 = vpop.xlane.xlu0 %514
    %516 = vadd.xlane.f32.xlu0 %v486
    %v517 = vpop.xlane.xlu0 %516
    %518 = vadd.xlane.f32.xlu0 %v487
    %v519 = vpop.xlane.xlu0 %518
    %v520 = vmul.f32 %v489, %v439
    %v521 = vmul.f32 %v491, %v439
    %v522 = vmul.f32 %v493, %v439
    %v523 = vmul.f32 %v495, %v439
    %v524 = vmul.f32 %v497, %v439
    %v525 = vmul.f32 %v499, %v439
    %v526 = vmul.f32 %v501, %v439
    %v527 = vmul.f32 %v503, %v439
    %v528 = vmul.f32 %v505, %v439
    %v529 = vmul.f32 %v507, %v439
    %v530 = vmul.f32 %v509, %v439
    %v531 = vmul.f32 %v511, %v439
    %v532 = vmul.f32 %v513, %v439
    %v533 = vmul.f32 %v515, %v439
    %v534 = vmul.f32 %v517, %v439
    %v535 = vmul.f32 %v519, %v439
    %v536 = vadd.f32 %v520, 1e-05
    %v537 = vadd.f32 %v521, 1e-05
    %v538 = vadd.f32 %v522, 1e-05
    %v539 = vadd.f32 %v523, 1e-05
    %v540 = vadd.f32 %v524, 1e-05
    %v541 = vadd.f32 %v525, 1e-05
    %v542 = vadd.f32 %v526, 1e-05
    %v543 = vadd.f32 %v527, 1e-05
    %v544 = vadd.f32 %v528, 1e-05
    %v545 = vadd.f32 %v529, 1e-05
    %v546 = vadd.f32 %v530, 1e-05
    %v547 = vadd.f32 %v531, 1e-05
    %v548 = vadd.f32 %v532, 1e-05
    %v549 = vadd.f32 %v533, 1e-05
    %v550 = vadd.f32 %v534, 1e-05
    %v551 = vadd.f32 %v535, 1e-05
    %v552 = vrsqrt.pop %v536
    %v553 = vrsqrt.pop %v537
    %v554 = vrsqrt.pop %v538
    %v555 = vrsqrt.pop %v539
    %v556 = vrsqrt.pop %v540
    %v557 = vrsqrt.pop %v541
    %v558 = vrsqrt.pop %v542
    %v559 = vrsqrt.pop %v543
    %v560 = vrsqrt.pop %v544
    %v561 = vrsqrt.pop %v545
    %v562 = vrsqrt.pop %v546
    %v563 = vrsqrt.pop %v547
    %v564 = vrsqrt.pop %v548
    %v565 = vrsqrt.pop %v549
    %v566 = vrsqrt.pop %v550
    %v567 = vrsqrt.pop %v551
    %v568 = vmul.f32 %v456, %v552
    %v569 = vmul.f32 %v457, %v553
    %v570 = vmul.f32 %v458, %v554
    %v571 = vmul.f32 %v459, %v555
    %v572 = vmul.f32 %v460, %v556
    %v573 = vmul.f32 %v461, %v557
    %v574 = vmul.f32 %v462, %v558
    %v575 = vmul.f32 %v463, %v559
    %v576 = vmul.f32 %v464, %v560
    %v577 = vmul.f32 %v465, %v561
    %v578 = vmul.f32 %v466, %v562
    %v579 = vmul.f32 %v467, %v563
    %v580 = vmul.f32 %v468, %v564
    %v581 = vmul.f32 %v469, %v565
    %v582 = vmul.f32 %v470, %v566
    %v583 = vmul.f32 %v471, %v567
    %v584 = vld [vmem:[%s4] sm:$0x1]
    %v586 = vlaneseq
    %v587 = vshrl.u32 %v586, 7
    %v588 = vsub.s32 0, %v587
    %v589 = vrot.slane %v584, %v588
    %v591 = vmul.f32 %v568, %v589
    %v592 = vmul.f32 %v569, %v589
    %v593 = vmul.f32 %v570, %v589
    %v594 = vmul.f32 %v571, %v589
    %v595 = vmul.f32 %v572, %v589
    %v596 = vmul.f32 %v573, %v589
    %v597 = vmul.f32 %v574, %v589
    %v598 = vmul.f32 %v575, %v589
    %v599 = vmul.f32 %v576, %v589
    %v600 = vmul.f32 %v577, %v589
    %v601 = vmul.f32 %v578, %v589
    %v602 = vmul.f32 %v579, %v589
    %v603 = vmul.f32 %v580, %v589
    %v604 = vmul.f32 %v581, %v589
    %v605 = vmul.f32 %v582, %v589
    %v606 = vmul.f32 %v583, %v589
    %v607 = vld [vmem:[%s5] sm:$0x1]
    %v609 = vlaneseq
    %v610 = vshrl.u32 %v609, 7
    %v611 = vsub.s32 0, %v610
    %v612 = vrot.slane %v607, %v611
    %v614 = vadd.f32 %v591, %v612
    %v615 = vadd.f32 %v592, %v612
    %v616 = vadd.f32 %v593, %v612
    %v617 = vadd.f32 %v594, %v612
    %v618 = vadd.f32 %v595, %v612
    %v619 = vadd.f32 %v596, %v612
    %v620 = vadd.f32 %v597, %v612
    %v621 = vadd.f32 %v598, %v612
    %v622 = vadd.f32 %v599, %v612
    %v623 = vadd.f32 %v600, %v612
    %v624 = vadd.f32 %v601, %v612
    %v625 = vadd.f32 %v602, %v612
    %v626 = vadd.f32 %v603, %v612
    %v627 = vadd.f32 %v604, %v612
    %v628 = vadd.f32 %v605, %v612
    %v629 = vadd.f32 %v606, %v612
    %v630 = vpack.c.bf16 %v615, %v614
    %v631 = vpack.c.bf16 %v617, %v616
    %v632 = vpack.c.bf16 %v619, %v618
    %v633 = vpack.c.bf16 %v621, %v620
    %v634 = vpack.c.bf16 %v623, %v622
    %v635 = vpack.c.bf16 %v625, %v624
    %v636 = vpack.c.bf16 %v627, %v626
    %v637 = vpack.c.bf16 %v629, %v628
    %v646 = vunpack.c.l.b16 %v630
    %v647 = vunpack.c.h.b16 %v630
    %v648 = vunpack.c.l.b16 %v631
    %v649 = vunpack.c.h.b16 %v631
    %v650 = vunpack.c.l.b16 %v632
    %v651 = vunpack.c.h.b16 %v632
    %v652 = vunpack.c.l.b16 %v633
    %v653 = vunpack.c.h.b16 %v633
    %v654 = vunpack.c.l.b16 %v634
    %v655 = vunpack.c.h.b16 %v634
    %v656 = vunpack.c.l.b16 %v635
    %v657 = vunpack.c.h.b16 %v635
    %v658 = vunpack.c.l.b16 %v636
    %v659 = vunpack.c.h.b16 %v636
    %v660 = vunpack.c.l.b16 %v637
    %v661 = vunpack.c.h.b16 %v637
    %v662 = vpack.c.b16 %v646, %v646
    %v663 = vpack.c.b16 %v647, %v647
    %v664 = vpack.c.b16 %v648, %v648
    %v665 = vpack.c.b16 %v649, %v649
    %v666 = vpack.c.b16 %v650, %v650
    %v667 = vpack.c.b16 %v651, %v651
    %v668 = vpack.c.b16 %v652, %v652
    %v669 = vpack.c.b16 %v653, %v653
    %v670 = vpack.c.b16 %v654, %v654
    %v671 = vpack.c.b16 %v655, %v655
    %v672 = vpack.c.b16 %v656, %v656
    %v673 = vpack.c.b16 %v657, %v657
    %v674 = vpack.c.b16 %v658, %v658
    %v675 = vpack.c.b16 %v659, %v659
    %v676 = vpack.c.b16 %v660, %v660
    %v677 = vpack.c.b16 %v661, %v661
    %694 = vst [vmem:[%s6] sm:$0xf] %v662
    %695 = vst [vmem:[%s6 + $0x4] sm:$0xf] %v663
    %696 = vst [vmem:[%s6 + $0x8] sm:$0xf] %v664
    %697 = vst [vmem:[%s6 + $0xc] sm:$0xf] %v665
    %698 = vst [vmem:[%s6 + $0x10] sm:$0xf] %v666
    %699 = vst [vmem:[%s6 + $0x14] sm:$0xf] %v667
    %700 = vst [vmem:[%s6 + $0x18] sm:$0xf] %v668
    %701 = vst [vmem:[%s6 + $0x1c] sm:$0xf] %v669
    %702 = vst [vmem:[%s6 + $0x20] sm:$0xf] %v670
    %703 = vst [vmem:[%s6 + $0x24] sm:$0xf] %v671
    %704 = vst [vmem:[%s6 + $0x28] sm:$0xf] %v672
    %705 = vst [vmem:[%s6 + $0x2c] sm:$0xf] %v673
    %706 = vst [vmem:[%s6 + $0x30] sm:$0xf] %v674
    %707 = vst [vmem:[%s6 + $0x34] sm:$0xf] %v675
    %708 = vst [vmem:[%s6 + $0x38] sm:$0xf] %v676
    %709 = vst [vmem:[%s6 + $0x3c] sm:$0xf] %v677
  $region33: #{transformer_forward.11} parent=0 // pred_fallthru
    _
  // Predicated region
  $region34: #{transformer_forward.11} parent=0 // pred_check
    _
  $region35: #{transformer_forward.11} parent=0 // pred_check_branch
    %711 = sbr.rel (0) target = $region37
  $region36: #{transformer_forward.11} parent=0 // pred_region
    _
  $region37: #{transformer_forward.11} parent=0 // pred_fallthru
    _
  // Predicated region
  $region38: #{transformer_forward.11} parent=0 // pred_check
    _
  $region39: #{transformer_forward.11} parent=0 // pred_check_branch
    %713 = sbr.rel (0) target = $region41
  $region40: #{transformer_forward.11} parent=0 // pred_region
    _
  $region41: #{transformer_forward.11} parent=0 // pred_fallthru
    _

// kernel: transformer_forward.12
$region0: #{transformer_forward.12}
  #allocation0 [shape = 'u32[]', space=smem, size = 0x4, offset = 0x4, fixed_abs, tag = 'smem constant byte address 0x4 - core index']
  #allocation1 [shape = 'u32[144,128]{1,0:T(1,128)}', space=vmem, size = 0x12000, scoped, tag = 'internal scratch']
  %s0 = inlined_call_operand.vmem [shape: bf16[128,128], index: 0, kind: input, shape index: {}]
  %s1 = inlined_call_operand.vmem [shape: bf16[128,256], index: 1, kind: input, shape index: {}]
  %s2 = inlined_call_operand.vmem [shape: f32[1,256], index: 2, kind: input, shape index: {}]
  %s3 = inlined_call_operand.vmem [shape: bf16[256,128], index: 3, kind: input, shape index: {}]
  %s4 = inlined_call_operand.vmem [shape: f32[1,128], index: 4, kind: input, shape index: {}]
  %s5 = inlined_call_operand.vmem [shape: f32[1,128], index: 5, kind: input, shape index: {}]
  %s6 = inlined_call_operand.vmem [shape: f32[1,128], index: 6, kind: input, shape index: {}]
  %s7 = inlined_call_operand.vmem [shape: bf16[128,128], index: 7, kind: output, shape index: {}]
  %s8 = sld [smem:[#allocation0]]
  $region38: #{transformer_forward.12} parent=0
    _
  %s10 = ssub.s32 1, %s8
  %s11 = scalar_select 0, %s10, %s8
  // Predicated region
  $region2: #{transformer_forward.12} parent=0 // pred_check
    _
  $region3: #{transformer_forward.12} parent=0 // pred_check_branch
    %13 = sbr.rel (0) target = $region5
  $region4: #{transformer_forward.12} parent=0 // pred_region
    _
  $region5: #{transformer_forward.12} parent=0 // pred_fallthru
    _
  // Predicated region
  $region6: #{transformer_forward.12} parent=0 // pred_check
    _
  $region7: #{transformer_forward.12} parent=0 // pred_check_branch
    %15 = sbr.rel (0) target = $region9
  $region8: #{transformer_forward.12} parent=0 // pred_region
    _
  $region9: #{transformer_forward.12} parent=0 // pred_fallthru
    _
  // Predicated region
  $region10: #{transformer_forward.12} parent=0 // pred_check
    _
  $region11: #{transformer_forward.12} parent=0 // pred_check_branch
    %17 = sbr.rel (0) target = $region13
  $region12: #{transformer_forward.12} parent=0 // pred_region
    _
  $region13: #{transformer_forward.12} parent=0 // pred_fallthru
    _
  // Predicated region
  $region14: #{transformer_forward.12} parent=0 // pred_check
    _
  $region15: #{transformer_forward.12} parent=0 // pred_check_branch
    %19 = sbr.rel (0) target = $region17
  $region16: #{transformer_forward.12} parent=0 // pred_region
    _
  $region17: #{transformer_forward.12} parent=0 // pred_fallthru
    _
  // Predicated region
  $region18: #{transformer_forward.12} parent=0 // pred_check
    _
  $region19: #{transformer_forward.12} parent=0 // pred_check_branch
    %21 = sbr.rel (0) target = $region21
  $region20: #{transformer_forward.12} parent=0 // pred_region
    _
  $region21: #{transformer_forward.12} parent=0 // pred_fallthru
    _
  // Predicated region
  $region22: #{transformer_forward.12} parent=0 // pred_check
    _
  $region23: #{transformer_forward.12} parent=0 // pred_check_branch
    %23 = sbr.rel (0) target = $region25
  $region24: #{transformer_forward.12} parent=0 // pred_region
    _
  $region25: #{transformer_forward.12} parent=0 // pred_fallthru
    _
  // Predicated region
  $region26: #{transformer_forward.12} parent=0 // pred_check
    _
  $region27: #{transformer_forward.12} parent=0 // pred_check_branch
    %25 = sbr.rel (0) target = $region29
  $region28: #{transformer_forward.12} parent=0 // pred_region
    _
  $region29: #{transformer_forward.12} parent=0 // pred_fallthru
    _
  %v27 = vld [vmem:[%s0] sm:$0xf]
  %v28 = vld [vmem:[%s0 + $0x4] sm:$0xf]
  %v29 = vld [vmem:[%s0 + $0x8] sm:$0xf]
  %v30 = vld [vmem:[%s0 + $0xc] sm:$0xf]
  %v31 = vld [vmem:[%s0 + $0x10] sm:$0xf]
  %v32 = vld [vmem:[%s0 + $0x14] sm:$0xf]
  %v33 = vld [vmem:[%s0 + $0x18] sm:$0xf]
  %v34 = vld [vmem:[%s0 + $0x1c] sm:$0xf]
  %v35 = vld [vmem:[%s0 + $0x20] sm:$0xf]
  %v36 = vld [vmem:[%s0 + $0x24] sm:$0xf]
  %v37 = vld [vmem:[%s0 + $0x28] sm:$0xf]
  %v38 = vld [vmem:[%s0 + $0x2c] sm:$0xf]
  %v39 = vld [vmem:[%s0 + $0x30] sm:$0xf]
  %v40 = vld [vmem:[%s0 + $0x34] sm:$0xf]
  %v41 = vld [vmem:[%s0 + $0x38] sm:$0xf]
  %v42 = vld [vmem:[%s0 + $0x3c] sm:$0xf]
  %v43 = vld [vmem:[%s1] sm:$0xff]
  %v44 = vld [vmem:[%s1 + $0x8] sm:$0xff]
  %v45 = vld [vmem:[%s1 + $0x10] sm:$0xff]
  %v46 = vld [vmem:[%s1 + $0x18] sm:$0xff]
  %v47 = vld [vmem:[%s1 + $0x20] sm:$0xff]
  %v48 = vld [vmem:[%s1 + $0x28] sm:$0xff]
  %v49 = vld [vmem:[%s1 + $0x30] sm:$0xff]
  %v50 = vld [vmem:[%s1 + $0x38] sm:$0xff]
  %v51 = vld [vmem:[%s1 + $0x40] sm:$0xff]
  %v52 = vld [vmem:[%s1 + $0x48] sm:$0xff]
  %v53 = vld [vmem:[%s1 + $0x50] sm:$0xff]
  %v54 = vld [vmem:[%s1 + $0x58] sm:$0xff]
  %v55 = vld [vmem:[%s1 + $0x60] sm:$0xff]
  %v56 = vld [vmem:[%s1 + $0x68] sm:$0xff]
  %v57 = vld [vmem:[%s1 + $0x70] sm:$0xff]
  %v58 = vld [vmem:[%s1 + $0x78] sm:$0xff]
  %v59 = vld [vmem:[%s2] sm:$0x3]
  %v61 = vlaneseq
  %v62 = vshrl.u32 %v61, 7
  %v63 = vsub.s32 0, %v62
  %v64 = vrot.slane %v59, %v63
  %v65 = vlaneseq
  %v66 = vshrl.u32 %v65, 7
  %v67 = vsub.s32 1, %v66
  %v68 = vrot.slane %v59, %v67
  %v87 = vunpack.c.l.b16 %v27
  %v88 = vunpack.c.l.b16 %v28
  %v89 = vunpack.c.l.b16 %v29
  %v90 = vunpack.c.l.b16 %v30
  %v91 = vunpack.c.l.b16 %v31
  %v92 = vunpack.c.l.b16 %v32
  %v93 = vunpack.c.l.b16 %v33
  %v94 = vunpack.c.l.b16 %v34
  %v95 = vunpack.c.l.b16 %v35
  %v96 = vunpack.c.l.b16 %v36
  %v97 = vunpack.c.l.b16 %v37
  %v98 = vunpack.c.l.b16 %v38
  %v99 = vunpack.c.l.b16 %v39
  %v100 = vunpack.c.l.b16 %v40
  %v101 = vunpack.c.l.b16 %v41
  %v102 = vunpack.c.l.b16 %v42
  %v103 = vpack.c.b16 %v88, %v87
  %v104 = vpack.c.b16 %v90, %v89
  %v105 = vpack.c.b16 %v92, %v91
  %v106 = vpack.c.b16 %v94, %v93
  %v107 = vpack.c.b16 %v96, %v95
  %v108 = vpack.c.b16 %v98, %v97
  %v109 = vpack.c.b16 %v100, %v99
  %v110 = vpack.c.b16 %v102, %v101
  %v135 = vunpack.c.l.b16 %v43
  %v136 = vunpack.c.h.b16 %v43
  %v137 = vunpack.c.l.b16 %v44
  %v138 = vunpack.c.h.b16 %v44
  %v139 = vunpack.c.l.b16 %v45
  %v140 = vunpack.c.h.b16 %v45
  %v141 = vunpack.c.l.b16 %v46
  %v142 = vunpack.c.h.b16 %v46
  %v143 = vunpack.c.l.b16 %v47
  %v144 = vunpack.c.h.b16 %v47
  %v145 = vunpack.c.l.b16 %v48
  %v146 = vunpack.c.h.b16 %v48
  %v147 = vunpack.c.l.b16 %v49
  %v148 = vunpack.c.h.b16 %v49
  %v149 = vunpack.c.l.b16 %v50
  %v150 = vunpack.c.h.b16 %v50
  %v151 = vunpack.c.l.b16 %v51
  %v152 = vunpack.c.h.b16 %v51
  %v153 = vunpack.c.l.b16 %v52
  %v154 = vunpack.c.h.b16 %v52
  %v155 = vunpack.c.l.b16 %v53
  %v156 = vunpack.c.h.b16 %v53
  %v157 = vunpack.c.l.b16 %v54
  %v158 = vunpack.c.h.b16 %v54
  %v159 = vunpack.c.l.b16 %v55
  %v160 = vunpack.c.h.b16 %v55
  %v161 = vunpack.c.l.b16 %v56
  %v162 = vunpack.c.h.b16 %v56
  %v163 = vunpack.c.l.b16 %v57
  %v164 = vunpack.c.h.b16 %v57
  %v165 = vunpack.c.l.b16 %v58
  %v166 = vunpack.c.h.b16 %v58
  %v167 = vpack.c.b16 %v137, %v135
  %v168 = vpack.c.b16 %v138, %v136
  %v169 = vpack.c.b16 %v141, %v139
  %v170 = vpack.c.b16 %v142, %v140
  %v171 = vpack.c.b16 %v145, %v143
  %v172 = vpack.c.b16 %v146, %v144
  %v173 = vpack.c.b16 %v149, %v147
  %v174 = vpack.c.b16 %v150, %v148
  %v175 = vpack.c.b16 %v153, %v151
  %v176 = vpack.c.b16 %v154, %v152
  %v177 = vpack.c.b16 %v157, %v155
  %v178 = vpack.c.b16 %v158, %v156
  %v179 = vpack.c.b16 %v161, %v159
  %v180 = vpack.c.b16 %v162, %v160
  %v181 = vpack.c.b16 %v165, %v163
  %v182 = vpack.c.b16 %v166, %v164
  %199 = vmatprep.subr.bf16.mxu0 %v168
  %200 = vmatpush1.bf16.msra.mxu0 %v167
  %201 = vmatprep.subr.bf16.mxu0 %v170
  %202 = vmatpush1.bf16.msra.mxu0 %v169
  %203 = vmatprep.subr.bf16.mxu0 %v172
  %204 = vmatpush1.bf16.msra.mxu0 %v171
  %205 = vmatprep.subr.bf16.mxu0 %v174
  %206 = vmatpush1.bf16.msra.mxu0 %v173
  %207 = vmatprep.subr.bf16.mxu0 %v176
  %208 = vmatpush1.bf16.msra.mxu0 %v175
  %209 = vmatprep.subr.bf16.mxu0 %v178
  %210 = vmatpush1.bf16.msra.mxu0 %v177
  %211 = vmatprep.subr.bf16.mxu0 %v180
  %212 = vmatpush1.bf16.msra.mxu0 %v179
  %213 = vmatprep.subr.bf16.mxu0 %v182
  %214 = vmatpush1.bf16.msra.mxu0 %v181
  %215 = vmatprep.subr.bf16.mxu0 0
  %216 = vmatpush1.bf16.msra.mxu0 0
  %217 = vmatprep.subr.bf16.mxu0 0
  %218 = vmatpush1.bf16.msra.mxu0 0
  %219 = vmatprep.subr.bf16.mxu0 0
  %220 = vmatpush1.bf16.msra.mxu0 0
  %221 = vmatprep.subr.bf16.mxu0 0
  %222 = vmatpush1.bf16.msra.mxu0 0
  %223 = vmatprep.subr.bf16.mxu0 0
  %224 = vmatpush1.bf16.msra.mxu0 0
  %225 = vmatprep.subr.bf16.mxu0 0
  %226 = vmatpush1.bf16.msra.mxu0 0
  %227 = vmatprep.subr.bf16.mxu0 0
  %228 = vmatpush1.bf16.msra.mxu0 0
  %229 = vmatprep.subr.bf16.mxu0 0
  %230 = vmatpush1.bf16.msra.mxu0 0
  %231 = vmatprep.mubr.bf16.mxu0 0
  %232 = vmatmul.mubr.bf16.gmra.mrb[0].mxu0 %v103
  %v233 = vpop.f32.mrb[0].mxu0
  %v234 = vadd.f32 %v64, %v233
  %v235 = vpop.f32.mrb[0].mxu0
  %v236 = vadd.f32 %v68, %v235
  %v237 = vpop.f32.mrb[0].mxu0
  %v238 = vadd.f32 %v64, %v237
  %v239 = vpop.f32.mrb[0].mxu0
  %v240 = vadd.f32 %v68, %v239
  %241 = vmatprep.mubr.bf16.mxu0 0
  %242 = vmatmul.mubr.bf16.gmra.mrb[0].mxu0 %v104
  %v243 = vpop.f32.mrb[0].mxu0
  %v244 = vadd.f32 %v64, %v243
  %v245 = vpop.f32.mrb[0].mxu0
  %v246 = vadd.f32 %v68, %v245
  %v247 = vpop.f32.mrb[0].mxu0
  %v248 = vadd.f32 %v64, %v247
  %v249 = vpop.f32.mrb[0].mxu0
  %v250 = vadd.f32 %v68, %v249
  %251 = vmatprep.mubr.bf16.mxu0 0
  %252 = vmatmul.mubr.bf16.gmra.mrb[0].mxu0 %v105
  %v253 = vpop.f32.mrb[0].mxu0
  %v254 = vadd.f32 %v64, %v253
  %v255 = vpop.f32.mrb[0].mxu0
  %v256 = vadd.f32 %v68, %v255
  %v257 = vpop.f32.mrb[0].mxu0
  %v258 = vadd.f32 %v64, %v257
  %v259 = vpop.f32.mrb[0].mxu0
  %v260 = vadd.f32 %v68, %v259
  %261 = vmatprep.mubr.bf16.mxu0 0
  %262 = vmatmul.mubr.bf16.gmra.mrb[0].mxu0 %v106
  %v263 = vpop.f32.mrb[0].mxu0
  %v264 = vadd.f32 %v64, %v263
  %v265 = vpop.f32.mrb[0].mxu0
  %v266 = vadd.f32 %v68, %v265
  %v267 = vpop.f32.mrb[0].mxu0
  %v268 = vadd.f32 %v64, %v267
  %v269 = vpop.f32.mrb[0].mxu0
  %v270 = vadd.f32 %v68, %v269
  %271 = vmatprep.mubr.bf16.mxu0 0
  %272 = vmatmul.mubr.bf16.gmra.mrb[0].mxu0 %v107
  %v273 = vpop.f32.mrb[0].mxu0
  %v274 = vadd.f32 %v64, %v273
  %v275 = vpop.f32.mrb[0].mxu0
  %v276 = vadd.f32 %v68, %v275
  %v277 = vpop.f32.mrb[0].mxu0
  %v278 = vadd.f32 %v64, %v277
  %v279 = vpop.f32.mrb[0].mxu0
  %v280 = vadd.f32 %v68, %v279
  %281 = vmatprep.mubr.bf16.mxu0 0
  %282 = vmatmul.mubr.bf16.gmra.mrb[0].mxu0 %v108
  %v283 = vpop.f32.mrb[0].mxu0
  %v284 = vadd.f32 %v64, %v283
  %v285 = vpop.f32.mrb[0].mxu0
  %v286 = vadd.f32 %v68, %v285
  %v287 = vpop.f32.mrb[0].mxu0
  %v288 = vadd.f32 %v64, %v287
  %v289 = vpop.f32.mrb[0].mxu0
  %v290 = vadd.f32 %v68, %v289
  %291 = vmatprep.mubr.bf16.mxu0 0
  %292 = vmatmul.mubr.bf16.gmra.mrb[0].mxu0 %v109
  %v293 = vpop.f32.mrb[0].mxu0
  %v294 = vadd.f32 %v64, %v293
  %v295 = vpop.f32.mrb[0].mxu0
  %v296 = vadd.f32 %v68, %v295
  %v297 = vpop.f32.mrb[0].mxu0
  %v298 = vadd.f32 %v64, %v297
  %v299 = vpop.f32.mrb[0].mxu0
  %v300 = vadd.f32 %v68, %v299
  %301 = vmatprep.mubr.bf16.mxu0 0
  %302 = vmatmul.mubr.bf16.gmra.mrb[0].mxu0 %v110
  %v303 = vpop.f32.mrb[0].mxu0
  %v304 = vadd.f32 %v64, %v303
  %v305 = vpop.f32.mrb[0].mxu0
  %v306 = vadd.f32 %v68, %v305
  %v307 = vpop.f32.mrb[0].mxu0
  %v308 = vadd.f32 %v64, %v307
  %v309 = vpop.f32.mrb[0].mxu0
  %v310 = vadd.f32 %v68, %v309
  %311 = vdwg.mxu0
  %v312 = vmax.f32 %v234, 0.0
  %v313 = vmax.f32 %v236, 0.0
  %v314 = vmax.f32 %v238, 0.0
  %v315 = vmax.f32 %v240, 0.0
  %v316 = vmax.f32 %v244, 0.0
  %v317 = vmax.f32 %v246, 0.0
  %v318 = vmax.f32 %v248, 0.0
  %v319 = vmax.f32 %v250, 0.0
  %v320 = vmax.f32 %v254, 0.0
  %v321 = vmax.f32 %v256, 0.0
  %v322 = vmax.f32 %v258, 0.0
  %v323 = vmax.f32 %v260, 0.0
  %v324 = vmax.f32 %v264, 0.0
  %v325 = vmax.f32 %v266, 0.0
  %v326 = vmax.f32 %v268, 0.0
  %v327 = vmax.f32 %v270, 0.0
  %v328 = vmax.f32 %v274, 0.0
  %v329 = vmax.f32 %v276, 0.0
  %v330 = vmax.f32 %v278, 0.0
  %v331 = vmax.f32 %v280, 0.0
  %v332 = vmax.f32 %v284, 0.0
  %v333 = vmax.f32 %v286, 0.0
  %v334 = vmax.f32 %v288, 0.0
  %v335 = vmax.f32 %v290, 0.0
  %v336 = vmax.f32 %v294, 0.0
  %v337 = vmax.f32 %v296, 0.0
  %v338 = vmax.f32 %v298, 0.0
  %v339 = vmax.f32 %v300, 0.0
  %v340 = vmax.f32 %v304, 0.0
  %v341 = vmax.f32 %v306, 0.0
  %v342 = vmax.f32 %v308, 0.0
  %v343 = vmax.f32 %v310, 0.0
  %v344 = vpack.c.bf16 %v314, %v312
  %v345 = vpack.c.bf16 %v315, %v313
  %v346 = vpack.c.bf16 %v318, %v316
  %v347 = vpack.c.bf16 %v319, %v317
  %v348 = vpack.c.bf16 %v322, %v320
  %v349 = vpack.c.bf16 %v323, %v321
  %v350 = vpack.c.bf16 %v326, %v324
  %v351 = vpack.c.bf16 %v327, %v325
  %v352 = vpack.c.bf16 %v330, %v328
  %v353 = vpack.c.bf16 %v331, %v329
  %v354 = vpack.c.bf16 %v334, %v332
  %v355 = vpack.c.bf16 %v335, %v333
  %v356 = vpack.c.bf16 %v338, %v336
  %v357 = vpack.c.bf16 %v339, %v337
  %v358 = vpack.c.bf16 %v342, %v340
  %v359 = vpack.c.bf16 %v343, %v341
  %v360 = vld [vmem:[%s3] sm:$0xf]
  %v361 = vld [vmem:[%s3 + $0x4] sm:$0xf]
  %v362 = vld [vmem:[%s3 + $0x8] sm:$0xf]
  %v363 = vld [vmem:[%s3 + $0xc] sm:$0xf]
  %v364 = vld [vmem:[%s3 + $0x10] sm:$0xf]
  %v365 = vld [vmem:[%s3 + $0x14] sm:$0xf]
  %v366 = vld [vmem:[%s3 + $0x18] sm:$0xf]
  %v367 = vld [vmem:[%s3 + $0x1c] sm:$0xf]
  %v368 = vld [vmem:[%s3 + $0x20] sm:$0xf]
  %v369 = vld [vmem:[%s3 + $0x24] sm:$0xf]
  %v370 = vld [vmem:[%s3 + $0x28] sm:$0xf]
  %v371 = vld [vmem:[%s3 + $0x2c] sm:$0xf]
  %v372 = vld [vmem:[%s3 + $0x30] sm:$0xf]
  %v373 = vld [vmem:[%s3 + $0x34] sm:$0xf]
  %v374 = vld [vmem:[%s3 + $0x38] sm:$0xf]
  %v375 = vld [vmem:[%s3 + $0x3c] sm:$0xf]
  %v376 = vld [vmem:[%s3 + $0x40] sm:$0xf]
  %v377 = vld [vmem:[%s3 + $0x44] sm:$0xf]
  %v378 = vld [vmem:[%s3 + $0x48] sm:$0xf]
  %v379 = vld [vmem:[%s3 + $0x4c] sm:$0xf]
  %v380 = vld [vmem:[%s3 + $0x50] sm:$0xf]
  %v381 = vld [vmem:[%s3 + $0x54] sm:$0xf]
  %v382 = vld [vmem:[%s3 + $0x58] sm:$0xf]
  %v383 = vld [vmem:[%s3 + $0x5c] sm:$0xf]
  %v384 = vld [vmem:[%s3 + $0x60] sm:$0xf]
  %v385 = vld [vmem:[%s3 + $0x64] sm:$0xf]
  %v386 = vld [vmem:[%s3 + $0x68] sm:$0xf]
  %v387 = vld [vmem:[%s3 + $0x6c] sm:$0xf]
  %v388 = vld [vmem:[%s3 + $0x70] sm:$0xf]
  %v389 = vld [vmem:[%s3 + $0x74] sm:$0xf]
  %v390 = vld [vmem:[%s3 + $0x78] sm:$0xf]
  %v391 = vld [vmem:[%s3 + $0x7c] sm:$0xf]
  %v392 = vld [vmem:[%s4] sm:$0x1]
  %v394 = vlaneseq
  %v395 = vshrl.u32 %v394, 7
  %v396 = vsub.s32 0, %v395
  %v397 = vrot.slane %v392, %v396
  %v431 = vunpack.c.l.b16 %v360
  %v432 = vunpack.c.l.b16 %v361
  %v433 = vunpack.c.l.b16 %v362
  %v434 = vunpack.c.l.b16 %v363
  %v435 = vunpack.c.l.b16 %v364
  %v436 = vunpack.c.l.b16 %v365
  %v437 = vunpack.c.l.b16 %v366
  %v438 = vunpack.c.l.b16 %v367
  %v439 = vunpack.c.l.b16 %v368
  %v440 = vunpack.c.l.b16 %v369
  %v441 = vunpack.c.l.b16 %v370
  %v442 = vunpack.c.l.b16 %v371
  %v443 = vunpack.c.l.b16 %v372
  %v444 = vunpack.c.l.b16 %v373
  %v445 = vunpack.c.l.b16 %v374
  %v446 = vunpack.c.l.b16 %v375
  %v447 = vunpack.c.l.b16 %v376
  %v448 = vunpack.c.l.b16 %v377
  %v449 = vunpack.c.l.b16 %v378
  %v450 = vunpack.c.l.b16 %v379
  %v451 = vunpack.c.l.b16 %v380
  %v452 = vunpack.c.l.b16 %v381
  %v453 = vunpack.c.l.b16 %v382
  %v454 = vunpack.c.l.b16 %v383
  %v455 = vunpack.c.l.b16 %v384
  %v456 = vunpack.c.l.b16 %v385
  %v457 = vunpack.c.l.b16 %v386
  %v458 = vunpack.c.l.b16 %v387
  %v459 = vunpack.c.l.b16 %v388
  %v460 = vunpack.c.l.b16 %v389
  %v461 = vunpack.c.l.b16 %v390
  %v462 = vunpack.c.l.b16 %v391
  %v463 = vpack.c.b16 %v432, %v431
  %v464 = vpack.c.b16 %v434, %v433
  %v465 = vpack.c.b16 %v436, %v435
  %v466 = vpack.c.b16 %v438, %v437
  %v467 = vpack.c.b16 %v440, %v439
  %v468 = vpack.c.b16 %v442, %v441
  %v469 = vpack.c.b16 %v444, %v443
  %v470 = vpack.c.b16 %v446, %v445
  %v471 = vpack.c.b16 %v448, %v447
  %v472 = vpack.c.b16 %v450, %v449
  %v473 = vpack.c.b16 %v452, %v451
  %v474 = vpack.c.b16 %v454, %v453
  %v475 = vpack.c.b16 %v456, %v455
  %v476 = vpack.c.b16 %v458, %v457
  %v477 = vpack.c.b16 %v460, %v459
  %v478 = vpack.c.b16 %v462, %v461
  %495 = vmatprep.subr.bf16.mxu0 0
  %496 = vmatpush1.bf16.msra.mxu0 %v463
  %497 = vmatprep.subr.bf16.mxu0 0
  %498 = vmatpush1.bf16.msra.mxu0 %v464
  %499 = vmatprep.subr.bf16.mxu0 0
  %500 = vmatpush1.bf16.msra.mxu0 %v465
  %501 = vmatprep.subr.bf16.mxu0 0
  %502 = vmatpush1.bf16.msra.mxu0 %v466
  %503 = vmatprep.subr.bf16.mxu0 0
  %504 = vmatpush1.bf16.msra.mxu0 %v467
  %505 = vmatprep.subr.bf16.mxu0 0
  %506 = vmatpush1.bf16.msra.mxu0 %v468
  %507 = vmatprep.subr.bf16.mxu0 0
  %508 = vmatpush1.bf16.msra.mxu0 %v469
  %509 = vmatprep.subr.bf16.mxu0 0
  %510 = vmatpush1.bf16.msra.mxu0 %v470
  %511 = vmatprep.subr.bf16.mxu0 0
  %512 = vmatpush1.bf16.msra.mxu0 %v471
  %513 = vmatprep.subr.bf16.mxu0 0
  %514 = vmatpush1.bf16.msra.mxu0 %v472
  %515 = vmatprep.subr.bf16.mxu0 0
  %516 = vmatpush1.bf16.msra.mxu0 %v473
  %517 = vmatprep.subr.bf16.mxu0 0
  %518 = vmatpush1.bf16.msra.mxu0 %v474
  %519 = vmatprep.subr.bf16.mxu0 0
  %520 = vmatpush1.bf16.msra.mxu0 %v475
  %521 = vmatprep.subr.bf16.mxu0 0
  %522 = vmatpush1.bf16.msra.mxu0 %v476
  %523 = vmatprep.subr.bf16.mxu0 0
  %524 = vmatpush1.bf16.msra.mxu0 %v477
  %525 = vmatprep.subr.bf16.mxu0 0
  %526 = vmatpush1.bf16.msra.mxu0 %v478
  %527 = vmatprep.mubr.bf16.mxu0 %v345
  %528 = vmatmul.mubr.bf16.gmra.mrb[0].mxu0 %v344
  %v529 = vpop.f32.mrb[0].mxu0
  %v530 = vadd.f32 %v397, %v529
  %v531 = vpop.f32.mrb[0].mxu0
  %v532 = vpop.f32.mrb[0].mxu0
  %v533 = vadd.f32 %v397, %v532
  %v534 = vpop.f32.mrb[0].mxu0
  %535 = vmatprep.mubr.bf16.mxu0 %v347
  %536 = vmatmul.mubr.bf16.gmra.mrb[0].mxu0 %v346
  %v537 = vpop.f32.mrb[0].mxu0
  %v538 = vadd.f32 %v397, %v537
  %v539 = vpop.f32.mrb[0].mxu0
  %v540 = vpop.f32.mrb[0].mxu0
  %v541 = vadd.f32 %v397, %v540
  %v542 = vpop.f32.mrb[0].mxu0
  %543 = vmatprep.mubr.bf16.mxu0 %v349
  %544 = vmatmul.mubr.bf16.gmra.mrb[0].mxu0 %v348
  %v545 = vpop.f32.mrb[0].mxu0
  %v546 = vadd.f32 %v397, %v545
  %v547 = vpop.f32.mrb[0].mxu0
  %v548 = vpop.f32.mrb[0].mxu0
  %v549 = vadd.f32 %v397, %v548
  %v550 = vpop.f32.mrb[0].mxu0
  %551 = vmatprep.mubr.bf16.mxu0 %v351
  %552 = vmatmul.mubr.bf16.gmra.mrb[0].mxu0 %v350
  %v553 = vpop.f32.mrb[0].mxu0
  %v554 = vadd.f32 %v397, %v553
  %v555 = vpop.f32.mrb[0].mxu0
  %v556 = vpop.f32.mrb[0].mxu0
  %v557 = vadd.f32 %v397, %v556
  %v558 = vpop.f32.mrb[0].mxu0
  %559 = vmatprep.mubr.bf16.mxu0 %v353
  %560 = vmatmul.mubr.bf16.gmra.mrb[0].mxu0 %v352
  %v561 = vpop.f32.mrb[0].mxu0
  %v562 = vadd.f32 %v397, %v561
  %v563 = vpop.f32.mrb[0].mxu0
  %v564 = vpop.f32.mrb[0].mxu0
  %v565 = vadd.f32 %v397, %v564
  %v566 = vpop.f32.mrb[0].mxu0
  %567 = vmatprep.mubr.bf16.mxu0 %v355
  %568 = vmatmul.mubr.bf16.gmra.mrb[0].mxu0 %v354
  %v569 = vpop.f32.mrb[0].mxu0
  %v570 = vadd.f32 %v397, %v569
  %v571 = vpop.f32.mrb[0].mxu0
  %v572 = vpop.f32.mrb[0].mxu0
  %v573 = vadd.f32 %v397, %v572
  %v574 = vpop.f32.mrb[0].mxu0
  %575 = vmatprep.mubr.bf16.mxu0 %v357
  %576 = vmatmul.mubr.bf16.gmra.mrb[0].mxu0 %v356
  %v577 = vpop.f32.mrb[0].mxu0
  %v578 = vadd.f32 %v397, %v577
  %v579 = vpop.f32.mrb[0].mxu0
  %v580 = vpop.f32.mrb[0].mxu0
  %v581 = vadd.f32 %v397, %v580
  %v582 = vpop.f32.mrb[0].mxu0
  %583 = vmatprep.mubr.bf16.mxu0 %v359
  %584 = vmatmul.mubr.bf16.gmra.mrb[0].mxu0 %v358
  %v585 = vpop.f32.mrb[0].mxu0
  %v586 = vadd.f32 %v397, %v585
  %v587 = vpop.f32.mrb[0].mxu0
  %v588 = vpop.f32.mrb[0].mxu0
  %v589 = vadd.f32 %v397, %v588
  %v590 = vpop.f32.mrb[0].mxu0
  %591 = vdwg.mxu0
  %v592 = vunpack.c.l.bf16 %v27
  %v593 = vunpack.c.l.bf16 %v28
  %v594 = vunpack.c.l.bf16 %v29
  %v595 = vunpack.c.l.bf16 %v30
  %v596 = vunpack.c.l.bf16 %v31
  %v597 = vunpack.c.l.bf16 %v32
  %v598 = vunpack.c.l.bf16 %v33
  %v599 = vunpack.c.l.bf16 %v34
  %v600 = vunpack.c.l.bf16 %v35
  %v601 = vunpack.c.l.bf16 %v36
  %v602 = vunpack.c.l.bf16 %v37
  %v603 = vunpack.c.l.bf16 %v38
  %v604 = vunpack.c.l.bf16 %v39
  %v605 = vunpack.c.l.bf16 %v40
  %v606 = vunpack.c.l.bf16 %v41
  %v607 = vunpack.c.l.bf16 %v42
  %v608 = vadd.f32 %v530, %v592
  %v609 = vadd.f32 %v533, %v593
  %v610 = vadd.f32 %v538, %v594
  %v611 = vadd.f32 %v541, %v595
  %v612 = vadd.f32 %v546, %v596
  %v613 = vadd.f32 %v549, %v597
  %v614 = vadd.f32 %v554, %v598
  %v615 = vadd.f32 %v557, %v599
  %v616 = vadd.f32 %v562, %v600
  %v617 = vadd.f32 %v565, %v601
  %v618 = vadd.f32 %v570, %v602
  %v619 = vadd.f32 %v573, %v603
  %v620 = vadd.f32 %v578, %v604
  %v621 = vadd.f32 %v581, %v605
  %v622 = vadd.f32 %v586, %v606
  %v623 = vadd.f32 %v589, %v607
  %624 = vadd.xlane.f32.xlu0 %v608
  %v625 = vpop.xlane.xlu0 %624
  %626 = vadd.xlane.f32.xlu0 %v609
  %v627 = vpop.xlane.xlu0 %626
  %628 = vadd.xlane.f32.xlu0 %v610
  %v629 = vpop.xlane.xlu0 %628
  %630 = vadd.xlane.f32.xlu0 %v611
  %v631 = vpop.xlane.xlu0 %630
  %632 = vadd.xlane.f32.xlu0 %v612
  %v633 = vpop.xlane.xlu0 %632
  %634 = vadd.xlane.f32.xlu0 %v613
  %v635 = vpop.xlane.xlu0 %634
  %636 = vadd.xlane.f32.xlu0 %v614
  %v637 = vpop.xlane.xlu0 %636
  %638 = vadd.xlane.f32.xlu0 %v615
  %v639 = vpop.xlane.xlu0 %638
  %640 = vadd.xlane.f32.xlu0 %v616
  %v641 = vpop.xlane.xlu0 %640
  %642 = vadd.xlane.f32.xlu0 %v617
  %v643 = vpop.xlane.xlu0 %642
  %644 = vadd.xlane.f32.xlu0 %v618
  %v645 = vpop.xlane.xlu0 %644
  %646 = vadd.xlane.f32.xlu0 %v619
  %v647 = vpop.xlane.xlu0 %646
  %648 = vadd.xlane.f32.xlu0 %v620
  %v649 = vpop.xlane.xlu0 %648
  %650 = vadd.xlane.f32.xlu0 %v621
  %v651 = vpop.xlane.xlu0 %650
  %652 = vadd.xlane.f32.xlu0 %v622
  %v653 = vpop.xlane.xlu0 %652
  %654 = vadd.xlane.f32.xlu0 %v623
  %v655 = vpop.xlane.xlu0 %654
  %v656 = vrcp.pop 128.0
  %v657 = vmul.f32 %v625, %v656
  %v658 = vmul.f32 %v627, %v656
  %v659 = vmul.f32 %v629, %v656
  %v660 = vmul.f32 %v631, %v656
  %v661 = vmul.f32 %v633, %v656
  %v662 = vmul.f32 %v635, %v656
  %v663 = vmul.f32 %v637, %v656
  %v664 = vmul.f32 %v639, %v656
  %v665 = vmul.f32 %v641, %v656
  %v666 = vmul.f32 %v643, %v656
  %v667 = vmul.f32 %v645, %v656
  %v668 = vmul.f32 %v647, %v656
  %v669 = vmul.f32 %v649, %v656
  %v670 = vmul.f32 %v651, %v656
  %v671 = vmul.f32 %v653, %v656
  %v672 = vmul.f32 %v655, %v656
  %v673 = vsub.f32 %v608, %v657
  %v674 = vsub.f32 %v609, %v658
  %v675 = vsub.f32 %v610, %v659
  %v676 = vsub.f32 %v611, %v660
  %v677 = vsub.f32 %v612, %v661
  %v678 = vsub.f32 %v613, %v662
  %v679 = vsub.f32 %v614, %v663
  %v680 = vsub.f32 %v615, %v664
  %v681 = vsub.f32 %v616, %v665
  %v682 = vsub.f32 %v617, %v666
  %v683 = vsub.f32 %v618, %v667
  %v684 = vsub.f32 %v619, %v668
  %v685 = vsub.f32 %v620, %v669
  %v686 = vsub.f32 %v621, %v670
  %v687 = vsub.f32 %v622, %v671
  %v688 = vsub.f32 %v623, %v672
  %v689 = vmul.f32 %v673, %v673
  %v690 = vmul.f32 %v674, %v674
  %v691 = vmul.f32 %v675, %v675
  %v692 = vmul.f32 %v676, %v676
  %v693 = vmul.f32 %v677, %v677
  %v694 = vmul.f32 %v678, %v678
  %v695 = vmul.f32 %v679, %v679
  %v696 = vmul.f32 %v680, %v680
  %v697 = vmul.f32 %v681, %v681
  %v698 = vmul.f32 %v682, %v682
  %v699 = vmul.f32 %v683, %v683
  %v700 = vmul.f32 %v684, %v684
  %v701 = vmul.f32 %v685, %v685
  %v702 = vmul.f32 %v686, %v686
  %v703 = vmul.f32 %v687, %v687
  %v704 = vmul.f32 %v688, %v688
  %705 = vadd.xlane.f32.xlu0 %v689
  %v706 = vpop.xlane.xlu0 %705
  %707 = vadd.xlane.f32.xlu0 %v690
  %v708 = vpop.xlane.xlu0 %707
  %709 = vadd.xlane.f32.xlu0 %v691
  %v710 = vpop.xlane.xlu0 %709
  %711 = vadd.xlane.f32.xlu0 %v692
  %v712 = vpop.xlane.xlu0 %711
  %713 = vadd.xlane.f32.xlu0 %v693
  %v714 = vpop.xlane.xlu0 %713
  %715 = vadd.xlane.f32.xlu0 %v694
  %v716 = vpop.xlane.xlu0 %715
  %717 = vadd.xlane.f32.xlu0 %v695
  %v718 = vpop.xlane.xlu0 %717
  %719 = vadd.xlane.f32.xlu0 %v696
  %v720 = vpop.xlane.xlu0 %719
  %721 = vadd.xlane.f32.xlu0 %v697
  %v722 = vpop.xlane.xlu0 %721
  %723 = vadd.xlane.f32.xlu0 %v698
  %v724 = vpop.xlane.xlu0 %723
  %725 = vadd.xlane.f32.xlu0 %v699
  %v726 = vpop.xlane.xlu0 %725
  %727 = vadd.xlane.f32.xlu0 %v700
  %v728 = vpop.xlane.xlu0 %727
  %729 = vadd.xlane.f32.xlu0 %v701
  %v730 = vpop.xlane.xlu0 %729
  %731 = vadd.xlane.f32.xlu0 %v702
  %v732 = vpop.xlane.xlu0 %731
  %733 = vadd.xlane.f32.xlu0 %v703
  %v734 = vpop.xlane.xlu0 %733
  %735 = vadd.xlane.f32.xlu0 %v704
  %v736 = vpop.xlane.xlu0 %735
  %v737 = vmul.f32 %v706, %v656
  %v738 = vmul.f32 %v708, %v656
  %v739 = vmul.f32 %v710, %v656
  %v740 = vmul.f32 %v712, %v656
  %v741 = vmul.f32 %v714, %v656
  %v742 = vmul.f32 %v716, %v656
  %v743 = vmul.f32 %v718, %v656
  %v744 = vmul.f32 %v720, %v656
  %v745 = vmul.f32 %v722, %v656
  %v746 = vmul.f32 %v724, %v656
  %v747 = vmul.f32 %v726, %v656
  %v748 = vmul.f32 %v728, %v656
  %v749 = vmul.f32 %v730, %v656
  %v750 = vmul.f32 %v732, %v656
  %v751 = vmul.f32 %v734, %v656
  %v752 = vmul.f32 %v736, %v656
  %v753 = vadd.f32 %v737, 1e-05
  %v754 = vadd.f32 %v738, 1e-05
  %v755 = vadd.f32 %v739, 1e-05
  %v756 = vadd.f32 %v740, 1e-05
  %v757 = vadd.f32 %v741, 1e-05
  %v758 = vadd.f32 %v742, 1e-05
  %v759 = vadd.f32 %v743, 1e-05
  %v760 = vadd.f32 %v744, 1e-05
  %v761 = vadd.f32 %v745, 1e-05
  %v762 = vadd.f32 %v746, 1e-05
  %v763 = vadd.f32 %v747, 1e-05
  %v764 = vadd.f32 %v748, 1e-05
  %v765 = vadd.f32 %v749, 1e-05
  %v766 = vadd.f32 %v750, 1e-05
  %v767 = vadd.f32 %v751, 1e-05
  %v768 = vadd.f32 %v752, 1e-05
  %v769 = vrsqrt.pop %v753
  %v770 = vrsqrt.pop %v754
  %v771 = vrsqrt.pop %v755
  %v772 = vrsqrt.pop %v756
  %v773 = vrsqrt.pop %v757
  %v774 = vrsqrt.pop %v758
  %v775 = vrsqrt.pop %v759
  %v776 = vrsqrt.pop %v760
  %v777 = vrsqrt.pop %v761
  %v778 = vrsqrt.pop %v762
  %v779 = vrsqrt.pop %v763
  %v780 = vrsqrt.pop %v764
  %v781 = vrsqrt.pop %v765
  %v782 = vrsqrt.pop %v766
  %v783 = vrsqrt.pop %v767
  %v784 = vrsqrt.pop %v768
  %v785 = vmul.f32 %v673, %v769
  %v786 = vmul.f32 %v674, %v770
  %v787 = vmul.f32 %v675, %v771
  %v788 = vmul.f32 %v676, %v772
  %v789 = vmul.f32 %v677, %v773
  %v790 = vmul.f32 %v678, %v774
  %v791 = vmul.f32 %v679, %v775
  %v792 = vmul.f32 %v680, %v776
  %v793 = vmul.f32 %v681, %v777
  %v794 = vmul.f32 %v682, %v778
  %v795 = vmul.f32 %v683, %v779
  %v796 = vmul.f32 %v684, %v780
  %v797 = vmul.f32 %v685, %v781
  %v798 = vmul.f32 %v686, %v782
  %v799 = vmul.f32 %v687, %v783
  %v800 = vmul.f32 %v688, %v784
  %v801 = vld [vmem:[%s5] sm:$0x1]
  %v803 = vlaneseq
  %v804 = vshrl.u32 %v803, 7
  %v805 = vsub.s32 0, %v804
  %v806 = vrot.slane %v801, %v805
  %v808 = vmul.f32 %v785, %v806
  %v809 = vmul.f32 %v786, %v806
  %v810 = vmul.f32 %v787, %v806
  %v811 = vmul.f32 %v788, %v806
  %v812 = vmul.f32 %v789, %v806
  %v813 = vmul.f32 %v790, %v806
  %v814 = vmul.f32 %v791, %v806
  %v815 = vmul.f32 %v792, %v806
  %v816 = vmul.f32 %v793, %v806
  %v817 = vmul.f32 %v794, %v806
  %v818 = vmul.f32 %v795, %v806
  %v819 = vmul.f32 %v796, %v806
  %v820 = vmul.f32 %v797, %v806
  %v821 = vmul.f32 %v798, %v806
  %v822 = vmul.f32 %v799, %v806
  %v823 = vmul.f32 %v800, %v806
  %v824 = vld [vmem:[%s6] sm:$0x1]
  %v826 = vlaneseq
  %v827 = vshrl.u32 %v826, 7
  %v828 = vsub.s32 0, %v827
  %v829 = vrot.slane %v824, %v828
  %v831 = vadd.f32 %v808, %v829
  %v832 = vadd.f32 %v809, %v829
  %v833 = vadd.f32 %v810, %v829
  %v834 = vadd.f32 %v811, %v829
  %v835 = vadd.f32 %v812, %v829
  %v836 = vadd.f32 %v813, %v829
  %v837 = vadd.f32 %v814, %v829
  %v838 = vadd.f32 %v815, %v829
  %v839 = vadd.f32 %v816, %v829
  %v840 = vadd.f32 %v817, %v829
  %v841 = vadd.f32 %v818, %v829
  %v842 = vadd.f32 %v819, %v829
  %v843 = vadd.f32 %v820, %v829
  %v844 = vadd.f32 %v821, %v829
  %v845 = vadd.f32 %v822, %v829
  %v846 = vadd.f32 %v823, %v829
  %v847 = vpack.c.bf16 %v832, %v831
  %v848 = vpack.c.bf16 %v834, %v833
  %v849 = vpack.c.bf16 %v836, %v835
  %v850 = vpack.c.bf16 %v838, %v837
  %v851 = vpack.c.bf16 %v840, %v839
  %v852 = vpack.c.bf16 %v842, %v841
  %v853 = vpack.c.bf16 %v844, %v843
  %v854 = vpack.c.bf16 %v846, %v845
  %v863 = vunpack.c.l.b16 %v847
  %v864 = vunpack.c.h.b16 %v847
  %v865 = vunpack.c.l.b16 %v848
  %v866 = vunpack.c.h.b16 %v848
  %v867 = vunpack.c.l.b16 %v849
  %v868 = vunpack.c.h.b16 %v849
  %v869 = vunpack.c.l.b16 %v850
  %v870 = vunpack.c.h.b16 %v850
  %v871 = vunpack.c.l.b16 %v851
  %v872 = vunpack.c.h.b16 %v851
  %v873 = vunpack.c.l.b16 %v852
  %v874 = vunpack.c.h.b16 %v852
  %v875 = vunpack.c.l.b16 %v853
  %v876 = vunpack.c.h.b16 %v853
  %v877 = vunpack.c.l.b16 %v854
  %v878 = vunpack.c.h.b16 %v854
  %v879 = vpack.c.b16 %v863, %v863
  %v880 = vpack.c.b16 %v864, %v864
  %v881 = vpack.c.b16 %v865, %v865
  %v882 = vpack.c.b16 %v866, %v866
  %v883 = vpack.c.b16 %v867, %v867
  %v884 = vpack.c.b16 %v868, %v868
  %v885 = vpack.c.b16 %v869, %v869
  %v886 = vpack.c.b16 %v870, %v870
  %v887 = vpack.c.b16 %v871, %v871
  %v888 = vpack.c.b16 %v872, %v872
  %v889 = vpack.c.b16 %v873, %v873
  %v890 = vpack.c.b16 %v874, %v874
  %v891 = vpack.c.b16 %v875, %v875
  %v892 = vpack.c.b16 %v876, %v876
  %v893 = vpack.c.b16 %v877, %v877
  %v894 = vpack.c.b16 %v878, %v878
  %911 = vst [vmem:[%s7] sm:$0xf] %v879
  %912 = vst [vmem:[%s7 + $0x4] sm:$0xf] %v880
  %913 = vst [vmem:[%s7 + $0x8] sm:$0xf] %v881
  %914 = vst [vmem:[%s7 + $0xc] sm:$0xf] %v882
  %915 = vst [vmem:[%s7 + $0x10] sm:$0xf] %v883
  %916 = vst [vmem:[%s7 + $0x14] sm:$0xf] %v884
  %917 = vst [vmem:[%s7 + $0x18] sm:$0xf] %v885
  %918 = vst [vmem:[%s7 + $0x1c] sm:$0xf] %v886
  %919 = vst [vmem:[%s7 + $0x20] sm:$0xf] %v887
  %920 = vst [vmem:[%s7 + $0x24] sm:$0xf] %v888
  %921 = vst [vmem:[%s7 + $0x28] sm:$0xf] %v889
  %922 = vst [vmem:[%s7 + $0x2c] sm:$0xf] %v890
  %923 = vst [vmem:[%s7 + $0x30] sm:$0xf] %v891
  %924 = vst [vmem:[%s7 + $0x34] sm:$0xf] %v892
  %925 = vst [vmem:[%s7 + $0x38] sm:$0xf] %v893
  %926 = vst [vmem:[%s7 + $0x3c] sm:$0xf] %v894
  // Predicated region
  $region30: #{transformer_forward.12} parent=0 // pred_check
    _
  $region31: #{transformer_forward.12} parent=0 // pred_check_branch
    %928 = sbr.rel (0) target = $region33
  $region32: #{transformer_forward.12} parent=0 // pred_region
    _
  $region33: #{transformer_forward.12} parent=0 // pred_fallthru
    _
  // Predicated region
  $region34: #{transformer_forward.12} parent=0 // pred_check
    _
  $region35: #{transformer_forward.12} parent=0 // pred_check_branch
    %930 = sbr.rel (0) target = $region37
  $region36: #{transformer_forward.12} parent=0 // pred_region
    _
  $region37: #{transformer_forward.12} parent=0 // pred_fallthru
    _

</llo_original>
